<compile_context>
chip_gen: v5e
topology: v5e:2x2
jax: 0.10.0
libtpu: 0.0.40
codegen_flags: <defaults>
</compile_context>

<pallas_src>
import functools

import numpy as np
import jax
import jax.numpy as jnp
from jax.experimental import pallas as pl
from jax.experimental.pallas import tpu as pltpu


# -----------------------------------------------------------------------------
# Fused Pallas kernel: one grid step = Nb images, layout (Nb*H, W*C).
# -----------------------------------------------------------------------------
def _cab_dsc_kernel(
    x_ref,
    topm_ref, botm_ref, pool_ref, expand_ref,
    b1_wd, b2_wd, s_wd_r, s_wd_x,
    b1_wp, b2_wp, s_wp_r, s_wp_x,
    bias_ref,
    ca1_w1, ca1_w2, ca2_w1, ca2_w2,
    out_ref,
    *, H, W, C):
  f32 = jnp.float32
  bf16 = jnp.bfloat16
  WC = W * C
  rows = x_ref.shape[0]                      # Nb * H

  x = x_ref[...].astype(f32)                 # (rows, WC)
  top_mask = topm_ref[...]                   # (rows, 1): 0 on first row of each image
  bot_mask = botm_ref[...]                   # (rows, 1): 0 on last  row of each image
  zrow = jnp.zeros((1, WC), f32)
  zcol = jnp.zeros((rows, C), f32)

  def bias(i):                               # packed biases: one (8, WC) tile
    return bias_ref[pl.ds(i, 1), :]

  def depthwise(a, wd_ref):
    """3x3 depthwise conv with zero 'SAME' padding on (rows, W*C) activations."""
    shifted_rows = (
        jnp.concatenate([zrow, a[:-1, :]], axis=0) * top_mask,   # row h-1
        a,                                                       # row h
        jnp.concatenate([a[1:, :], zrow], axis=0) * bot_mask,    # row h+1
    )
    acc = None
    for ky in range(3):
      r = shifted_rows[ky]
      cols = (
          jnp.concatenate([zcol, r[:, :WC - C]], axis=1),        # pixel w-1
          r,                                                     # pixel w
          jnp.concatenate([r[:, C:], zcol], axis=1),             # pixel w+1
      )
      for kx in range(3):
        # Per-tap row read straight from the ref (no value re-slicing).
        term = cols[kx] * wd_ref[pl.ds(ky * 3 + kx, 1), :]
        acc = term if acc is None else acc + term
    return acc

  def pointwise(a, wp_ref):
    """1x1 conv as a block-diagonal bf16 MXU matmul with f32 accumulation."""
    return jnp.dot(a.astype(bf16), wp_ref[...], preferred_element_type=f32)

  def channel_attention(y, w1_ref, w2_ref):
    """Squeeze/excite; the per-image average pool (1/(H*W)) is folded into
    pool_ref, so everything stays in the (rows, WC) layout (f32 throughout)."""
    pooled = jnp.dot(pool_ref[...], y, preferred_element_type=f32)     # (Nb, WC)
    h = jnp.maximum(
        jnp.dot(pooled, w1_ref[...], preferred_element_type=f32), 0.0)  # (Nb, Cr)
    z = jnp.dot(h, w2_ref[...], preferred_element_type=f32)             # (Nb, WC)
    s = 1.0 / (1.0 + jnp.exp(-z))                                        # sigmoid
    s_rows = jnp.dot(expand_ref[...], s, preferred_element_type=f32)     # (rows, WC)
    return y * s_rows

  # ---- self.body : DSC -> ReLU -> DSC ---------------------------------------
  r1 = jnp.maximum(
      pointwise(depthwise(x, b1_wd) + bias(0), b1_wp) + bias(1), 0.0)
  r2 = pointwise(depthwise(r1, b2_wd) + bias(2), b2_wp) + bias(3)
  # ---- self.CA ---------------------------------------------------------------
  r_ca = channel_attention(r2, ca1_w1, ca1_w2)
  # ---- self.S2FB2 : DSC(cat(res, x)) -> CA -> + res ---------------------------
  # The channel concat is fused away by splitting the DSC weights into the
  # `res` half and the `x` half and summing the two pointwise matmuls.
  fea = (pointwise(depthwise(r_ca, s_wd_r) + bias(4), s_wp_r)
         + pointwise(depthwise(x, s_wd_x) + bias(5), s_wp_x)
         + bias(6))
  out = channel_attention(fea, ca2_w1, ca2_w2) + r_ca
  out_ref[...] = out.astype(out_ref.dtype)


# -----------------------------------------------------------------------------
# One-time weight rework (call ONCE, outside the jitted forward)
# -----------------------------------------------------------------------------
def _tile_lanes(v, W):
  """(1, C) -> (1, W*C): repeat per pixel column."""
  return jnp.tile(v, (1, W))


def _tile_dw_weights(wd, W):
  """(9, C) depthwise taps -> (9, W*C); zero the wrap-around pixel columns of
  the kx=0 / kx=2 taps (kept so a future switch to circular pltpu.roll shifts
  stays a drop-in change)."""
  C = wd.shape[1]
  WC = W * C
  wdt = jnp.tile(wd, (1, W))
  mask = jnp.ones((9, WC), dtype=wd.dtype)
  mask = mask.at[0::3, :C].set(0)
  mask = mask.at[2::3, WC - C:].set(0)
  return wdt * mask


def _block_diag(wp, W):
  """(Cin, Cout) 1x1 conv -> (W*Cin, W*Cout) block-diagonal matmul weight."""
  return jnp.kron(jnp.eye(W, dtype=wp.dtype), wp)


_WEIGHT_ORDER = ("b1_wd", "b2_wd", "s_wd_r", "s_wd_x",
                 "b1_wp", "b2_wp", "s_wp_r", "s_wp_x",
                 "biases",
                 "ca1_w1", "ca1_w2", "ca2_w1", "ca2_w2")


def prepare_params(p, W):
  """Rearrange CAB_dsc parameters into the fused lane-dense kernel layout."""
  C = p["b1_wp"].shape[0]            # n_feat
  bf16 = jnp.bfloat16
  # The seven (1, WC) biases packed into a single (8, WC) sublane tile.
  biases = jnp.concatenate([
      _tile_lanes(p["b1_bd"], W), _tile_lanes(p["b1_bp"], W),
      _tile_lanes(p["b2_bd"], W), _tile_lanes(p["b2_bp"], W),
      _tile_lanes(p["s_bd"][:, :C], W), _tile_lanes(p["s_bd"][:, C:], W),
      _tile_lanes(p["s_bp"], W),
      jnp.zeros((1, W * C), jnp.float32),
  ], axis=0)
  return {
      "b1_wd": _tile_dw_weights(p["b1_wd"], W),
      "b2_wd": _tile_dw_weights(p["b2_wd"], W),
      "s_wd_r": _tile_dw_weights(p["s_wd"][:, :C], W),
      "s_wd_x": _tile_dw_weights(p["s_wd"][:, C:], W),
      # Big pointwise weights in bf16: native MXU path, half the DMA.
      "b1_wp": _block_diag(p["b1_wp"], W).astype(bf16),
      "b2_wp": _block_diag(p["b2_wp"], W).astype(bf16),
      "s_wp_r": _block_diag(p["s_wp"][:C, :], W).astype(bf16),
      "s_wp_x": _block_diag(p["s_wp"][C:, :], W).astype(bf16),
      "biases": biases,
      "ca1_w1": jnp.tile(p["ca_w1"], (W, 1)),            # (W*C, Cr)
      "ca1_w2": jnp.tile(p["ca_w2"], (1, W)),            # (Cr, W*C)
      "ca2_w1": jnp.tile(p["s_ca_w1"], (W, 1)),
      "ca2_w2": jnp.tile(p["s_ca_w2"], (1, W)),
  }


# -----------------------------------------------------------------------------
# Forward wrapper
# -----------------------------------------------------------------------------
def _pick_images_per_step(n, h):
  """Images per grid step: fill MXU rows (target 256), but keep an even grid
  for v7x megacore when that does not drop the matmul M below 128 rows."""
  nb = max(1, min(n, max(1, 256 // h)))
  while n % nb:
    nb -= 1
  if (n // nb) % 2 == 1 and nb % 2 == 0 and (nb // 2) * h >= 128:
    nb //= 2
  return nb


def _const_index_map(ndim):
  zeros = (0,) * ndim
  return lambda b: zeros


def cab_dsc_forward(x, prepared, *, images_per_step=None):
  """CAB_dsc forward.  x: (N, H, W, n_feat); `prepared` from prepare_params."""
  N, H, W, C = x.shape
  WC = W * C
  Nb = images_per_step or _pick_images_per_step(N, H)
  assert N % Nb == 0
  NbH = Nb * H

  # Per-image boundary masks (zero 'SAME' padding in H and no leakage between
  # the Nb images stacked in one block) + avg-pool / broadcast matrices.
  ridx = np.arange(NbH)
  top_mask = (ridx % H != 0).astype(np.float32).reshape(NbH, 1)
  bot_mask = (ridx % H != H - 1).astype(np.float32).reshape(NbH, 1)
  pool_mat = np.kron(np.eye(Nb, dtype=np.float32),
                     np.full((1, H), 1.0 / (H * W), np.float32))   # (Nb, NbH)
  expand_mat = np.kron(np.eye(Nb, dtype=np.float32),
                       np.ones((H, 1), np.float32))                # (NbH, Nb)

  weights = [top_mask, bot_mask, pool_mat, expand_mat] + \
            [prepared[k] for k in _WEIGHT_ORDER]

  x2 = x.reshape(N * H, WC)                  # lane-dense, free reshape

  def _const_spec(w):
    # Grid-invariant operand: request a single VMEM buffer.
    idx_map = _const_index_map(w.ndim)
    try:
      return pl.BlockSpec(w.shape, idx_map, pipeline_mode=pl.Buffered(1))
    except (TypeError, ValueError):          # fallback: default buffering
      return pl.BlockSpec(w.shape, idx_map)

  in_specs = ([pl.BlockSpec((NbH, WC), lambda b: (b, 0))]
              + [_const_spec(w) for w in weights])
  out_spec = pl.BlockSpec((NbH, WC), lambda b: (b, 0))

  # Explicit scoped-VMEM budget: double-buffered activation blocks +
  # weights (x2 safety) + headroom for in-kernel temporaries.
  block_bytes = NbH * WC * x.dtype.itemsize
  weight_bytes = sum(int(w.size) * w.dtype.itemsize for w in weights)
  vmem_limit = int(min(100 * 2**20,
                       4 * block_bytes + 2 * weight_bytes + 16 * 2**20))

  kernel = functools.partial(_cab_dsc_kernel, H=H, W=W, C=C)
  out2 = pl.pallas_call(
      kernel,
      out_shape=jax.ShapeDtypeStruct((N * H, WC), x.dtype),
      grid=(N // Nb,),
      in_specs=in_specs,
      out_specs=out_spec,
      compiler_params=pltpu.CompilerParams(
          dimension_semantics=("parallel",),   # batch axis -> 2 TCs on v7x
          vmem_limit_bytes=vmem_limit),
  )(x2, *weights)
  return out2.reshape(N, H, W, C)


# -----------------------------------------------------------------------------
# Pure-JAX reference (correctness check)
# -----------------------------------------------------------------------------
def _dsc_ref(x, wd, bd, wp, bp, *, apply_relu):
  N, H, W, C = x.shape
  wd4 = wd.reshape(3, 3, 1, C)
  y = jax.lax.conv_general_dilated(
      x, wd4, window_strides=(1, 1), padding="SAME",
      dimension_numbers=("NHWC", "HWIO", "NHWC"), feature_group_count=C)
  y = y + bd.reshape(1, 1, 1, C)
  y = jnp.einsum("nhwc,cd->nhwd", y, wp) + bp.reshape(1, 1, 1, -1)
  return jnp.maximum(y, 0.0) if apply_relu else y


def _ca_ref(x, w1, w2):
  m = jnp.mean(x, axis=(1, 2), keepdims=True)
  h = jnp.maximum(jnp.einsum("nijc,cd->nijd", m, w1), 0.0)
  s = jax.nn.sigmoid(jnp.einsum("nijd,dc->nijc", h, w2))
  return x * s


def cab_dsc_ref(x, p):
  r = _dsc_ref(x, p["b1_wd"], p["b1_bd"], p["b1_wp"], p["b1_bp"], apply_relu=True)
  r = _dsc_ref(r, p["b2_wd"], p["b2_bd"], p["b2_wp"], p["b2_bp"], apply_relu=False)
  r = _ca_ref(r, p["ca_w1"], p["ca_w2"])
  cat = jnp.concatenate([r, x], axis=-1)
  fea = _dsc_ref(cat, p["s_wd"], p["s_bd"], p["s_wp"], p["s_bp"], apply_relu=False)
  return _ca_ref(fea, p["s_ca_w1"], p["s_ca_w2"]) + r


# -----------------------------------------------------------------------------
# Deterministic parameter init (shapes follow the PyTorch module)
# -----------------------------------------------------------------------------
def init_params(n_feat, reduction, key):
  cr = n_feat // reduction
  ks = jax.random.split(key, 16)
  f32 = jnp.float32

  def w(k, shape, scale=0.1):
    return jax.random.normal(k, shape, dtype=f32) * scale

  return {
      # body[0]: DSC(n_feat -> n_feat)
      "b1_wd": w(ks[0], (9, n_feat)), "b1_bd": w(ks[1], (1, n_feat), 0.01),
      "b1_wp": w(ks[2], (n_feat, n_feat)), "b1_bp": w(ks[3], (1, n_feat), 0.01),
      # body[2]: DSC(n_feat -> n_feat)
      "b2_wd": w(ks[4], (9, n_feat)), "b2_bd": w(ks[5], (1, n_feat), 0.01),
      "b2_wp": w(ks[6], (n_feat, n_feat)), "b2_bp": w(ks[7], (1, n_feat), 0.01),
      # CA: 1x1 convs, no bias
      "ca_w1": w(ks[8], (n_feat, cr)), "ca_w2": w(ks[9], (cr, n_feat)),
      # S2FB2.DSC: DSC(2*n_feat -> n_feat)
      "s_wd": w(ks[10], (9, 2 * n_feat)), "s_bd": w(ks[11], (1, 2 * n_feat), 0.01),
      "s_wp": w(ks[12], (2 * n_feat, n_feat)), "s_bp": w(ks[13], (1, n_feat), 0.01),
      # S2FB2.CA_fea
      "s_ca_w1": w(ks[14], (n_feat, cr)), "s_ca_w2": w(ks[15], (cr, n_feat)),
  }


if __name__ == "__main__":
  # Small shapes: batch=2, 16x16 spatial, n_feat=16 channels, reduction=4.
  N, H, W, n_feat, reduction = 2, 16, 16, 16, 4

  key = jax.random.PRNGKey(0)
  kx_, kp_ = jax.random.split(key)
  x = jax.random.normal(kx_, (N, H, W, n_feat), dtype=jnp.float32)
  params = init_params(n_feat, reduction, kp_)

  # Weight rework is done ONCE, outside the jitted forward (hoisted).
  prepared = prepare_params(params, W)
  prepared = jax.tree_util.tree_map(jax.block_until_ready, prepared)

  fwd = jax.jit(cab_dsc_forward)
  out = jax.block_until_ready(fwd(x, prepared))

  ref = jax.block_until_ready(cab_dsc_ref(x, params))
  assert out.shape == (N, H, W, n_feat)
  max_err = float(jnp.max(jnp.abs(out - ref)))
  # bf16 pointwise weights on the MXU -> slightly relaxed tolerance vs the
  # all-f32 reference (CA pooling / sigmoid / residual stay in f32).
  assert jnp.allclose(out, ref, rtol=2e-2, atol=2e-2), f"max abs err {max_err}"

  print("KERNEL_OK")
</pallas_src>

<mosaic_0001>
module attributes {stable_mosaic.version = 11 : i64} {
  func.func @_cab_dsc_kernel(%arg0: i32, %arg1: memref<32x256xf32, #tpu.memory_space<vmem>>, %arg2: memref<32x1xf32, #tpu.memory_space<vmem>>, %arg3: memref<32x1xf32, #tpu.memory_space<vmem>>, %arg4: memref<2x32xf32, #tpu.memory_space<vmem>>, %arg5: memref<32x2xf32, #tpu.memory_space<vmem>>, %arg6: memref<9x256xf32, #tpu.memory_space<vmem>>, %arg7: memref<9x256xf32, #tpu.memory_space<vmem>>, %arg8: memref<9x256xf32, #tpu.memory_space<vmem>>, %arg9: memref<9x256xf32, #tpu.memory_space<vmem>>, %arg10: memref<256x256xbf16, #tpu.memory_space<vmem>>, %arg11: memref<256x256xbf16, #tpu.memory_space<vmem>>, %arg12: memref<256x256xbf16, #tpu.memory_space<vmem>>, %arg13: memref<256x256xbf16, #tpu.memory_space<vmem>>, %arg14: memref<8x256xf32, #tpu.memory_space<vmem>>, %arg15: memref<256x4xf32, #tpu.memory_space<vmem>>, %arg16: memref<4x256xf32, #tpu.memory_space<vmem>>, %arg17: memref<256x4xf32, #tpu.memory_space<vmem>>, %arg18: memref<4x256xf32, #tpu.memory_space<vmem>>, %arg19: memref<32x256xf32, #tpu.memory_space<vmem>>) attributes {dimension_semantics = [#tpu.dimension_semantics<parallel>], iteration_bounds = array<i64: 1>, scalar_prefetch = 0 : i64, scratch_operands = 0 : i64, tpu.core_type = #tpu.core_type<tc>, window_params = [{transform_indices = @transform_0, window_bounds = array<i64: 32, 256>}, {pipeline_mode = #tpu.pipeline_mode<synchronous>, transform_indices = @transform_1, window_bounds = array<i64: 32, 1>}, {pipeline_mode = #tpu.pipeline_mode<synchronous>, transform_indices = @transform_2, window_bounds = array<i64: 32, 1>}, {pipeline_mode = #tpu.pipeline_mode<synchronous>, transform_indices = @transform_3, window_bounds = array<i64: 2, 32>}, {pipeline_mode = #tpu.pipeline_mode<synchronous>, transform_indices = @transform_4, window_bounds = array<i64: 32, 2>}, {pipeline_mode = #tpu.pipeline_mode<synchronous>, transform_indices = @transform_5, window_bounds = array<i64: 9, 256>}, {pipeline_mode = #tpu.pipeline_mode<synchronous>, transform_indices = @transform_6, window_bounds = array<i64: 9, 256>}, {pipeline_mode = #tpu.pipeline_mode<synchronous>, transform_indices = @transform_7, window_bounds = array<i64: 9, 256>}, {pipeline_mode = #tpu.pipeline_mode<synchronous>, transform_indices = @transform_8, window_bounds = array<i64: 9, 256>}, {pipeline_mode = #tpu.pipeline_mode<synchronous>, transform_indices = @transform_9, window_bounds = array<i64: 256, 256>}, {pipeline_mode = #tpu.pipeline_mode<synchronous>, transform_indices = @transform_10, window_bounds = array<i64: 256, 256>}, {pipeline_mode = #tpu.pipeline_mode<synchronous>, transform_indices = @transform_11, window_bounds = array<i64: 256, 256>}, {pipeline_mode = #tpu.pipeline_mode<synchronous>, transform_indices = @transform_12, window_bounds = array<i64: 256, 256>}, {pipeline_mode = #tpu.pipeline_mode<synchronous>, transform_indices = @transform_13, window_bounds = array<i64: 8, 256>}, {pipeline_mode = #tpu.pipeline_mode<synchronous>, transform_indices = @transform_14, window_bounds = array<i64: 256, 4>}, {pipeline_mode = #tpu.pipeline_mode<synchronous>, transform_indices = @transform_15, window_bounds = array<i64: 4, 256>}, {pipeline_mode = #tpu.pipeline_mode<synchronous>, transform_indices = @transform_16, window_bounds = array<i64: 256, 4>}, {pipeline_mode = #tpu.pipeline_mode<synchronous>, transform_indices = @transform_17, window_bounds = array<i64: 4, 256>}, {transform_indices = @transform_18, window_bounds = array<i64: 32, 256>}]} {
    %c0 = arith.constant 0 : index
    %c0_0 = arith.constant 0 : index
    %0 = vector.load %arg1[%c0, %c0_0] : memref<32x256xf32, #tpu.memory_space<vmem>>, vector<32x256xf32>
    %c0_1 = arith.constant 0 : index
    %c0_2 = arith.constant 0 : index
    %1 = vector.load %arg2[%c0_1, %c0_2] : memref<32x1xf32, #tpu.memory_space<vmem>>, vector<32x1xf32>
    %c0_3 = arith.constant 0 : index
    %c0_4 = arith.constant 0 : index
    %2 = vector.load %arg3[%c0_3, %c0_4] : memref<32x1xf32, #tpu.memory_space<vmem>>, vector<32x1xf32>
    %cst = arith.constant 0.000000e+00 : f32
    %3 = vector.broadcast %cst : f32 to vector<1x256xf32>
    %cst_5 = arith.constant 0.000000e+00 : f32
    %4 = vector.broadcast %cst_5 : f32 to vector<32x16xf32>
    %5 = vector.extract_strided_slice %0 {offsets = [0, 0], sizes = [31, 256], strides = [1, 1]} : vector<32x256xf32> to vector<31x256xf32>
    %6 = tpu.concatenate %3, %5 in 0 : vector<1x256xf32>, vector<31x256xf32> -> vector<32x256xf32>
    %7 = vector.broadcast %1 : vector<32x1xf32> to vector<32x256xf32>
    %8 = arith.mulf %6, %7 : vector<32x256xf32>
    %9 = vector.extract_strided_slice %0 {offsets = [1, 0], sizes = [31, 256], strides = [1, 1]} : vector<32x256xf32> to vector<31x256xf32>
    %10 = tpu.concatenate %9, %3 in 0 : vector<31x256xf32>, vector<1x256xf32> -> vector<32x256xf32>
    %11 = vector.broadcast %2 : vector<32x1xf32> to vector<32x256xf32>
    %12 = arith.mulf %10, %11 : vector<32x256xf32>
    %13 = vector.extract_strided_slice %8 {offsets = [0, 0], sizes = [32, 240], strides = [1, 1]} : vector<32x256xf32> to vector<32x240xf32>
    %14 = tpu.concatenate %4, %13 in 1 : vector<32x16xf32>, vector<32x240xf32> -> vector<32x256xf32>
    %15 = vector.extract_strided_slice %8 {offsets = [0, 16], sizes = [32, 240], strides = [1, 1]} : vector<32x256xf32> to vector<32x240xf32>
    %16 = tpu.concatenate %15, %4 in 1 : vector<32x240xf32>, vector<32x16xf32> -> vector<32x256xf32>
    %c0_6 = arith.constant 0 : index
    %c0_7 = arith.constant 0 : index
    %17 = vector.load %arg6[%c0_6, %c0_7] : memref<9x256xf32, #tpu.memory_space<vmem>>, vector<1x256xf32>
    %18 = vector.broadcast %17 : vector<1x256xf32> to vector<32x256xf32>
    %19 = arith.mulf %14, %18 : vector<32x256xf32>
    %c1 = arith.constant 1 : index
    %c0_8 = arith.constant 0 : index
    %20 = vector.load %arg6[%c1, %c0_8] : memref<9x256xf32, #tpu.memory_space<vmem>>, vector<1x256xf32>
    %21 = vector.broadcast %20 : vector<1x256xf32> to vector<32x256xf32>
    %22 = arith.mulf %8, %21 : vector<32x256xf32>
    %23 = arith.addf %19, %22 : vector<32x256xf32>
    %c2 = arith.constant 2 : index
    %c0_9 = arith.constant 0 : index
    %24 = vector.load %arg6[%c2, %c0_9] : memref<9x256xf32, #tpu.memory_space<vmem>>, vector<1x256xf32>
    %25 = vector.broadcast %24 : vector<1x256xf32> to vector<32x256xf32>
    %26 = arith.mulf %16, %25 : vector<32x256xf32>
    %27 = arith.addf %23, %26 : vector<32x256xf32>
    %28 = vector.extract_strided_slice %0 {offsets = [0, 0], sizes = [32, 240], strides = [1, 1]} : vector<32x256xf32> to vector<32x240xf32>
    %29 = tpu.concatenate %4, %28 in 1 : vector<32x16xf32>, vector<32x240xf32> -> vector<32x256xf32>
    %30 = vector.extract_strided_slice %0 {offsets = [0, 16], sizes = [32, 240], strides = [1, 1]} : vector<32x256xf32> to vector<32x240xf32>
    %31 = tpu.concatenate %30, %4 in 1 : vector<32x240xf32>, vector<32x16xf32> -> vector<32x256xf32>
    %c3 = arith.constant 3 : index
    %c0_10 = arith.constant 0 : index
    %32 = vector.load %arg6[%c3, %c0_10] : memref<9x256xf32, #tpu.memory_space<vmem>>, vector<1x256xf32>
    %33 = vector.broadcast %32 : vector<1x256xf32> to vector<32x256xf32>
    %34 = arith.mulf %29, %33 : vector<32x256xf32>
    %35 = arith.addf %27, %34 : vector<32x256xf32>
    %c4 = arith.constant 4 : index
    %c0_11 = arith.constant 0 : index
    %36 = vector.load %arg6[%c4, %c0_11] : memref<9x256xf32, #tpu.memory_space<vmem>>, vector<1x256xf32>
    %37 = vector.broadcast %36 : vector<1x256xf32> to vector<32x256xf32>
    %38 = arith.mulf %0, %37 : vector<32x256xf32>
    %39 = arith.addf %35, %38 : vector<32x256xf32>
    %c5 = arith.constant 5 : index
    %c0_12 = arith.constant 0 : index
    %40 = vector.load %arg6[%c5, %c0_12] : memref<9x256xf32, #tpu.memory_space<vmem>>, vector<1x256xf32>
    %41 = vector.broadcast %40 : vector<1x256xf32> to vector<32x256xf32>
    %42 = arith.mulf %31, %41 : vector<32x256xf32>
    %43 = arith.addf %39, %42 : vector<32x256xf32>
    %44 = vector.extract_strided_slice %12 {offsets = [0, 0], sizes = [32, 240], strides = [1, 1]} : vector<32x256xf32> to vector<32x240xf32>
    %45 = tpu.concatenate %4, %44 in 1 : vector<32x16xf32>, vector<32x240xf32> -> vector<32x256xf32>
    %46 = vector.extract_strided_slice %12 {offsets = [0, 16], sizes = [32, 240], strides = [1, 1]} : vector<32x256xf32> to vector<32x240xf32>
    %47 = tpu.concatenate %46, %4 in 1 : vector<32x240xf32>, vector<32x16xf32> -> vector<32x256xf32>
    %c6 = arith.constant 6 : index
    %c0_13 = arith.constant 0 : index
    %48 = vector.load %arg6[%c6, %c0_13] : memref<9x256xf32, #tpu.memory_space<vmem>>, vector<1x256xf32>
    %49 = vector.broadcast %48 : vector<1x256xf32> to vector<32x256xf32>
    %50 = arith.mulf %45, %49 : vector<32x256xf32>
    %51 = arith.addf %43, %50 : vector<32x256xf32>
    %c7 = arith.constant 7 : index
    %c0_14 = arith.constant 0 : index
    %52 = vector.load %arg6[%c7, %c0_14] : memref<9x256xf32, #tpu.memory_space<vmem>>, vector<1x256xf32>
    %53 = vector.broadcast %52 : vector<1x256xf32> to vector<32x256xf32>
    %54 = arith.mulf %12, %53 : vector<32x256xf32>
    %55 = arith.addf %51, %54 : vector<32x256xf32>
    %c8 = arith.constant 8 : index
    %c0_15 = arith.constant 0 : index
    %56 = vector.load %arg6[%c8, %c0_15] : memref<9x256xf32, #tpu.memory_space<vmem>>, vector<1x256xf32>
    %57 = vector.broadcast %56 : vector<1x256xf32> to vector<32x256xf32>
    %58 = arith.mulf %47, %57 : vector<32x256xf32>
    %59 = arith.addf %55, %58 : vector<32x256xf32>
    %c0_16 = arith.constant 0 : index
    %c0_17 = arith.constant 0 : index
    %60 = vector.load %arg14[%c0_16, %c0_17] : memref<8x256xf32, #tpu.memory_space<vmem>>, vector<1x256xf32>
    %61 = vector.broadcast %60 : vector<1x256xf32> to vector<32x256xf32>
    %62 = arith.addf %59, %61 : vector<32x256xf32>
    %63 = arith.truncf %62 : vector<32x256xf32> to vector<32x256xbf16>
    %c0_18 = arith.constant 0 : index
    %c0_19 = arith.constant 0 : index
    %64 = vector.load %arg10[%c0_18, %c0_19] : memref<256x256xbf16, #tpu.memory_space<vmem>>, vector<256x256xbf16>
    %cst_20 = arith.constant dense<0.000000e+00> : vector<32x256xf32>
    %65 = tpu.matmul %63, %64, %cst_20 {dimension_numbers = #tpu.dot_dimension_numbers<[1], [0], [0], [1], [0, 0, 1, 1], [], []>} : vector<32x256xbf16>, vector<256x256xbf16>, vector<32x256xf32> -> vector<32x256xf32>
    %c1_21 = arith.constant 1 : index
    %c0_22 = arith.constant 0 : index
    %66 = vector.load %arg14[%c1_21, %c0_22] : memref<8x256xf32, #tpu.memory_space<vmem>>, vector<1x256xf32>
    %67 = vector.broadcast %66 : vector<1x256xf32> to vector<32x256xf32>
    %68 = arith.addf %65, %67 : vector<32x256xf32>
    %cst_23 = arith.constant 0.000000e+00 : f32
    %69 = vector.broadcast %cst_23 : f32 to vector<32x256xf32>
    %70 = arith.maximumf %68, %69 : vector<32x256xf32>
    %71 = vector.extract_strided_slice %70 {offsets = [0, 0], sizes = [31, 256], strides = [1, 1]} : vector<32x256xf32> to vector<31x256xf32>
    %72 = tpu.concatenate %3, %71 in 0 : vector<1x256xf32>, vector<31x256xf32> -> vector<32x256xf32>
    %73 = vector.broadcast %1 : vector<32x1xf32> to vector<32x256xf32>
    %74 = arith.mulf %72, %73 : vector<32x256xf32>
    %75 = vector.extract_strided_slice %70 {offsets = [1, 0], sizes = [31, 256], strides = [1, 1]} : vector<32x256xf32> to vector<31x256xf32>
    %76 = tpu.concatenate %75, %3 in 0 : vector<31x256xf32>, vector<1x256xf32> -> vector<32x256xf32>
    %77 = vector.broadcast %2 : vector<32x1xf32> to vector<32x256xf32>
    %78 = arith.mulf %76, %77 : vector<32x256xf32>
    %79 = vector.extract_strided_slice %74 {offsets = [0, 0], sizes = [32, 240], strides = [1, 1]} : vector<32x256xf32> to vector<32x240xf32>
    %80 = tpu.concatenate %4, %79 in 1 : vector<32x16xf32>, vector<32x240xf32> -> vector<32x256xf32>
    %81 = vector.extract_strided_slice %74 {offsets = [0, 16], sizes = [32, 240], strides = [1, 1]} : vector<32x256xf32> to vector<32x240xf32>
    %82 = tpu.concatenate %81, %4 in 1 : vector<32x240xf32>, vector<32x16xf32> -> vector<32x256xf32>
    %c0_24 = arith.constant 0 : index
    %c0_25 = arith.constant 0 : index
    %83 = vector.load %arg7[%c0_24, %c0_25] : memref<9x256xf32, #tpu.memory_space<vmem>>, vector<1x256xf32>
    %84 = vector.broadcast %83 : vector<1x256xf32> to vector<32x256xf32>
    %85 = arith.mulf %80, %84 : vector<32x256xf32>
    %c1_26 = arith.constant 1 : index
    %c0_27 = arith.constant 0 : index
    %86 = vector.load %arg7[%c1_26, %c0_27] : memref<9x256xf32, #tpu.memory_space<vmem>>, vector<1x256xf32>
    %87 = vector.broadcast %86 : vector<1x256xf32> to vector<32x256xf32>
    %88 = arith.mulf %74, %87 : vector<32x256xf32>
    %89 = arith.addf %85, %88 : vector<32x256xf32>
    %c2_28 = arith.constant 2 : index
    %c0_29 = arith.constant 0 : index
    %90 = vector.load %arg7[%c2_28, %c0_29] : memref<9x256xf32, #tpu.memory_space<vmem>>, vector<1x256xf32>
    %91 = vector.broadcast %90 : vector<1x256xf32> to vector<32x256xf32>
    %92 = arith.mulf %82, %91 : vector<32x256xf32>
    %93 = arith.addf %89, %92 : vector<32x256xf32>
    %94 = vector.extract_strided_slice %70 {offsets = [0, 0], sizes = [32, 240], strides = [1, 1]} : vector<32x256xf32> to vector<32x240xf32>
    %95 = tpu.concatenate %4, %94 in 1 : vector<32x16xf32>, vector<32x240xf32> -> vector<32x256xf32>
    %96 = vector.extract_strided_slice %70 {offsets = [0, 16], sizes = [32, 240], strides = [1, 1]} : vector<32x256xf32> to vector<32x240xf32>
    %97 = tpu.concatenate %96, %4 in 1 : vector<32x240xf32>, vector<32x16xf32> -> vector<32x256xf32>
    %c3_30 = arith.constant 3 : index
    %c0_31 = arith.constant 0 : index
    %98 = vector.load %arg7[%c3_30, %c0_31] : memref<9x256xf32, #tpu.memory_space<vmem>>, vector<1x256xf32>
    %99 = vector.broadcast %98 : vector<1x256xf32> to vector<32x256xf32>
    %100 = arith.mulf %95, %99 : vector<32x256xf32>
    %101 = arith.addf %93, %100 : vector<32x256xf32>
    %c4_32 = arith.constant 4 : index
    %c0_33 = arith.constant 0 : index
    %102 = vector.load %arg7[%c4_32, %c0_33] : memref<9x256xf32, #tpu.memory_space<vmem>>, vector<1x256xf32>
    %103 = vector.broadcast %102 : vector<1x256xf32> to vector<32x256xf32>
    %104 = arith.mulf %70, %103 : vector<32x256xf32>
    %105 = arith.addf %101, %104 : vector<32x256xf32>
    %c5_34 = arith.constant 5 : index
    %c0_35 = arith.constant 0 : index
    %106 = vector.load %arg7[%c5_34, %c0_35] : memref<9x256xf32, #tpu.memory_space<vmem>>, vector<1x256xf32>
    %107 = vector.broadcast %106 : vector<1x256xf32> to vector<32x256xf32>
    %108 = arith.mulf %97, %107 : vector<32x256xf32>
    %109 = arith.addf %105, %108 : vector<32x256xf32>
    %110 = vector.extract_strided_slice %78 {offsets = [0, 0], sizes = [32, 240], strides = [1, 1]} : vector<32x256xf32> to vector<32x240xf32>
    %111 = tpu.concatenate %4, %110 in 1 : vector<32x16xf32>, vector<32x240xf32> -> vector<32x256xf32>
    %112 = vector.extract_strided_slice %78 {offsets = [0, 16], sizes = [32, 240], strides = [1, 1]} : vector<32x256xf32> to vector<32x240xf32>
    %113 = tpu.concatenate %112, %4 in 1 : vector<32x240xf32>, vector<32x16xf32> -> vector<32x256xf32>
    %c6_36 = arith.constant 6 : index
    %c0_37 = arith.constant 0 : index
    %114 = vector.load %arg7[%c6_36, %c0_37] : memref<9x256xf32, #tpu.memory_space<vmem>>, vector<1x256xf32>
    %115 = vector.broadcast %114 : vector<1x256xf32> to vector<32x256xf32>
    %116 = arith.mulf %111, %115 : vector<32x256xf32>
    %117 = arith.addf %109, %116 : vector<32x256xf32>
    %c7_38 = arith.constant 7 : index
    %c0_39 = arith.constant 0 : index
    %118 = vector.load %arg7[%c7_38, %c0_39] : memref<9x256xf32, #tpu.memory_space<vmem>>, vector<1x256xf32>
    %119 = vector.broadcast %118 : vector<1x256xf32> to vector<32x256xf32>
    %120 = arith.mulf %78, %119 : vector<32x256xf32>
    %121 = arith.addf %117, %120 : vector<32x256xf32>
    %c8_40 = arith.constant 8 : index
    %c0_41 = arith.constant 0 : index
    %122 = vector.load %arg7[%c8_40, %c0_41] : memref<9x256xf32, #tpu.memory_space<vmem>>, vector<1x256xf32>
    %123 = vector.broadcast %122 : vector<1x256xf32> to vector<32x256xf32>
    %124 = arith.mulf %113, %123 : vector<32x256xf32>
    %125 = arith.addf %121, %124 : vector<32x256xf32>
    %c2_42 = arith.constant 2 : index
    %c0_43 = arith.constant 0 : index
    %126 = vector.load %arg14[%c2_42, %c0_43] : memref<8x256xf32, #tpu.memory_space<vmem>>, vector<1x256xf32>
    %127 = vector.broadcast %126 : vector<1x256xf32> to vector<32x256xf32>
    %128 = arith.addf %125, %127 : vector<32x256xf32>
    %129 = arith.truncf %128 : vector<32x256xf32> to vector<32x256xbf16>
    %c0_44 = arith.constant 0 : index
    %c0_45 = arith.constant 0 : index
    %130 = vector.load %arg11[%c0_44, %c0_45] : memref<256x256xbf16, #tpu.memory_space<vmem>>, vector<256x256xbf16>
    %cst_46 = arith.constant dense<0.000000e+00> : vector<32x256xf32>
    %131 = tpu.matmul %129, %130, %cst_46 {dimension_numbers = #tpu.dot_dimension_numbers<[1], [0], [0], [1], [0, 0, 1, 1], [], []>} : vector<32x256xbf16>, vector<256x256xbf16>, vector<32x256xf32> -> vector<32x256xf32>
    %c3_47 = arith.constant 3 : index
    %c0_48 = arith.constant 0 : index
    %132 = vector.load %arg14[%c3_47, %c0_48] : memref<8x256xf32, #tpu.memory_space<vmem>>, vector<1x256xf32>
    %133 = vector.broadcast %132 : vector<1x256xf32> to vector<32x256xf32>
    %134 = arith.addf %131, %133 : vector<32x256xf32>
    %c0_49 = arith.constant 0 : index
    %c0_50 = arith.constant 0 : index
    %135 = vector.load %arg4[%c0_49, %c0_50] : memref<2x32xf32, #tpu.memory_space<vmem>>, vector<2x32xf32>
    %cst_51 = arith.constant dense<0.000000e+00> : vector<2x256xf32>
    %136 = tpu.matmul %135, %134, %cst_51 {dimension_numbers = #tpu.dot_dimension_numbers<[1], [0], [0], [1], [0, 0, 1, 1], [], []>} : vector<2x32xf32>, vector<32x256xf32>, vector<2x256xf32> -> vector<2x256xf32>
    %c0_52 = arith.constant 0 : index
    %c0_53 = arith.constant 0 : index
    %137 = vector.load %arg15[%c0_52, %c0_53] : memref<256x4xf32, #tpu.memory_space<vmem>>, vector<256x4xf32>
    %cst_54 = arith.constant dense<0.000000e+00> : vector<2x4xf32>
    %138 = tpu.matmul %136, %137, %cst_54 {dimension_numbers = #tpu.dot_dimension_numbers<[1], [0], [0], [1], [0, 0, 1, 1], [], []>} : vector<2x256xf32>, vector<256x4xf32>, vector<2x4xf32> -> vector<2x4xf32>
    %cst_55 = arith.constant 0.000000e+00 : f32
    %139 = vector.broadcast %cst_55 : f32 to vector<2x4xf32>
    %140 = arith.maximumf %138, %139 : vector<2x4xf32>
    %c0_56 = arith.constant 0 : index
    %c0_57 = arith.constant 0 : index
    %141 = vector.load %arg16[%c0_56, %c0_57] : memref<4x256xf32, #tpu.memory_space<vmem>>, vector<4x256xf32>
    %cst_58 = arith.constant dense<0.000000e+00> : vector<2x256xf32>
    %142 = tpu.matmul %140, %141, %cst_58 {dimension_numbers = #tpu.dot_dimension_numbers<[1], [0], [0], [1], [0, 0, 1, 1], [], []>} : vector<2x4xf32>, vector<4x256xf32>, vector<2x256xf32> -> vector<2x256xf32>
    %cst_59 = arith.constant 0.000000e+00 : f32
    %143 = vector.broadcast %cst_59 : f32 to vector<2x256xf32>
    %144 = arith.subf %143, %142 : vector<2x256xf32>
    %145 = math.exp %144 : vector<2x256xf32>
    %cst_60 = arith.constant 1.000000e+00 : f32
    %146 = vector.broadcast %cst_60 : f32 to vector<2x256xf32>
    %147 = arith.addf %146, %145 : vector<2x256xf32>
    %cst_61 = arith.constant 1.000000e+00 : f32
    %148 = vector.broadcast %cst_61 : f32 to vector<2x256xf32>
    %149 = arith.divf %148, %147 : vector<2x256xf32>
    %c0_62 = arith.constant 0 : index
    %c0_63 = arith.constant 0 : index
    %150 = vector.load %arg5[%c0_62, %c0_63] : memref<32x2xf32, #tpu.memory_space<vmem>>, vector<32x2xf32>
    %cst_64 = arith.constant dense<0.000000e+00> : vector<32x256xf32>
    %151 = tpu.matmul %150, %149, %cst_64 {dimension_numbers = #tpu.dot_dimension_numbers<[1], [0], [0], [1], [0, 0, 1, 1], [], []>} : vector<32x2xf32>, vector<2x256xf32>, vector<32x256xf32> -> vector<32x256xf32>
    %152 = arith.mulf %134, %151 : vector<32x256xf32>
    %153 = vector.extract_strided_slice %152 {offsets = [0, 0], sizes = [31, 256], strides = [1, 1]} : vector<32x256xf32> to vector<31x256xf32>
    %154 = tpu.concatenate %3, %153 in 0 : vector<1x256xf32>, vector<31x256xf32> -> vector<32x256xf32>
    %155 = vector.broadcast %1 : vector<32x1xf32> to vector<32x256xf32>
    %156 = arith.mulf %154, %155 : vector<32x256xf32>
    %157 = vector.extract_strided_slice %152 {offsets = [1, 0], sizes = [31, 256], strides = [1, 1]} : vector<32x256xf32> to vector<31x256xf32>
    %158 = tpu.concatenate %157, %3 in 0 : vector<31x256xf32>, vector<1x256xf32> -> vector<32x256xf32>
    %159 = vector.broadcast %2 : vector<32x1xf32> to vector<32x256xf32>
    %160 = arith.mulf %158, %159 : vector<32x256xf32>
    %161 = vector.extract_strided_slice %156 {offsets = [0, 0], sizes = [32, 240], strides = [1, 1]} : vector<32x256xf32> to vector<32x240xf32>
    %162 = tpu.concatenate %4, %161 in 1 : vector<32x16xf32>, vector<32x240xf32> -> vector<32x256xf32>
    %163 = vector.extract_strided_slice %156 {offsets = [0, 16], sizes = [32, 240], strides = [1, 1]} : vector<32x256xf32> to vector<32x240xf32>
    %164 = tpu.concatenate %163, %4 in 1 : vector<32x240xf32>, vector<32x16xf32> -> vector<32x256xf32>
    %c0_65 = arith.constant 0 : index
    %c0_66 = arith.constant 0 : index
    %165 = vector.load %arg8[%c0_65, %c0_66] : memref<9x256xf32, #tpu.memory_space<vmem>>, vector<1x256xf32>
    %166 = vector.broadcast %165 : vector<1x256xf32> to vector<32x256xf32>
    %167 = arith.mulf %162, %166 : vector<32x256xf32>
    %c1_67 = arith.constant 1 : index
    %c0_68 = arith.constant 0 : index
    %168 = vector.load %arg8[%c1_67, %c0_68] : memref<9x256xf32, #tpu.memory_space<vmem>>, vector<1x256xf32>
    %169 = vector.broadcast %168 : vector<1x256xf32> to vector<32x256xf32>
    %170 = arith.mulf %156, %169 : vector<32x256xf32>
    %171 = arith.addf %167, %170 : vector<32x256xf32>
    %c2_69 = arith.constant 2 : index
    %c0_70 = arith.constant 0 : index
    %172 = vector.load %arg8[%c2_69, %c0_70] : memref<9x256xf32, #tpu.memory_space<vmem>>, vector<1x256xf32>
    %173 = vector.broadcast %172 : vector<1x256xf32> to vector<32x256xf32>
    %174 = arith.mulf %164, %173 : vector<32x256xf32>
    %175 = arith.addf %171, %174 : vector<32x256xf32>
    %176 = vector.extract_strided_slice %152 {offsets = [0, 0], sizes = [32, 240], strides = [1, 1]} : vector<32x256xf32> to vector<32x240xf32>
    %177 = tpu.concatenate %4, %176 in 1 : vector<32x16xf32>, vector<32x240xf32> -> vector<32x256xf32>
    %178 = vector.extract_strided_slice %152 {offsets = [0, 16], sizes = [32, 240], strides = [1, 1]} : vector<32x256xf32> to vector<32x240xf32>
    %179 = tpu.concatenate %178, %4 in 1 : vector<32x240xf32>, vector<32x16xf32> -> vector<32x256xf32>
    %c3_71 = arith.constant 3 : index
    %c0_72 = arith.constant 0 : index
    %180 = vector.load %arg8[%c3_71, %c0_72] : memref<9x256xf32, #tpu.memory_space<vmem>>, vector<1x256xf32>
    %181 = vector.broadcast %180 : vector<1x256xf32> to vector<32x256xf32>
    %182 = arith.mulf %177, %181 : vector<32x256xf32>
    %183 = arith.addf %175, %182 : vector<32x256xf32>
    %c4_73 = arith.constant 4 : index
    %c0_74 = arith.constant 0 : index
    %184 = vector.load %arg8[%c4_73, %c0_74] : memref<9x256xf32, #tpu.memory_space<vmem>>, vector<1x256xf32>
    %185 = vector.broadcast %184 : vector<1x256xf32> to vector<32x256xf32>
    %186 = arith.mulf %152, %185 : vector<32x256xf32>
    %187 = arith.addf %183, %186 : vector<32x256xf32>
    %c5_75 = arith.constant 5 : index
    %c0_76 = arith.constant 0 : index
    %188 = vector.load %arg8[%c5_75, %c0_76] : memref<9x256xf32, #tpu.memory_space<vmem>>, vector<1x256xf32>
    %189 = vector.broadcast %188 : vector<1x256xf32> to vector<32x256xf32>
    %190 = arith.mulf %179, %189 : vector<32x256xf32>
    %191 = arith.addf %187, %190 : vector<32x256xf32>
    %192 = vector.extract_strided_slice %160 {offsets = [0, 0], sizes = [32, 240], strides = [1, 1]} : vector<32x256xf32> to vector<32x240xf32>
    %193 = tpu.concatenate %4, %192 in 1 : vector<32x16xf32>, vector<32x240xf32> -> vector<32x256xf32>
    %194 = vector.extract_strided_slice %160 {offsets = [0, 16], sizes = [32, 240], strides = [1, 1]} : vector<32x256xf32> to vector<32x240xf32>
    %195 = tpu.concatenate %194, %4 in 1 : vector<32x240xf32>, vector<32x16xf32> -> vector<32x256xf32>
    %c6_77 = arith.constant 6 : index
    %c0_78 = arith.constant 0 : index
    %196 = vector.load %arg8[%c6_77, %c0_78] : memref<9x256xf32, #tpu.memory_space<vmem>>, vector<1x256xf32>
    %197 = vector.broadcast %196 : vector<1x256xf32> to vector<32x256xf32>
    %198 = arith.mulf %193, %197 : vector<32x256xf32>
    %199 = arith.addf %191, %198 : vector<32x256xf32>
    %c7_79 = arith.constant 7 : index
    %c0_80 = arith.constant 0 : index
    %200 = vector.load %arg8[%c7_79, %c0_80] : memref<9x256xf32, #tpu.memory_space<vmem>>, vector<1x256xf32>
    %201 = vector.broadcast %200 : vector<1x256xf32> to vector<32x256xf32>
    %202 = arith.mulf %160, %201 : vector<32x256xf32>
    %203 = arith.addf %199, %202 : vector<32x256xf32>
    %c8_81 = arith.constant 8 : index
    %c0_82 = arith.constant 0 : index
    %204 = vector.load %arg8[%c8_81, %c0_82] : memref<9x256xf32, #tpu.memory_space<vmem>>, vector<1x256xf32>
    %205 = vector.broadcast %204 : vector<1x256xf32> to vector<32x256xf32>
    %206 = arith.mulf %195, %205 : vector<32x256xf32>
    %207 = arith.addf %203, %206 : vector<32x256xf32>
    %c4_83 = arith.constant 4 : index
    %c0_84 = arith.constant 0 : index
    %208 = vector.load %arg14[%c4_83, %c0_84] : memref<8x256xf32, #tpu.memory_space<vmem>>, vector<1x256xf32>
    %209 = vector.broadcast %208 : vector<1x256xf32> to vector<32x256xf32>
    %210 = arith.addf %207, %209 : vector<32x256xf32>
    %211 = arith.truncf %210 : vector<32x256xf32> to vector<32x256xbf16>
    %c0_85 = arith.constant 0 : index
    %c0_86 = arith.constant 0 : index
    %212 = vector.load %arg12[%c0_85, %c0_86] : memref<256x256xbf16, #tpu.memory_space<vmem>>, vector<256x256xbf16>
    %cst_87 = arith.constant dense<0.000000e+00> : vector<32x256xf32>
    %213 = tpu.matmul %211, %212, %cst_87 {dimension_numbers = #tpu.dot_dimension_numbers<[1], [0], [0], [1], [0, 0, 1, 1], [], []>} : vector<32x256xbf16>, vector<256x256xbf16>, vector<32x256xf32> -> vector<32x256xf32>
    %214 = vector.extract_strided_slice %0 {offsets = [0, 0], sizes = [31, 256], strides = [1, 1]} : vector<32x256xf32> to vector<31x256xf32>
    %215 = tpu.concatenate %3, %214 in 0 : vector<1x256xf32>, vector<31x256xf32> -> vector<32x256xf32>
    %216 = vector.broadcast %1 : vector<32x1xf32> to vector<32x256xf32>
    %217 = arith.mulf %215, %216 : vector<32x256xf32>
    %218 = vector.extract_strided_slice %0 {offsets = [1, 0], sizes = [31, 256], strides = [1, 1]} : vector<32x256xf32> to vector<31x256xf32>
    %219 = tpu.concatenate %218, %3 in 0 : vector<31x256xf32>, vector<1x256xf32> -> vector<32x256xf32>
    %220 = vector.broadcast %2 : vector<32x1xf32> to vector<32x256xf32>
    %221 = arith.mulf %219, %220 : vector<32x256xf32>
    %222 = vector.extract_strided_slice %217 {offsets = [0, 0], sizes = [32, 240], strides = [1, 1]} : vector<32x256xf32> to vector<32x240xf32>
    %223 = tpu.concatenate %4, %222 in 1 : vector<32x16xf32>, vector<32x240xf32> -> vector<32x256xf32>
    %224 = vector.extract_strided_slice %217 {offsets = [0, 16], sizes = [32, 240], strides = [1, 1]} : vector<32x256xf32> to vector<32x240xf32>
    %225 = tpu.concatenate %224, %4 in 1 : vector<32x240xf32>, vector<32x16xf32> -> vector<32x256xf32>
    %c0_88 = arith.constant 0 : index
    %c0_89 = arith.constant 0 : index
    %226 = vector.load %arg9[%c0_88, %c0_89] : memref<9x256xf32, #tpu.memory_space<vmem>>, vector<1x256xf32>
    %227 = vector.broadcast %226 : vector<1x256xf32> to vector<32x256xf32>
    %228 = arith.mulf %223, %227 : vector<32x256xf32>
    %c1_90 = arith.constant 1 : index
    %c0_91 = arith.constant 0 : index
    %229 = vector.load %arg9[%c1_90, %c0_91] : memref<9x256xf32, #tpu.memory_space<vmem>>, vector<1x256xf32>
    %230 = vector.broadcast %229 : vector<1x256xf32> to vector<32x256xf32>
    %231 = arith.mulf %217, %230 : vector<32x256xf32>
    %232 = arith.addf %228, %231 : vector<32x256xf32>
    %c2_92 = arith.constant 2 : index
    %c0_93 = arith.constant 0 : index
    %233 = vector.load %arg9[%c2_92, %c0_93] : memref<9x256xf32, #tpu.memory_space<vmem>>, vector<1x256xf32>
    %234 = vector.broadcast %233 : vector<1x256xf32> to vector<32x256xf32>
    %235 = arith.mulf %225, %234 : vector<32x256xf32>
    %236 = arith.addf %232, %235 : vector<32x256xf32>
    %237 = vector.extract_strided_slice %0 {offsets = [0, 0], sizes = [32, 240], strides = [1, 1]} : vector<32x256xf32> to vector<32x240xf32>
    %238 = tpu.concatenate %4, %237 in 1 : vector<32x16xf32>, vector<32x240xf32> -> vector<32x256xf32>
    %239 = vector.extract_strided_slice %0 {offsets = [0, 16], sizes = [32, 240], strides = [1, 1]} : vector<32x256xf32> to vector<32x240xf32>
    %240 = tpu.concatenate %239, %4 in 1 : vector<32x240xf32>, vector<32x16xf32> -> vector<32x256xf32>
    %c3_94 = arith.constant 3 : index
    %c0_95 = arith.constant 0 : index
    %241 = vector.load %arg9[%c3_94, %c0_95] : memref<9x256xf32, #tpu.memory_space<vmem>>, vector<1x256xf32>
    %242 = vector.broadcast %241 : vector<1x256xf32> to vector<32x256xf32>
    %243 = arith.mulf %238, %242 : vector<32x256xf32>
    %244 = arith.addf %236, %243 : vector<32x256xf32>
    %c4_96 = arith.constant 4 : index
    %c0_97 = arith.constant 0 : index
    %245 = vector.load %arg9[%c4_96, %c0_97] : memref<9x256xf32, #tpu.memory_space<vmem>>, vector<1x256xf32>
    %246 = vector.broadcast %245 : vector<1x256xf32> to vector<32x256xf32>
    %247 = arith.mulf %0, %246 : vector<32x256xf32>
    %248 = arith.addf %244, %247 : vector<32x256xf32>
    %c5_98 = arith.constant 5 : index
    %c0_99 = arith.constant 0 : index
    %249 = vector.load %arg9[%c5_98, %c0_99] : memref<9x256xf32, #tpu.memory_space<vmem>>, vector<1x256xf32>
    %250 = vector.broadcast %249 : vector<1x256xf32> to vector<32x256xf32>
    %251 = arith.mulf %240, %250 : vector<32x256xf32>
    %252 = arith.addf %248, %251 : vector<32x256xf32>
    %253 = vector.extract_strided_slice %221 {offsets = [0, 0], sizes = [32, 240], strides = [1, 1]} : vector<32x256xf32> to vector<32x240xf32>
    %254 = tpu.concatenate %4, %253 in 1 : vector<32x16xf32>, vector<32x240xf32> -> vector<32x256xf32>
    %255 = vector.extract_strided_slice %221 {offsets = [0, 16], sizes = [32, 240], strides = [1, 1]} : vector<32x256xf32> to vector<32x240xf32>
    %256 = tpu.concatenate %255, %4 in 1 : vector<32x240xf32>, vector<32x16xf32> -> vector<32x256xf32>
    %c6_100 = arith.constant 6 : index
    %c0_101 = arith.constant 0 : index
    %257 = vector.load %arg9[%c6_100, %c0_101] : memref<9x256xf32, #tpu.memory_space<vmem>>, vector<1x256xf32>
    %258 = vector.broadcast %257 : vector<1x256xf32> to vector<32x256xf32>
    %259 = arith.mulf %254, %258 : vector<32x256xf32>
    %260 = arith.addf %252, %259 : vector<32x256xf32>
    %c7_102 = arith.constant 7 : index
    %c0_103 = arith.constant 0 : index
    %261 = vector.load %arg9[%c7_102, %c0_103] : memref<9x256xf32, #tpu.memory_space<vmem>>, vector<1x256xf32>
    %262 = vector.broadcast %261 : vector<1x256xf32> to vector<32x256xf32>
    %263 = arith.mulf %221, %262 : vector<32x256xf32>
    %264 = arith.addf %260, %263 : vector<32x256xf32>
    %c8_104 = arith.constant 8 : index
    %c0_105 = arith.constant 0 : index
    %265 = vector.load %arg9[%c8_104, %c0_105] : memref<9x256xf32, #tpu.memory_space<vmem>>, vector<1x256xf32>
    %266 = vector.broadcast %265 : vector<1x256xf32> to vector<32x256xf32>
    %267 = arith.mulf %256, %266 : vector<32x256xf32>
    %268 = arith.addf %264, %267 : vector<32x256xf32>
    %c5_106 = arith.constant 5 : index
    %c0_107 = arith.constant 0 : index
    %269 = vector.load %arg14[%c5_106, %c0_107] : memref<8x256xf32, #tpu.memory_space<vmem>>, vector<1x256xf32>
    %270 = vector.broadcast %269 : vector<1x256xf32> to vector<32x256xf32>
    %271 = arith.addf %268, %270 : vector<32x256xf32>
    %272 = arith.truncf %271 : vector<32x256xf32> to vector<32x256xbf16>
    %c0_108 = arith.constant 0 : index
    %c0_109 = arith.constant 0 : index
    %273 = vector.load %arg13[%c0_108, %c0_109] : memref<256x256xbf16, #tpu.memory_space<vmem>>, vector<256x256xbf16>
    %cst_110 = arith.constant dense<0.000000e+00> : vector<32x256xf32>
    %274 = tpu.matmul %272, %273, %cst_110 {dimension_numbers = #tpu.dot_dimension_numbers<[1], [0], [0], [1], [0, 0, 1, 1], [], []>} : vector<32x256xbf16>, vector<256x256xbf16>, vector<32x256xf32> -> vector<32x256xf32>
    %275 = arith.addf %213, %274 : vector<32x256xf32>
    %c6_111 = arith.constant 6 : index
    %c0_112 = arith.constant 0 : index
    %276 = vector.load %arg14[%c6_111, %c0_112] : memref<8x256xf32, #tpu.memory_space<vmem>>, vector<1x256xf32>
    %277 = vector.broadcast %276 : vector<1x256xf32> to vector<32x256xf32>
    %278 = arith.addf %275, %277 : vector<32x256xf32>
    %c0_113 = arith.constant 0 : index
    %c0_114 = arith.constant 0 : index
    %279 = vector.load %arg4[%c0_113, %c0_114] : memref<2x32xf32, #tpu.memory_space<vmem>>, vector<2x32xf32>
    %cst_115 = arith.constant dense<0.000000e+00> : vector<2x256xf32>
    %280 = tpu.matmul %279, %278, %cst_115 {dimension_numbers = #tpu.dot_dimension_numbers<[1], [0], [0], [1], [0, 0, 1, 1], [], []>} : vector<2x32xf32>, vector<32x256xf32>, vector<2x256xf32> -> vector<2x256xf32>
    %c0_116 = arith.constant 0 : index
    %c0_117 = arith.constant 0 : index
    %281 = vector.load %arg17[%c0_116, %c0_117] : memref<256x4xf32, #tpu.memory_space<vmem>>, vector<256x4xf32>
    %cst_118 = arith.constant dense<0.000000e+00> : vector<2x4xf32>
    %282 = tpu.matmul %280, %281, %cst_118 {dimension_numbers = #tpu.dot_dimension_numbers<[1], [0], [0], [1], [0, 0, 1, 1], [], []>} : vector<2x256xf32>, vector<256x4xf32>, vector<2x4xf32> -> vector<2x4xf32>
    %cst_119 = arith.constant 0.000000e+00 : f32
    %283 = vector.broadcast %cst_119 : f32 to vector<2x4xf32>
    %284 = arith.maximumf %282, %283 : vector<2x4xf32>
    %c0_120 = arith.constant 0 : index
    %c0_121 = arith.constant 0 : index
    %285 = vector.load %arg18[%c0_120, %c0_121] : memref<4x256xf32, #tpu.memory_space<vmem>>, vector<4x256xf32>
    %cst_122 = arith.constant dense<0.000000e+00> : vector<2x256xf32>
    %286 = tpu.matmul %284, %285, %cst_122 {dimension_numbers = #tpu.dot_dimension_numbers<[1], [0], [0], [1], [0, 0, 1, 1], [], []>} : vector<2x4xf32>, vector<4x256xf32>, vector<2x256xf32> -> vector<2x256xf32>
    %cst_123 = arith.constant 0.000000e+00 : f32
    %287 = vector.broadcast %cst_123 : f32 to vector<2x256xf32>
    %288 = arith.subf %287, %286 : vector<2x256xf32>
    %289 = math.exp %288 : vector<2x256xf32>
    %cst_124 = arith.constant 1.000000e+00 : f32
    %290 = vector.broadcast %cst_124 : f32 to vector<2x256xf32>
    %291 = arith.addf %290, %289 : vector<2x256xf32>
    %cst_125 = arith.constant 1.000000e+00 : f32
    %292 = vector.broadcast %cst_125 : f32 to vector<2x256xf32>
    %293 = arith.divf %292, %291 : vector<2x256xf32>
    %c0_126 = arith.constant 0 : index
    %c0_127 = arith.constant 0 : index
    %294 = vector.load %arg5[%c0_126, %c0_127] : memref<32x2xf32, #tpu.memory_space<vmem>>, vector<32x2xf32>
    %cst_128 = arith.constant dense<0.000000e+00> : vector<32x256xf32>
    %295 = tpu.matmul %294, %293, %cst_128 {dimension_numbers = #tpu.dot_dimension_numbers<[1], [0], [0], [1], [0, 0, 1, 1], [], []>} : vector<32x2xf32>, vector<2x256xf32>, vector<32x256xf32> -> vector<32x256xf32>
    %296 = arith.mulf %278, %295 : vector<32x256xf32>
    %297 = arith.addf %296, %152 : vector<32x256xf32>
    %c0_129 = arith.constant 0 : index
    %c0_130 = arith.constant 0 : index
    %298 = vector.load %arg19[%c0_129, %c0_130] : memref<32x256xf32, #tpu.memory_space<vmem>>, vector<32x256xf32>
    tpu.vector_store %arg19[%c0_129, %c0_130], %297 {strides = array<i32>} : memref<32x256xf32, #tpu.memory_space<vmem>>, vector<32x256xf32>,
    return
  }
  func.func @transform_0(%arg0: i32) -> (i32, i32) {
    %c0_i32 = arith.constant 0 : i32
    %c0_i32_0 = arith.constant 0 : i32
    return %arg0, %c0_i32 : i32, i32
  }
  func.func @transform_1(%arg0: i32) -> (i32, i32) {
    %c0_i32 = arith.constant 0 : i32
    %c0_i32_0 = arith.constant 0 : i32
    %c0_i32_1 = arith.constant 0 : i32
    return %c0_i32, %c0_i32_0 : i32, i32
  }
  func.func @transform_2(%arg0: i32) -> (i32, i32) {
    %c0_i32 = arith.constant 0 : i32
    %c0_i32_0 = arith.constant 0 : i32
    %c0_i32_1 = arith.constant 0 : i32
    return %c0_i32, %c0_i32_0 : i32, i32
  }
  func.func @transform_3(%arg0: i32) -> (i32, i32) {
    %c0_i32 = arith.constant 0 : i32
    %c0_i32_0 = arith.constant 0 : i32
    %c0_i32_1 = arith.constant 0 : i32
    return %c0_i32, %c0_i32_0 : i32, i32
  }
  func.func @transform_4(%arg0: i32) -> (i32, i32) {
    %c0_i32 = arith.constant 0 : i32
    %c0_i32_0 = arith.constant 0 : i32
    %c0_i32_1 = arith.constant 0 : i32
    return %c0_i32, %c0_i32_0 : i32, i32
  }
  func.func @transform_5(%arg0: i32) -> (i32, i32) {
    %c0_i32 = arith.constant 0 : i32
    %c0_i32_0 = arith.constant 0 : i32
    %c0_i32_1 = arith.constant 0 : i32
    return %c0_i32, %c0_i32_0 : i32, i32
  }
  func.func @transform_6(%arg0: i32) -> (i32, i32) {
    %c0_i32 = arith.constant 0 : i32
    %c0_i32_0 = arith.constant 0 : i32
    %c0_i32_1 = arith.constant 0 : i32
    return %c0_i32, %c0_i32_0 : i32, i32
  }
  func.func @transform_7(%arg0: i32) -> (i32, i32) {
    %c0_i32 = arith.constant 0 : i32
    %c0_i32_0 = arith.constant 0 : i32
    %c0_i32_1 = arith.constant 0 : i32
    return %c0_i32, %c0_i32_0 : i32, i32
  }
  func.func @transform_8(%arg0: i32) -> (i32, i32) {
    %c0_i32 = arith.constant 0 : i32
    %c0_i32_0 = arith.constant 0 : i32
    %c0_i32_1 = arith.constant 0 : i32
    return %c0_i32, %c0_i32_0 : i32, i32
  }
  func.func @transform_9(%arg0: i32) -> (i32, i32) {
    %c0_i32 = arith.constant 0 : i32
    %c0_i32_0 = arith.constant 0 : i32
    %c0_i32_1 = arith.constant 0 : i32
    return %c0_i32, %c0_i32_0 : i32, i32
  }
  func.func @transform_10(%arg0: i32) -> (i32, i32) {
    %c0_i32 = arith.constant 0 : i32
    %c0_i32_0 = arith.constant 0 : i32
    %c0_i32_1 = arith.constant 0 : i32
    return %c0_i32, %c0_i32_0 : i32, i32
  }
  func.func @transform_11(%arg0: i32) -> (i32, i32) {
    %c0_i32 = arith.constant 0 : i32
    %c0_i32_0 = arith.constant 0 : i32
    %c0_i32_1 = arith.constant 0 : i32
    return %c0_i32, %c0_i32_0 : i32, i32
  }
  func.func @transform_12(%arg0: i32) -> (i32, i32) {
    %c0_i32 = arith.constant 0 : i32
    %c0_i32_0 = arith.constant 0 : i32
    %c0_i32_1 = arith.constant 0 : i32
    return %c0_i32, %c0_i32_0 : i32, i32
  }
  func.func @transform_13(%arg0: i32) -> (i32, i32) {
    %c0_i32 = arith.constant 0 : i32
    %c0_i32_0 = arith.constant 0 : i32
    %c0_i32_1 = arith.constant 0 : i32
    return %c0_i32, %c0_i32_0 : i32, i32
  }
  func.func @transform_14(%arg0: i32) -> (i32, i32) {
    %c0_i32 = arith.constant 0 : i32
    %c0_i32_0 = arith.constant 0 : i32
    %c0_i32_1 = arith.constant 0 : i32
    return %c0_i32, %c0_i32_0 : i32, i32
  }
  func.func @transform_15(%arg0: i32) -> (i32, i32) {
    %c0_i32 = arith.constant 0 : i32
    %c0_i32_0 = arith.constant 0 : i32
    %c0_i32_1 = arith.constant 0 : i32
    return %c0_i32, %c0_i32_0 : i32, i32
  }
  func.func @transform_16(%arg0: i32) -> (i32, i32) {
    %c0_i32 = arith.constant 0 : i32
    %c0_i32_0 = arith.constant 0 : i32
    %c0_i32_1 = arith.constant 0 : i32
    return %c0_i32, %c0_i32_0 : i32, i32
  }
  func.func @transform_17(%arg0: i32) -> (i32, i32) {
    %c0_i32 = arith.constant 0 : i32
    %c0_i32_0 = arith.constant 0 : i32
    %c0_i32_1 = arith.constant 0 : i32
    return %c0_i32, %c0_i32_0 : i32, i32
  }
  func.func @transform_18(%arg0: i32) -> (i32, i32) {
    %c0_i32 = arith.constant 0 : i32
    %c0_i32_0 = arith.constant 0 : i32
    return %arg0, %c0_i32 : i32, i32
  }
}

</mosaic_0001>

<llo_original>
// kernel: cab_dsc_forward.1
$region0: #{cab_dsc_forward.1}
  #allocation0 [shape = 'u32[]', space=smem, size = 0x4, offset = 0x4, fixed_abs, tag = 'smem constant byte address 0x4 - core index']
  #allocation1 [shape = 'u32[72,128]{1,0:T(1,128)}', space=vmem, size = 0x9000, scoped, tag = 'internal scratch']
  %s0 = inlined_call_operand.vmem [shape: f32[32,256], index: 0, kind: input, shape index: {}]
  %s1 = inlined_call_operand.hbm [shape: f32[32,1], index: 1, kind: input, shape index: {}]
  %s2 = inlined_call_operand.hbm [shape: f32[32,1], index: 2, kind: input, shape index: {}]
  %s3 = inlined_call_operand.vmem [shape: f32[2,32], index: 3, kind: input, shape index: {}]
  %s4 = inlined_call_operand.hbm [shape: f32[32,2], index: 4, kind: input, shape index: {}]
  %s5 = inlined_call_operand.vmem [shape: f32[9,256], index: 5, kind: input, shape index: {}]
  %s6 = inlined_call_operand.vmem [shape: f32[9,256], index: 6, kind: input, shape index: {}]
  %s7 = inlined_call_operand.hbm [shape: f32[9,256], index: 7, kind: input, shape index: {}]
  %s8 = inlined_call_operand.hbm [shape: f32[9,256], index: 8, kind: input, shape index: {}]
  %s9 = inlined_call_operand.vmem [shape: bf16[256,256], index: 9, kind: input, shape index: {}]
  %s10 = inlined_call_operand.vmem [shape: bf16[256,256], index: 10, kind: input, shape index: {}]
  %s11 = inlined_call_operand.vmem [shape: bf16[256,256], index: 11, kind: input, shape index: {}]
  %s12 = inlined_call_operand.vmem [shape: bf16[256,256], index: 12, kind: input, shape index: {}]
  %s13 = inlined_call_operand.hbm [shape: f32[8,256], index: 13, kind: input, shape index: {}]
  %s14 = inlined_call_operand.vmem [shape: f32[256,4], index: 14, kind: input, shape index: {}]
  %s15 = inlined_call_operand.hbm [shape: f32[4,256], index: 15, kind: input, shape index: {}]
  %s16 = inlined_call_operand.vmem [shape: f32[256,4], index: 16, kind: input, shape index: {}]
  %s17 = inlined_call_operand.hbm [shape: f32[4,256], index: 17, kind: input, shape index: {}]
  %s18 = inlined_call_operand.vmem [shape: f32[32,256], index: 18, kind: output, shape index: {}]
  %s19 = sld [smem:[#allocation0]]
  $region114: #{cab_dsc_forward.1} parent=0
    _
  %s21 = ssub.s32 1, %s19
  %s22 = scalar_select 0, %s21, %s19
  $region1: #{cab_dsc_forward.1} parent=0
    #allocation2 [shape = 'u8[16384]{0}', space=vmem, size = 0x4000, scoped, tag = 'input window, operand 1, single buffered']
    #allocation3 [shape = 's32[1]{0}', space=sflag, size = 0x4, scoped, tag = 'scoped memory for cab_dsc_forward.1']
    #allocation4 [shape = 'u8[16384]{0}', space=vmem, size = 0x4000, scoped, tag = 'input window, operand 2, single buffered']
    #allocation5 [shape = 's32[1]{0}', space=sflag, size = 0x4, scoped, tag = 'scoped memory for cab_dsc_forward.1']
    #allocation6 [shape = 'u8[16384]{0}', space=vmem, size = 0x4000, scoped, tag = 'input window, operand 4, single buffered']
    #allocation7 [shape = 'u8[16384]{0}', space=vmem, size = 0x4000, scoped, tag = 'input window, operand 7, single buffered']
    #allocation8 [shape = 's32[1]{0}', space=sflag, size = 0x4, scoped, tag = 'scoped memory for cab_dsc_forward.1']
    #allocation9 [shape = 'u8[16384]{0}', space=vmem, size = 0x4000, scoped, tag = 'input window, operand 8, single buffered']
    #allocation10 [shape = 'u8[8192]{0}', space=vmem, size = 0x2000, scoped, tag = 'input window, operand 13, single buffered']
    #allocation11 [shape = 's32[1]{0}', space=sflag, size = 0x4, scoped, tag = 'scoped memory for cab_dsc_forward.1']
    #allocation12 [shape = 'u8[4096]{0}', space=vmem, size = 0x1000, scoped, tag = 'input window, operand 15, single buffered']
    #allocation13 [shape = 'u8[4096]{0}', space=vmem, size = 0x1000, scoped, tag = 'input window, operand 17, single buffered']
    #allocation14 [shape = 's32[1]{0}', space=sflag, size = 0x4, scoped, tag = 'scoped memory for cab_dsc_forward.1']
    %23 = vsyncpa [#allocation3], 0
    %24 = vsyncpa [#allocation5], 0
    %25 = vsyncpa [#allocation8], 0
    %26 = vsyncpa [#allocation11], 0
    %27 = vsyncpa [#allocation14], 0
    // Predicated region
    $region2: #{cab_dsc_forward.1} parent=1 // pred_check
      _
    $region3: #{cab_dsc_forward.1} parent=1 // pred_check_branch
      %29 = sbr.rel (0) target = $region5
    $region4: #{cab_dsc_forward.1} parent=1 // pred_region
      _
    $region5: #{cab_dsc_forward.1} parent=1 // pred_fallthru
      _
    // Predicated region
    $region6: #{cab_dsc_forward.1} parent=1 // pred_check
      _
    $region7: #{cab_dsc_forward.1} parent=1 // pred_check_branch
      %31 = sbr.rel (0) target = $region9
    $region8: #{cab_dsc_forward.1} parent=1 // pred_region
      %33 = vsyncadd [#allocation3], 0
      %s34 = sshll.u32 %s1, 4
      %s35 = int_to_ptr.hbm [resolvable:$true] %s34
      %s36 = sshll.u32 [#allocation2], 4
      %s37 = int_to_ptr.vmem [resolvable:$true] %s36
      %42 = dma.hbm_to_vmem [thread:$0]  %s35, 512, %s37, [#allocation3], 128, 128, 8
    $region9: #{cab_dsc_forward.1} parent=1 // pred_fallthru
      _
    // Predicated region
    $region10: #{cab_dsc_forward.1} parent=1 // pred_check
      _
    $region11: #{cab_dsc_forward.1} parent=1 // pred_check_branch
      %44 = sbr.rel (0) target = $region13
    $region12: #{cab_dsc_forward.1} parent=1 // pred_region
      %46 = vsyncadd [#allocation5], 0
      %s47 = sshll.u32 %s2, 4
      %s48 = int_to_ptr.hbm [resolvable:$true] %s47
      %s49 = sshll.u32 [#allocation4], 4
      %s50 = int_to_ptr.vmem [resolvable:$true] %s49
      %55 = dma.hbm_to_vmem [thread:$0]  %s48, 512, %s50, [#allocation5], 128, 128, 8
    $region13: #{cab_dsc_forward.1} parent=1 // pred_fallthru
      _
    // Predicated region
    $region14: #{cab_dsc_forward.1} parent=1 // pred_check
      _
    $region15: #{cab_dsc_forward.1} parent=1 // pred_check_branch
      %57 = sbr.rel (0) target = $region17
    $region16: #{cab_dsc_forward.1} parent=1 // pred_region
      _
    $region17: #{cab_dsc_forward.1} parent=1 // pred_fallthru
      _
    // Predicated region
    $region18: #{cab_dsc_forward.1} parent=1 // pred_check
      _
    $region19: #{cab_dsc_forward.1} parent=1 // pred_check_branch
      %59 = sbr.rel (0) target = $region21
    $region20: #{cab_dsc_forward.1} parent=1 // pred_region
      %61 = vsyncadd [#allocation5], 0
      %s62 = sshll.u32 %s4, 4
      %s63 = int_to_ptr.hbm [resolvable:$true] %s62
      %s64 = sshll.u32 [#allocation6], 4
      %s65 = int_to_ptr.vmem [resolvable:$true] %s64
      %70 = dma.hbm_to_vmem [thread:$0]  %s63, 512, %s65, [#allocation5], 128, 128, 8
    $region21: #{cab_dsc_forward.1} parent=1 // pred_fallthru
      _
    // Predicated region
    $region22: #{cab_dsc_forward.1} parent=1 // pred_check
      _
    $region23: #{cab_dsc_forward.1} parent=1 // pred_check_branch
      %72 = sbr.rel (0) target = $region25
    $region24: #{cab_dsc_forward.1} parent=1 // pred_region
      _
    $region25: #{cab_dsc_forward.1} parent=1 // pred_fallthru
      _
    // Predicated region
    $region26: #{cab_dsc_forward.1} parent=1 // pred_check
      _
    $region27: #{cab_dsc_forward.1} parent=1 // pred_check_branch
      %74 = sbr.rel (0) target = $region29
    $region28: #{cab_dsc_forward.1} parent=1 // pred_region
      _
    $region29: #{cab_dsc_forward.1} parent=1 // pred_fallthru
      _
    // Predicated region
    $region30: #{cab_dsc_forward.1} parent=1 // pred_check
      _
    $region31: #{cab_dsc_forward.1} parent=1 // pred_check_branch
      %76 = sbr.rel (0) target = $region33
    $region32: #{cab_dsc_forward.1} parent=1 // pred_region
      %78 = vsyncadd [#allocation8], 0
      %s79 = sshll.u32 %s7, 4
      %s80 = int_to_ptr.hbm [resolvable:$true] %s79
      %s81 = sshll.u32 [#allocation7], 4
      %s82 = int_to_ptr.vmem [resolvable:$true] %s81
      %87 = dma.hbm_to_vmem [thread:$0]  %s80, 512, %s82, [#allocation8], 256, 256, 16
    $region33: #{cab_dsc_forward.1} parent=1 // pred_fallthru
      _
    // Predicated region
    $region34: #{cab_dsc_forward.1} parent=1 // pred_check
      _
    $region35: #{cab_dsc_forward.1} parent=1 // pred_check_branch
      %89 = sbr.rel (0) target = $region37
    $region36: #{cab_dsc_forward.1} parent=1 // pred_region
      %91 = vsyncadd [#allocation8], 0
      %s92 = sshll.u32 %s8, 4
      %s93 = int_to_ptr.hbm [resolvable:$true] %s92
      %s94 = sshll.u32 [#allocation9], 4
      %s95 = int_to_ptr.vmem [resolvable:$true] %s94
      %100 = dma.hbm_to_vmem [thread:$0]  %s93, 512, %s95, [#allocation8], 256, 256, 16
    $region37: #{cab_dsc_forward.1} parent=1 // pred_fallthru
      _
    // Predicated region
    $region38: #{cab_dsc_forward.1} parent=1 // pred_check
      _
    $region39: #{cab_dsc_forward.1} parent=1 // pred_check_branch
      %102 = sbr.rel (0) target = $region41
    $region40: #{cab_dsc_forward.1} parent=1 // pred_region
      _
    $region41: #{cab_dsc_forward.1} parent=1 // pred_fallthru
      _
    // Predicated region
    $region42: #{cab_dsc_forward.1} parent=1 // pred_check
      _
    $region43: #{cab_dsc_forward.1} parent=1 // pred_check_branch
      %104 = sbr.rel (0) target = $region45
    $region44: #{cab_dsc_forward.1} parent=1 // pred_region
      _
    $region45: #{cab_dsc_forward.1} parent=1 // pred_fallthru
      _
    // Predicated region
    $region46: #{cab_dsc_forward.1} parent=1 // pred_check
      _
    $region47: #{cab_dsc_forward.1} parent=1 // pred_check_branch
      %106 = sbr.rel (0) target = $region49
    $region48: #{cab_dsc_forward.1} parent=1 // pred_region
      _
    $region49: #{cab_dsc_forward.1} parent=1 // pred_fallthru
      _
    // Predicated region
    $region50: #{cab_dsc_forward.1} parent=1 // pred_check
      _
    $region51: #{cab_dsc_forward.1} parent=1 // pred_check_branch
      %108 = sbr.rel (0) target = $region53
    $region52: #{cab_dsc_forward.1} parent=1 // pred_region
      _
    $region53: #{cab_dsc_forward.1} parent=1 // pred_fallthru
      _
    // Predicated region
    $region54: #{cab_dsc_forward.1} parent=1 // pred_check
      _
    $region55: #{cab_dsc_forward.1} parent=1 // pred_check_branch
      %110 = sbr.rel (0) target = $region57
    $region56: #{cab_dsc_forward.1} parent=1 // pred_region
      %112 = vsyncadd [#allocation11], 0
      %s114 = sshll.u32 %s13, 4
      %s115 = int_to_ptr.hbm [resolvable:$true] %s114
      %s116 = sshll.u32 [#allocation10], 4
      %s117 = int_to_ptr.vmem [resolvable:$true] %s116
      %119 = dma.hbm_to_vmem [thread:$0]  %s115, 256, %s117, [#allocation11]
    $region57: #{cab_dsc_forward.1} parent=1 // pred_fallthru
      _
    // Predicated region
    $region58: #{cab_dsc_forward.1} parent=1 // pred_check
      _
    $region59: #{cab_dsc_forward.1} parent=1 // pred_check_branch
      %121 = sbr.rel (0) target = $region61
    $region60: #{cab_dsc_forward.1} parent=1 // pred_region
      _
    $region61: #{cab_dsc_forward.1} parent=1 // pred_fallthru
      _
    // Predicated region
    $region62: #{cab_dsc_forward.1} parent=1 // pred_check
      _
    $region63: #{cab_dsc_forward.1} parent=1 // pred_check_branch
      %123 = sbr.rel (0) target = $region65
    $region64: #{cab_dsc_forward.1} parent=1 // pred_region
      %125 = vsyncadd [#allocation11], 0
      %s127 = sshll.u32 %s15, 4
      %s128 = int_to_ptr.hbm [resolvable:$true] %s127
      %s129 = sshll.u32 [#allocation12], 4
      %s130 = int_to_ptr.vmem [resolvable:$true] %s129
      %132 = dma.hbm_to_vmem [thread:$0]  %s128, 128, %s130, [#allocation11]
    $region65: #{cab_dsc_forward.1} parent=1 // pred_fallthru
      _
    // Predicated region
    $region66: #{cab_dsc_forward.1} parent=1 // pred_check
      _
    $region67: #{cab_dsc_forward.1} parent=1 // pred_check_branch
      %134 = sbr.rel (0) target = $region69
    $region68: #{cab_dsc_forward.1} parent=1 // pred_region
      _
    $region69: #{cab_dsc_forward.1} parent=1 // pred_fallthru
      _
    // Predicated region
    $region70: #{cab_dsc_forward.1} parent=1 // pred_check
      _
    $region71: #{cab_dsc_forward.1} parent=1 // pred_check_branch
      %136 = sbr.rel (0) target = $region73
    $region72: #{cab_dsc_forward.1} parent=1 // pred_region
      %138 = vsyncadd [#allocation14], 0
      %s140 = sshll.u32 %s17, 4
      %s141 = int_to_ptr.hbm [resolvable:$true] %s140
      %s142 = sshll.u32 [#allocation13], 4
      %s143 = int_to_ptr.vmem [resolvable:$true] %s142
      %145 = dma.hbm_to_vmem [thread:$0]  %s141, 128, %s143, [#allocation14]
    $region73: #{cab_dsc_forward.1} parent=1 // pred_fallthru
      _
    // Predicated region
    $region74: #{cab_dsc_forward.1} parent=1 // pred_check
      _
    $region75: #{cab_dsc_forward.1} parent=1 // pred_check_branch
      %147 = sbr.rel (0) target = $region77
    $region76: #{cab_dsc_forward.1} parent=1 // pred_region
      %149 = dma.done [#allocation3], 512
    $region77: #{cab_dsc_forward.1} parent=1 // pred_fallthru
      _
    // Predicated region
    $region78: #{cab_dsc_forward.1} parent=1 // pred_check
      _
    $region79: #{cab_dsc_forward.1} parent=1 // pred_check_branch
      %151 = sbr.rel (0) target = $region81
    $region80: #{cab_dsc_forward.1} parent=1 // pred_region
      %153 = dma.done [#allocation5], 512
    $region81: #{cab_dsc_forward.1} parent=1 // pred_fallthru
      _
    // Predicated region
    $region82: #{cab_dsc_forward.1} parent=1 // pred_check
      _
    $region83: #{cab_dsc_forward.1} parent=1 // pred_check_branch
      %155 = sbr.rel (0) target = $region85
    $region84: #{cab_dsc_forward.1} parent=1 // pred_region
      %157 = dma.done [#allocation5], 512
    $region85: #{cab_dsc_forward.1} parent=1 // pred_fallthru
      _
    // Predicated region
    $region86: #{cab_dsc_forward.1} parent=1 // pred_check
      _
    $region87: #{cab_dsc_forward.1} parent=1 // pred_check_branch
      %159 = sbr.rel (0) target = $region89
    $region88: #{cab_dsc_forward.1} parent=1 // pred_region
      %161 = dma.done [#allocation8], 512
    $region89: #{cab_dsc_forward.1} parent=1 // pred_fallthru
      _
    // Predicated region
    $region90: #{cab_dsc_forward.1} parent=1 // pred_check
      _
    $region91: #{cab_dsc_forward.1} parent=1 // pred_check_branch
      %163 = sbr.rel (0) target = $region93
    $region92: #{cab_dsc_forward.1} parent=1 // pred_region
      %165 = dma.done [#allocation8], 512
    $region93: #{cab_dsc_forward.1} parent=1 // pred_fallthru
      _
    // Predicated region
    $region94: #{cab_dsc_forward.1} parent=1 // pred_check
      _
    $region95: #{cab_dsc_forward.1} parent=1 // pred_check_branch
      %167 = sbr.rel (0) target = $region97
    $region96: #{cab_dsc_forward.1} parent=1 // pred_region
      %169 = dma.done [#allocation11], 256
    $region97: #{cab_dsc_forward.1} parent=1 // pred_fallthru
      _
    // Predicated region
    $region98: #{cab_dsc_forward.1} parent=1 // pred_check
      _
    $region99: #{cab_dsc_forward.1} parent=1 // pred_check_branch
      %171 = sbr.rel (0) target = $region101
    $region100: #{cab_dsc_forward.1} parent=1 // pred_region
      %173 = dma.done [#allocation11], 128
    $region101: #{cab_dsc_forward.1} parent=1 // pred_fallthru
      _
    // Predicated region
    $region102: #{cab_dsc_forward.1} parent=1 // pred_check
      _
    $region103: #{cab_dsc_forward.1} parent=1 // pred_check_branch
      %175 = sbr.rel (0) target = $region105
    $region104: #{cab_dsc_forward.1} parent=1 // pred_region
      %177 = dma.done [#allocation14], 128
    $region105: #{cab_dsc_forward.1} parent=1 // pred_fallthru
      _
    %v178 = vld [vmem:[%s0] sm:$0xff]
    %v179 = vld [vmem:[%s0 + $0x8] sm:$0xff]
    %v180 = vld [vmem:[%s0 + $0x10] sm:$0xff]
    %v181 = vld [vmem:[%s0 + $0x18] sm:$0xff]
    %v182 = vld [vmem:[%s0 + $0x20] sm:$0xff]
    %v183 = vld [vmem:[%s0 + $0x28] sm:$0xff]
    %v184 = vld [vmem:[%s0 + $0x30] sm:$0xff]
    %v185 = vld [vmem:[%s0 + $0x38] sm:$0xff]
    %v186 = vld [vmem:[#allocation2] sm:$0xff]
    %v187 = vld [vmem:[#allocation2 + $0x8] sm:$0xff]
    %v188 = vld [vmem:[#allocation2 + $0x10] sm:$0xff]
    %v189 = vld [vmem:[#allocation2 + $0x18] sm:$0xff]
    %v190 = vld [vmem:[#allocation4] sm:$0xff]
    %v191 = vld [vmem:[#allocation4 + $0x8] sm:$0xff]
    %v192 = vld [vmem:[#allocation4 + $0x10] sm:$0xff]
    %v193 = vld [vmem:[#allocation4 + $0x18] sm:$0xff]
    %vm202 = vcmask 1040384
    %v203 = vrot.slane %v178, 7
    %v204 = vrot.slane %v179, 7
    %v205 = vrot.slane %v180, 7
    %v206 = vsel %vm202, %v203, %v205
    %v207 = vrot.slane %v181, 7
    %v208 = vsel %vm202, %v204, %v207
    %v209 = vrot.slane %v182, 7
    %v210 = vsel %vm202, %v205, %v209
    %v211 = vrot.slane %v183, 7
    %v212 = vsel %vm202, %v207, %v211
    %v213 = vrot.slane %v184, 7
    %v214 = vsel %vm202, %v209, %v213
    %v215 = vrot.slane %v185, 7
    %v216 = vsel %vm202, %v211, %v215
    %v225 = vsel %vm202, 0.0, %v203
    %v226 = vsel %vm202, 0.0, %v204
    %228 = vset.pattern.permute.xlu0 0
    %229 = vperm.xlu0 %228, %v186
    %v230 = vpop.permute.xlu0 %229
    %233 = vset.pattern.permute.xlu0 0
    %234 = vperm.xlu0 %233, %v187
    %v235 = vpop.permute.xlu0 %234
    %238 = vset.pattern.permute.xlu0 0
    %239 = vperm.xlu0 %238, %v188
    %v240 = vpop.permute.xlu0 %239
    %243 = vset.pattern.permute.xlu0 0
    %244 = vperm.xlu0 %243, %v189
    %v245 = vpop.permute.xlu0 %244
    %v247 = vmul.f32 %v225, %v230
    %v248 = vmul.f32 %v226, %v230
    %v249 = vmul.f32 %v206, %v235
    %v250 = vmul.f32 %v208, %v235
    %v251 = vmul.f32 %v210, %v240
    %v252 = vmul.f32 %v212, %v240
    %v253 = vmul.f32 %v214, %v245
    %v254 = vmul.f32 %v216, %v245
    %vm255 = vcmask 1046528
    %v256 = vrot.slane %v178, 1
    %v257 = vrot.slane %v180, 1
    %v258 = vsel %vm255, %v256, %v257
    %v259 = vrot.slane %v179, 1
    %v260 = vrot.slane %v181, 1
    %v261 = vsel %vm255, %v259, %v260
    %v262 = vrot.slane %v182, 1
    %v263 = vsel %vm255, %v257, %v262
    %v264 = vrot.slane %v183, 1
    %v265 = vsel %vm255, %v260, %v264
    %v266 = vrot.slane %v184, 1
    %v267 = vsel %vm255, %v262, %v266
    %v268 = vrot.slane %v185, 1
    %v269 = vsel %vm255, %v264, %v268
    %v278 = vsel %vm255, %v266, 0.0
    %v279 = vsel %vm255, %v268, 0.0
    %281 = vset.pattern.permute.xlu0 0
    %282 = vperm.xlu0 %281, %v190
    %v283 = vpop.permute.xlu0 %282
    %286 = vset.pattern.permute.xlu0 0
    %287 = vperm.xlu0 %286, %v191
    %v288 = vpop.permute.xlu0 %287
    %291 = vset.pattern.permute.xlu0 0
    %292 = vperm.xlu0 %291, %v192
    %v293 = vpop.permute.xlu0 %292
    %296 = vset.pattern.permute.xlu0 0
    %297 = vperm.xlu0 %296, %v193
    %v298 = vpop.permute.xlu0 %297
    %v300 = vmul.f32 %v258, %v283
    %v301 = vmul.f32 %v261, %v283
    %v302 = vmul.f32 %v263, %v288
    %v303 = vmul.f32 %v265, %v288
    %v304 = vmul.f32 %v267, %v293
    %v305 = vmul.f32 %v269, %v293
    %v306 = vmul.f32 %v278, %v298
    %v307 = vmul.f32 %v279, %v298
    %316 = vrot.lane.b32.xlu0 %v247, 16
    %v317 = vpop.permute.xlu0 %316
    %318 = vrot.lane.b32.xlu0 %v248, 16
    %v319 = vpop.permute.xlu0 %318
    %320 = vrot.lane.b32.xlu0 %v249, 16
    %v321 = vpop.permute.xlu0 %320
    %322 = vrot.lane.b32.xlu0 %v250, 16
    %v323 = vpop.permute.xlu0 %322
    %324 = vrot.lane.b32.xlu0 %v251, 16
    %v325 = vpop.permute.xlu0 %324
    %326 = vrot.lane.b32.xlu0 %v252, 16
    %v327 = vpop.permute.xlu0 %326
    %328 = vrot.lane.b32.xlu0 %v253, 16
    %v329 = vpop.permute.xlu0 %328
    %330 = vrot.lane.b32.xlu0 %v254, 16
    %v331 = vpop.permute.xlu0 %330
    %vm332 = vcmask 130048
    %v333 = vsel %vm332, %v317, %v319
    %v334 = vsel %vm332, %v321, %v323
    %v335 = vsel %vm332, %v325, %v327
    %v336 = vsel %vm332, %v329, %v331
    %v345 = vsel %vm332, 0.0, %v317
    %v346 = vsel %vm332, 0.0, %v321
    %v347 = vsel %vm332, 0.0, %v325
    %v348 = vsel %vm332, 0.0, %v329
    %349 = vrot.lane.b32.xlu0 %v247, 112
    %v350 = vpop.permute.xlu0 %349
    %351 = vrot.lane.b32.xlu0 %v248, 112
    %v352 = vpop.permute.xlu0 %351
    %353 = vrot.lane.b32.xlu0 %v249, 112
    %v354 = vpop.permute.xlu0 %353
    %355 = vrot.lane.b32.xlu0 %v250, 112
    %v356 = vpop.permute.xlu0 %355
    %357 = vrot.lane.b32.xlu0 %v251, 112
    %v358 = vpop.permute.xlu0 %357
    %359 = vrot.lane.b32.xlu0 %v252, 112
    %v360 = vpop.permute.xlu0 %359
    %361 = vrot.lane.b32.xlu0 %v253, 112
    %v362 = vpop.permute.xlu0 %361
    %363 = vrot.lane.b32.xlu0 %v254, 112
    %v364 = vpop.permute.xlu0 %363
    %vm365 = vcmask 916480
    %v366 = vsel %vm365, %v350, %v352
    %v367 = vsel %vm365, %v354, %v356
    %v368 = vsel %vm365, %v358, %v360
    %v369 = vsel %vm365, %v362, %v364
    %v378 = vsel %vm365, %v352, 0.0
    %v379 = vsel %vm365, %v356, 0.0
    %v380 = vsel %vm365, %v360, 0.0
    %v381 = vsel %vm365, %v364, 0.0
    %v382 = vld [vmem:[%s5] ss:$8 sm:$0x3]
    %v384 = vperm.slane %v382, 0
    %v385 = vperm.slane %v382, 1
    %v388 = vmul.f32 %v345, %v384
    %v389 = vmul.f32 %v333, %v385
    %v390 = vmul.f32 %v346, %v384
    %v391 = vmul.f32 %v334, %v385
    %v392 = vmul.f32 %v347, %v384
    %v393 = vmul.f32 %v335, %v385
    %v394 = vmul.f32 %v348, %v384
    %v395 = vmul.f32 %v336, %v385
    %s396 = scalar_lea.vmem %s5, 1
    %v397 = vld [vmem:[%s396] ss:$8 sm:$0x3]
    %v399 = vperm.slane %v397, 0
    %v400 = vperm.slane %v397, 1
    %v403 = vmul.f32 %v247, %v399
    %v404 = vmul.f32 %v248, %v400
    %v405 = vmul.f32 %v249, %v399
    %v406 = vmul.f32 %v250, %v400
    %v407 = vmul.f32 %v251, %v399
    %v408 = vmul.f32 %v252, %v400
    %v409 = vmul.f32 %v253, %v399
    %v410 = vmul.f32 %v254, %v400
    %v411 = vadd.f32 %v388, %v403
    %v412 = vadd.f32 %v389, %v404
    %v413 = vadd.f32 %v390, %v405
    %v414 = vadd.f32 %v391, %v406
    %v415 = vadd.f32 %v392, %v407
    %v416 = vadd.f32 %v393, %v408
    %v417 = vadd.f32 %v394, %v409
    %v418 = vadd.f32 %v395, %v410
    %s419 = scalar_lea.vmem %s5, 2
    %v420 = vld [vmem:[%s419] ss:$8 sm:$0x3]
    %v422 = vperm.slane %v420, 0
    %v423 = vperm.slane %v420, 1
    %v426 = vmul.f32 %v366, %v422
    %v427 = vmul.f32 %v378, %v423
    %v428 = vmul.f32 %v367, %v422
    %v429 = vmul.f32 %v379, %v423
    %v430 = vmul.f32 %v368, %v422
    %v431 = vmul.f32 %v380, %v423
    %v432 = vmul.f32 %v369, %v422
    %v433 = vmul.f32 %v381, %v423
    %v434 = vadd.f32 %v411, %v426
    %v435 = vadd.f32 %v412, %v427
    %v436 = vadd.f32 %v413, %v428
    %v437 = vadd.f32 %v414, %v429
    %v438 = vadd.f32 %v415, %v430
    %v439 = vadd.f32 %v416, %v431
    %v440 = vadd.f32 %v417, %v432
    %v441 = vadd.f32 %v418, %v433
    %442 = vrot.lane.b32.xlu0 %v178, 16
    %v443 = vpop.permute.xlu0 %442
    %444 = vrot.lane.b32.xlu0 %v179, 16
    %v445 = vpop.permute.xlu0 %444
    %446 = vrot.lane.b32.xlu0 %v180, 16
    %v447 = vpop.permute.xlu0 %446
    %448 = vrot.lane.b32.xlu0 %v181, 16
    %v449 = vpop.permute.xlu0 %448
    %450 = vrot.lane.b32.xlu0 %v182, 16
    %v451 = vpop.permute.xlu0 %450
    %452 = vrot.lane.b32.xlu0 %v183, 16
    %v453 = vpop.permute.xlu0 %452
    %454 = vrot.lane.b32.xlu0 %v184, 16
    %v455 = vpop.permute.xlu0 %454
    %456 = vrot.lane.b32.xlu0 %v185, 16
    %v457 = vpop.permute.xlu0 %456
    %v458 = vsel %vm332, %v443, %v445
    %v459 = vsel %vm332, %v447, %v449
    %v460 = vsel %vm332, %v451, %v453
    %v461 = vsel %vm332, %v455, %v457
    %v470 = vsel %vm332, 0.0, %v443
    %v471 = vsel %vm332, 0.0, %v447
    %v472 = vsel %vm332, 0.0, %v451
    %v473 = vsel %vm332, 0.0, %v455
    %474 = vrot.lane.b32.xlu0 %v178, 112
    %v475 = vpop.permute.xlu0 %474
    %476 = vrot.lane.b32.xlu0 %v179, 112
    %v477 = vpop.permute.xlu0 %476
    %478 = vrot.lane.b32.xlu0 %v180, 112
    %v479 = vpop.permute.xlu0 %478
    %480 = vrot.lane.b32.xlu0 %v181, 112
    %v481 = vpop.permute.xlu0 %480
    %482 = vrot.lane.b32.xlu0 %v182, 112
    %v483 = vpop.permute.xlu0 %482
    %484 = vrot.lane.b32.xlu0 %v183, 112
    %v485 = vpop.permute.xlu0 %484
    %486 = vrot.lane.b32.xlu0 %v184, 112
    %v487 = vpop.permute.xlu0 %486
    %488 = vrot.lane.b32.xlu0 %v185, 112
    %v489 = vpop.permute.xlu0 %488
    %v490 = vsel %vm365, %v475, %v477
    %v491 = vsel %vm365, %v479, %v481
    %v492 = vsel %vm365, %v483, %v485
    %v493 = vsel %vm365, %v487, %v489
    %v502 = vsel %vm365, %v477, 0.0
    %v503 = vsel %vm365, %v481, 0.0
    %v504 = vsel %vm365, %v485, 0.0
    %v505 = vsel %vm365, %v489, 0.0
    %s506 = scalar_lea.vmem %s5, 3
    %v507 = vld [vmem:[%s506] ss:$8 sm:$0x3]
    %v509 = vperm.slane %v507, 0
    %v510 = vperm.slane %v507, 1
    %v513 = vmul.f32 %v470, %v509
    %v514 = vmul.f32 %v458, %v510
    %v515 = vmul.f32 %v471, %v509
    %v516 = vmul.f32 %v459, %v510
    %v517 = vmul.f32 %v472, %v509
    %v518 = vmul.f32 %v460, %v510
    %v519 = vmul.f32 %v473, %v509
    %v520 = vmul.f32 %v461, %v510
    %v521 = vadd.f32 %v434, %v513
    %v522 = vadd.f32 %v435, %v514
    %v523 = vadd.f32 %v436, %v515
    %v524 = vadd.f32 %v437, %v516
    %v525 = vadd.f32 %v438, %v517
    %v526 = vadd.f32 %v439, %v518
    %v527 = vadd.f32 %v440, %v519
    %v528 = vadd.f32 %v441, %v520
    %s529 = scalar_lea.vmem %s5, 4
    %v530 = vld [vmem:[%s529] ss:$8 sm:$0x3]
    %v532 = vperm.slane %v530, 0
    %v533 = vperm.slane %v530, 1
    %v536 = vmul.f32 %v178, %v532
    %v537 = vmul.f32 %v179, %v533
    %v538 = vmul.f32 %v180, %v532
    %v539 = vmul.f32 %v181, %v533
    %v540 = vmul.f32 %v182, %v532
    %v541 = vmul.f32 %v183, %v533
    %v542 = vmul.f32 %v184, %v532
    %v543 = vmul.f32 %v185, %v533
    %v544 = vadd.f32 %v521, %v536
    %v545 = vadd.f32 %v522, %v537
    %v546 = vadd.f32 %v523, %v538
    %v547 = vadd.f32 %v524, %v539
    %v548 = vadd.f32 %v525, %v540
    %v549 = vadd.f32 %v526, %v541
    %v550 = vadd.f32 %v527, %v542
    %v551 = vadd.f32 %v528, %v543
    %s552 = scalar_lea.vmem %s5, 5
    %v553 = vld [vmem:[%s552] ss:$8 sm:$0x3]
    %v555 = vperm.slane %v553, 0
    %v556 = vperm.slane %v553, 1
    %v559 = vmul.f32 %v490, %v555
    %v560 = vmul.f32 %v502, %v556
    %v561 = vmul.f32 %v491, %v555
    %v562 = vmul.f32 %v503, %v556
    %v563 = vmul.f32 %v492, %v555
    %v564 = vmul.f32 %v504, %v556
    %v565 = vmul.f32 %v493, %v555
    %v566 = vmul.f32 %v505, %v556
    %v567 = vadd.f32 %v544, %v559
    %v568 = vadd.f32 %v545, %v560
    %v569 = vadd.f32 %v546, %v561
    %v570 = vadd.f32 %v547, %v562
    %v571 = vadd.f32 %v548, %v563
    %v572 = vadd.f32 %v549, %v564
    %v573 = vadd.f32 %v550, %v565
    %v574 = vadd.f32 %v551, %v566
    %583 = vrot.lane.b32.xlu0 %v300, 16
    %v584 = vpop.permute.xlu0 %583
    %585 = vrot.lane.b32.xlu0 %v301, 16
    %v586 = vpop.permute.xlu0 %585
    %587 = vrot.lane.b32.xlu0 %v302, 16
    %v588 = vpop.permute.xlu0 %587
    %589 = vrot.lane.b32.xlu0 %v303, 16
    %v590 = vpop.permute.xlu0 %589
    %591 = vrot.lane.b32.xlu0 %v304, 16
    %v592 = vpop.permute.xlu0 %591
    %593 = vrot.lane.b32.xlu0 %v305, 16
    %v594 = vpop.permute.xlu0 %593
    %595 = vrot.lane.b32.xlu0 %v306, 16
    %v596 = vpop.permute.xlu0 %595
    %597 = vrot.lane.b32.xlu0 %v307, 16
    %v598 = vpop.permute.xlu0 %597
    %v599 = vsel %vm332, %v584, %v586
    %v600 = vsel %vm332, %v588, %v590
    %v601 = vsel %vm332, %v592, %v594
    %v602 = vsel %vm332, %v596, %v598
    %v611 = vsel %vm332, 0.0, %v584
    %v612 = vsel %vm332, 0.0, %v588
    %v613 = vsel %vm332, 0.0, %v592
    %v614 = vsel %vm332, 0.0, %v596
    %615 = vrot.lane.b32.xlu0 %v300, 112
    %v616 = vpop.permute.xlu0 %615
    %617 = vrot.lane.b32.xlu0 %v301, 112
    %v618 = vpop.permute.xlu0 %617
    %619 = vrot.lane.b32.xlu0 %v302, 112
    %v620 = vpop.permute.xlu0 %619
    %621 = vrot.lane.b32.xlu0 %v303, 112
    %v622 = vpop.permute.xlu0 %621
    %623 = vrot.lane.b32.xlu0 %v304, 112
    %v624 = vpop.permute.xlu0 %623
    %625 = vrot.lane.b32.xlu0 %v305, 112
    %v626 = vpop.permute.xlu0 %625
    %627 = vrot.lane.b32.xlu0 %v306, 112
    %v628 = vpop.permute.xlu0 %627
    %629 = vrot.lane.b32.xlu0 %v307, 112
    %v630 = vpop.permute.xlu0 %629
    %v631 = vsel %vm365, %v616, %v618
    %v632 = vsel %vm365, %v620, %v622
    %v633 = vsel %vm365, %v624, %v626
    %v634 = vsel %vm365, %v628, %v630
    %v643 = vsel %vm365, %v618, 0.0
    %v644 = vsel %vm365, %v622, 0.0
    %v645 = vsel %vm365, %v626, 0.0
    %v646 = vsel %vm365, %v630, 0.0
    %s647 = scalar_lea.vmem %s5, 6
    %v648 = vld [vmem:[%s647] ss:$8 sm:$0x3]
    %v650 = vperm.slane %v648, 0
    %v651 = vperm.slane %v648, 1
    %v654 = vmul.f32 %v611, %v650
    %v655 = vmul.f32 %v599, %v651
    %v656 = vmul.f32 %v612, %v650
    %v657 = vmul.f32 %v600, %v651
    %v658 = vmul.f32 %v613, %v650
    %v659 = vmul.f32 %v601, %v651
    %v660 = vmul.f32 %v614, %v650
    %v661 = vmul.f32 %v602, %v651
    %v662 = vadd.f32 %v567, %v654
    %v663 = vadd.f32 %v568, %v655
    %v664 = vadd.f32 %v569, %v656
    %v665 = vadd.f32 %v570, %v657
    %v666 = vadd.f32 %v571, %v658
    %v667 = vadd.f32 %v572, %v659
    %v668 = vadd.f32 %v573, %v660
    %v669 = vadd.f32 %v574, %v661
    %s670 = scalar_lea.vmem %s5, 7
    %v671 = vld [vmem:[%s670] ss:$8 sm:$0x3]
    %v673 = vperm.slane %v671, 0
    %v674 = vperm.slane %v671, 1
    %v677 = vmul.f32 %v300, %v673
    %v678 = vmul.f32 %v301, %v674
    %v679 = vmul.f32 %v302, %v673
    %v680 = vmul.f32 %v303, %v674
    %v681 = vmul.f32 %v304, %v673
    %v682 = vmul.f32 %v305, %v674
    %v683 = vmul.f32 %v306, %v673
    %v684 = vmul.f32 %v307, %v674
    %v685 = vadd.f32 %v662, %v677
    %v686 = vadd.f32 %v663, %v678
    %v687 = vadd.f32 %v664, %v679
    %v688 = vadd.f32 %v665, %v680
    %v689 = vadd.f32 %v666, %v681
    %v690 = vadd.f32 %v667, %v682
    %v691 = vadd.f32 %v668, %v683
    %v692 = vadd.f32 %v669, %v684
    %s693 = scalar_lea.vmem %s5, 16
    %v694 = vld [vmem:[%s693] ss:$8 sm:$0x3]
    %v696 = vperm.slane %v694, 0
    %v697 = vperm.slane %v694, 1
    %v700 = vmul.f32 %v631, %v696
    %v701 = vmul.f32 %v643, %v697
    %v702 = vmul.f32 %v632, %v696
    %v703 = vmul.f32 %v644, %v697
    %v704 = vmul.f32 %v633, %v696
    %v705 = vmul.f32 %v645, %v697
    %v706 = vmul.f32 %v634, %v696
    %v707 = vmul.f32 %v646, %v697
    %v708 = vadd.f32 %v685, %v700
    %v709 = vadd.f32 %v686, %v701
    %v710 = vadd.f32 %v687, %v702
    %v711 = vadd.f32 %v688, %v703
    %v712 = vadd.f32 %v689, %v704
    %v713 = vadd.f32 %v690, %v705
    %v714 = vadd.f32 %v691, %v706
    %v715 = vadd.f32 %v692, %v707
    %v716 = vld [vmem:[#allocation10] ss:$8 sm:$0x3]
    %v718 = vperm.slane %v716, 0
    %v719 = vperm.slane %v716, 1
    %v722 = vadd.f32 %v708, %v718
    %v723 = vadd.f32 %v709, %v719
    %v724 = vadd.f32 %v710, %v718
    %v725 = vadd.f32 %v711, %v719
    %v726 = vadd.f32 %v712, %v718
    %v727 = vadd.f32 %v713, %v719
    %v728 = vadd.f32 %v714, %v718
    %v729 = vadd.f32 %v715, %v719
    %v730 = vpack.c.bf16 %v724, %v722
    %v731 = vpack.c.bf16 %v725, %v723
    %v732 = vpack.c.bf16 %v728, %v726
    %v733 = vpack.c.bf16 %v729, %v727
    %v734 = vld [vmem:[%s9] sm:$0xff]
    %v735 = vld [vmem:[%s9 + $0x8] sm:$0xff]
    %v736 = vld [vmem:[%s9 + $0x10] sm:$0xff]
    %v737 = vld [vmem:[%s9 + $0x18] sm:$0xff]
    %v738 = vld [vmem:[%s9 + $0x20] sm:$0xff]
    %v739 = vld [vmem:[%s9 + $0x28] sm:$0xff]
    %v740 = vld [vmem:[%s9 + $0x30] sm:$0xff]
    %v741 = vld [vmem:[%s9 + $0x38] sm:$0xff]
    %v742 = vld [vmem:[%s9 + $0x40] sm:$0xff]
    %v743 = vld [vmem:[%s9 + $0x48] sm:$0xff]
    %v744 = vld [vmem:[%s9 + $0x50] sm:$0xff]
    %v745 = vld [vmem:[%s9 + $0x58] sm:$0xff]
    %v746 = vld [vmem:[%s9 + $0x60] sm:$0xff]
    %v747 = vld [vmem:[%s9 + $0x68] sm:$0xff]
    %v748 = vld [vmem:[%s9 + $0x70] sm:$0xff]
    %v749 = vld [vmem:[%s9 + $0x78] sm:$0xff]
    %v750 = vld [vmem:[%s9 + $0x80] sm:$0xff]
    %v751 = vld [vmem:[%s9 + $0x88] sm:$0xff]
    %v752 = vld [vmem:[%s9 + $0x90] sm:$0xff]
    %v753 = vld [vmem:[%s9 + $0x98] sm:$0xff]
    %v754 = vld [vmem:[%s9 + $0xa0] sm:$0xff]
    %v755 = vld [vmem:[%s9 + $0xa8] sm:$0xff]
    %v756 = vld [vmem:[%s9 + $0xb0] sm:$0xff]
    %v757 = vld [vmem:[%s9 + $0xb8] sm:$0xff]
    %v758 = vld [vmem:[%s9 + $0xc0] sm:$0xff]
    %v759 = vld [vmem:[%s9 + $0xc8] sm:$0xff]
    %v760 = vld [vmem:[%s9 + $0xd0] sm:$0xff]
    %v761 = vld [vmem:[%s9 + $0xd8] sm:$0xff]
    %v762 = vld [vmem:[%s9 + $0xe0] sm:$0xff]
    %v763 = vld [vmem:[%s9 + $0xe8] sm:$0xff]
    %v764 = vld [vmem:[%s9 + $0xf0] sm:$0xff]
    %v765 = vld [vmem:[%s9 + $0xf8] sm:$0xff]
    %s766 = scalar_lea.vmem [#allocation10], 1
    %v767 = vld [vmem:[%s766] ss:$8 sm:$0x3]
    %v769 = vperm.slane %v767, 0
    %v770 = vperm.slane %v767, 1
    %v805 = vunpack.c.l.b16 %v734
    %v806 = vunpack.c.h.b16 %v734
    %v807 = vunpack.c.l.b16 %v735
    %v808 = vunpack.c.h.b16 %v735
    %v809 = vunpack.c.l.b16 %v736
    %v810 = vunpack.c.h.b16 %v736
    %v811 = vunpack.c.l.b16 %v737
    %v812 = vunpack.c.h.b16 %v737
    %v813 = vunpack.c.l.b16 %v738
    %v814 = vunpack.c.h.b16 %v738
    %v815 = vunpack.c.l.b16 %v739
    %v816 = vunpack.c.h.b16 %v739
    %v817 = vunpack.c.l.b16 %v740
    %v818 = vunpack.c.h.b16 %v740
    %v819 = vunpack.c.l.b16 %v741
    %v820 = vunpack.c.h.b16 %v741
    %v821 = vunpack.c.l.b16 %v742
    %v822 = vunpack.c.h.b16 %v742
    %v823 = vunpack.c.l.b16 %v743
    %v824 = vunpack.c.h.b16 %v743
    %v825 = vunpack.c.l.b16 %v744
    %v826 = vunpack.c.h.b16 %v744
    %v827 = vunpack.c.l.b16 %v745
    %v828 = vunpack.c.h.b16 %v745
    %v829 = vunpack.c.l.b16 %v746
    %v830 = vunpack.c.h.b16 %v746
    %v831 = vunpack.c.l.b16 %v747
    %v832 = vunpack.c.h.b16 %v747
    %v833 = vunpack.c.l.b16 %v748
    %v834 = vunpack.c.h.b16 %v748
    %v835 = vunpack.c.l.b16 %v749
    %v836 = vunpack.c.h.b16 %v749
    %v837 = vunpack.c.l.b16 %v750
    %v838 = vunpack.c.h.b16 %v750
    %v839 = vunpack.c.l.b16 %v751
    %v840 = vunpack.c.h.b16 %v751
    %v841 = vunpack.c.l.b16 %v752
    %v842 = vunpack.c.h.b16 %v752
    %v843 = vunpack.c.l.b16 %v753
    %v844 = vunpack.c.h.b16 %v753
    %v845 = vunpack.c.l.b16 %v754
    %v846 = vunpack.c.h.b16 %v754
    %v847 = vunpack.c.l.b16 %v755
    %v848 = vunpack.c.h.b16 %v755
    %v849 = vunpack.c.l.b16 %v756
    %v850 = vunpack.c.h.b16 %v756
    %v851 = vunpack.c.l.b16 %v757
    %v852 = vunpack.c.h.b16 %v757
    %v853 = vunpack.c.l.b16 %v758
    %v854 = vunpack.c.h.b16 %v758
    %v855 = vunpack.c.l.b16 %v759
    %v856 = vunpack.c.h.b16 %v759
    %v857 = vunpack.c.l.b16 %v760
    %v858 = vunpack.c.h.b16 %v760
    %v859 = vunpack.c.l.b16 %v761
    %v860 = vunpack.c.h.b16 %v761
    %v861 = vunpack.c.l.b16 %v762
    %v862 = vunpack.c.h.b16 %v762
    %v863 = vunpack.c.l.b16 %v763
    %v864 = vunpack.c.h.b16 %v763
    %v865 = vunpack.c.l.b16 %v764
    %v866 = vunpack.c.h.b16 %v764
    %v867 = vunpack.c.l.b16 %v765
    %v868 = vunpack.c.h.b16 %v765
    %v869 = vpack.c.b16 %v807, %v805
    %v870 = vpack.c.b16 %v808, %v806
    %v871 = vpack.c.b16 %v811, %v809
    %v872 = vpack.c.b16 %v812, %v810
    %v873 = vpack.c.b16 %v815, %v813
    %v874 = vpack.c.b16 %v816, %v814
    %v875 = vpack.c.b16 %v819, %v817
    %v876 = vpack.c.b16 %v820, %v818
    %v877 = vpack.c.b16 %v823, %v821
    %v878 = vpack.c.b16 %v824, %v822
    %v879 = vpack.c.b16 %v827, %v825
    %v880 = vpack.c.b16 %v828, %v826
    %v881 = vpack.c.b16 %v831, %v829
    %v882 = vpack.c.b16 %v832, %v830
    %v883 = vpack.c.b16 %v835, %v833
    %v884 = vpack.c.b16 %v836, %v834
    %v885 = vpack.c.b16 %v839, %v837
    %v886 = vpack.c.b16 %v840, %v838
    %v887 = vpack.c.b16 %v843, %v841
    %v888 = vpack.c.b16 %v844, %v842
    %v889 = vpack.c.b16 %v847, %v845
    %v890 = vpack.c.b16 %v848, %v846
    %v891 = vpack.c.b16 %v851, %v849
    %v892 = vpack.c.b16 %v852, %v850
    %v893 = vpack.c.b16 %v855, %v853
    %v894 = vpack.c.b16 %v856, %v854
    %v895 = vpack.c.b16 %v859, %v857
    %v896 = vpack.c.b16 %v860, %v858
    %v897 = vpack.c.b16 %v863, %v861
    %v898 = vpack.c.b16 %v864, %v862
    %v899 = vpack.c.b16 %v867, %v865
    %v900 = vpack.c.b16 %v868, %v866
    %933 = vmatpush.bf16.msra.mxu0 %v883
    %934 = vmatpush.bf16.msra.mxu0 %v881
    %935 = vmatpush.bf16.msra.mxu0 %v879
    %936 = vmatpush.bf16.msra.mxu0 %v877
    %937 = vmatpush.bf16.msra.mxu0 %v875
    %938 = vmatpush.bf16.msra.mxu0 %v873
    %939 = vmatpush.bf16.msra.mxu0 %v871
    %940 = vmatpush.bf16.msra.mxu0 %v869
    %941 = vmatmul.bf16.gmra.mxu0 %v730
    %v942 = vpop.f32.mrf.mxu0
    %v943 = vadd.f32 %v769, %v942
    %v944 = vpop.f32.mrf.mxu0
    %v945 = vadd.f32 %v769, %v944
    %946 = vmatmul.bf16.gmra.mxu0 %v732
    %v947 = vpop.f32.mrf.mxu0
    %v948 = vadd.f32 %v769, %v947
    %v949 = vpop.f32.mrf.mxu0
    %v950 = vadd.f32 %v769, %v949
    %951 = vdwg.mxu0
    %952 = vmatpush.bf16.msra.mxu0 %v899
    %953 = vmatpush.bf16.msra.mxu0 %v897
    %954 = vmatpush.bf16.msra.mxu0 %v895
    %955 = vmatpush.bf16.msra.mxu0 %v893
    %956 = vmatpush.bf16.msra.mxu0 %v891
    %957 = vmatpush.bf16.msra.mxu0 %v889
    %958 = vmatpush.bf16.msra.mxu0 %v887
    %959 = vmatpush.bf16.msra.mxu0 %v885
    %960 = vmatmul.bf16.gmra.mxu0 %v731
    %v961 = vpop.f32.mrf.mxu0
    %v962 = vadd.f32 %v943, %v961
    %v963 = vpop.f32.mrf.mxu0
    %v964 = vadd.f32 %v945, %v963
    %965 = vmatmul.bf16.gmra.mxu0 %v733
    %v966 = vpop.f32.mrf.mxu0
    %v967 = vadd.f32 %v948, %v966
    %v968 = vpop.f32.mrf.mxu0
    %v969 = vadd.f32 %v950, %v968
    %970 = vdwg.mxu0
    %971 = vmatpush.bf16.msra.mxu0 %v884
    %972 = vmatpush.bf16.msra.mxu0 %v882
    %973 = vmatpush.bf16.msra.mxu0 %v880
    %974 = vmatpush.bf16.msra.mxu0 %v878
    %975 = vmatpush.bf16.msra.mxu0 %v876
    %976 = vmatpush.bf16.msra.mxu0 %v874
    %977 = vmatpush.bf16.msra.mxu0 %v872
    %978 = vmatpush.bf16.msra.mxu0 %v870
    %979 = vmatmul.bf16.gmra.mxu0 %v730
    %v980 = vpop.f32.mrf.mxu0
    %v981 = vadd.f32 %v770, %v980
    %v982 = vpop.f32.mrf.mxu0
    %v983 = vadd.f32 %v770, %v982
    %984 = vmatmul.bf16.gmra.mxu0 %v732
    %v985 = vpop.f32.mrf.mxu0
    %v986 = vadd.f32 %v770, %v985
    %v987 = vpop.f32.mrf.mxu0
    %v988 = vadd.f32 %v770, %v987
    %989 = vdwg.mxu0
    %990 = vmatpush.bf16.msra.mxu0 %v900
    %991 = vmatpush.bf16.msra.mxu0 %v898
    %992 = vmatpush.bf16.msra.mxu0 %v896
    %993 = vmatpush.bf16.msra.mxu0 %v894
    %994 = vmatpush.bf16.msra.mxu0 %v892
    %995 = vmatpush.bf16.msra.mxu0 %v890
    %996 = vmatpush.bf16.msra.mxu0 %v888
    %997 = vmatpush.bf16.msra.mxu0 %v886
    %998 = vmatmul.bf16.gmra.mxu0 %v731
    %v999 = vpop.f32.mrf.mxu0
    %v1000 = vadd.f32 %v981, %v999
    %v1001 = vpop.f32.mrf.mxu0
    %v1002 = vadd.f32 %v983, %v1001
    %1003 = vmatmul.bf16.gmra.mxu0 %v733
    %v1004 = vpop.f32.mrf.mxu0
    %v1005 = vadd.f32 %v986, %v1004
    %v1006 = vpop.f32.mrf.mxu0
    %v1007 = vadd.f32 %v988, %v1006
    %1008 = vdwg.mxu0
    %v1009 = vmax.f32 %v962, 0.0
    %v1010 = vmax.f32 %v1000, 0.0
    %v1011 = vmax.f32 %v964, 0.0
    %v1012 = vmax.f32 %v1002, 0.0
    %v1013 = vmax.f32 %v967, 0.0
    %v1014 = vmax.f32 %v1005, 0.0
    %v1015 = vmax.f32 %v969, 0.0
    %v1016 = vmax.f32 %v1007, 0.0
    %v1025 = vrot.slane %v1009, 7
    %v1026 = vrot.slane %v1010, 7
    %v1027 = vrot.slane %v1011, 7
    %v1028 = vsel %vm202, %v1025, %v1027
    %v1029 = vrot.slane %v1012, 7
    %v1030 = vsel %vm202, %v1026, %v1029
    %v1031 = vrot.slane %v1013, 7
    %v1032 = vsel %vm202, %v1027, %v1031
    %v1033 = vrot.slane %v1014, 7
    %v1034 = vsel %vm202, %v1029, %v1033
    %v1035 = vrot.slane %v1015, 7
    %v1036 = vsel %vm202, %v1031, %v1035
    %v1037 = vrot.slane %v1016, 7
    %v1038 = vsel %vm202, %v1033, %v1037
    %v1047 = vsel %vm202, 0.0, %v1025
    %v1048 = vsel %vm202, 0.0, %v1026
    %v1049 = vmul.f32 %v1047, %v230
    %v1050 = vmul.f32 %v1048, %v230
    %v1051 = vmul.f32 %v1028, %v235
    %v1052 = vmul.f32 %v1030, %v235
    %v1053 = vmul.f32 %v1032, %v240
    %v1054 = vmul.f32 %v1034, %v240
    %v1055 = vmul.f32 %v1036, %v245
    %v1056 = vmul.f32 %v1038, %v245
    %v1057 = vrot.slane %v1009, 1
    %v1058 = vrot.slane %v1011, 1
    %v1059 = vsel %vm255, %v1057, %v1058
    %v1060 = vrot.slane %v1010, 1
    %v1061 = vrot.slane %v1012, 1
    %v1062 = vsel %vm255, %v1060, %v1061
    %v1063 = vrot.slane %v1013, 1
    %v1064 = vsel %vm255, %v1058, %v1063
    %v1065 = vrot.slane %v1014, 1
    %v1066 = vsel %vm255, %v1061, %v1065
    %v1067 = vrot.slane %v1015, 1
    %v1068 = vsel %vm255, %v1063, %v1067
    %v1069 = vrot.slane %v1016, 1
    %v1070 = vsel %vm255, %v1065, %v1069
    %v1079 = vsel %vm255, %v1067, 0.0
    %v1080 = vsel %vm255, %v1069, 0.0
    %v1081 = vmul.f32 %v1059, %v283
    %v1082 = vmul.f32 %v1062, %v283
    %v1083 = vmul.f32 %v1064, %v288
    %v1084 = vmul.f32 %v1066, %v288
    %v1085 = vmul.f32 %v1068, %v293
    %v1086 = vmul.f32 %v1070, %v293
    %v1087 = vmul.f32 %v1079, %v298
    %v1088 = vmul.f32 %v1080, %v298
    %1097 = vrot.lane.b32.xlu0 %v1049, 16
    %v1098 = vpop.permute.xlu0 %1097
    %1099 = vrot.lane.b32.xlu0 %v1050, 16
    %v1100 = vpop.permute.xlu0 %1099
    %1101 = vrot.lane.b32.xlu0 %v1051, 16
    %v1102 = vpop.permute.xlu0 %1101
    %1103 = vrot.lane.b32.xlu0 %v1052, 16
    %v1104 = vpop.permute.xlu0 %1103
    %1105 = vrot.lane.b32.xlu0 %v1053, 16
    %v1106 = vpop.permute.xlu0 %1105
    %1107 = vrot.lane.b32.xlu0 %v1054, 16
    %v1108 = vpop.permute.xlu0 %1107
    %1109 = vrot.lane.b32.xlu0 %v1055, 16
    %v1110 = vpop.permute.xlu0 %1109
    %1111 = vrot.lane.b32.xlu0 %v1056, 16
    %v1112 = vpop.permute.xlu0 %1111
    %v1113 = vsel %vm332, %v1098, %v1100
    %v1114 = vsel %vm332, %v1102, %v1104
    %v1115 = vsel %vm332, %v1106, %v1108
    %v1116 = vsel %vm332, %v1110, %v1112
    %v1125 = vsel %vm332, 0.0, %v1098
    %v1126 = vsel %vm332, 0.0, %v1102
    %v1127 = vsel %vm332, 0.0, %v1106
    %v1128 = vsel %vm332, 0.0, %v1110
    %1129 = vrot.lane.b32.xlu0 %v1049, 112
    %v1130 = vpop.permute.xlu0 %1129
    %1131 = vrot.lane.b32.xlu0 %v1050, 112
    %v1132 = vpop.permute.xlu0 %1131
    %1133 = vrot.lane.b32.xlu0 %v1051, 112
    %v1134 = vpop.permute.xlu0 %1133
    %1135 = vrot.lane.b32.xlu0 %v1052, 112
    %v1136 = vpop.permute.xlu0 %1135
    %1137 = vrot.lane.b32.xlu0 %v1053, 112
    %v1138 = vpop.permute.xlu0 %1137
    %1139 = vrot.lane.b32.xlu0 %v1054, 112
    %v1140 = vpop.permute.xlu0 %1139
    %1141 = vrot.lane.b32.xlu0 %v1055, 112
    %v1142 = vpop.permute.xlu0 %1141
    %1143 = vrot.lane.b32.xlu0 %v1056, 112
    %v1144 = vpop.permute.xlu0 %1143
    %v1145 = vsel %vm365, %v1130, %v1132
    %v1146 = vsel %vm365, %v1134, %v1136
    %v1147 = vsel %vm365, %v1138, %v1140
    %v1148 = vsel %vm365, %v1142, %v1144
    %v1157 = vsel %vm365, %v1132, 0.0
    %v1158 = vsel %vm365, %v1136, 0.0
    %v1159 = vsel %vm365, %v1140, 0.0
    %v1160 = vsel %vm365, %v1144, 0.0
    %v1161 = vld [vmem:[%s6] ss:$8 sm:$0x3]
    %v1163 = vperm.slane %v1161, 0
    %v1164 = vperm.slane %v1161, 1
    %v1167 = vmul.f32 %v1125, %v1163
    %v1168 = vmul.f32 %v1113, %v1164
    %v1169 = vmul.f32 %v1126, %v1163
    %v1170 = vmul.f32 %v1114, %v1164
    %v1171 = vmul.f32 %v1127, %v1163
    %v1172 = vmul.f32 %v1115, %v1164
    %v1173 = vmul.f32 %v1128, %v1163
    %v1174 = vmul.f32 %v1116, %v1164
    %s1175 = scalar_lea.vmem %s6, 1
    %v1176 = vld [vmem:[%s1175] ss:$8 sm:$0x3]
    %v1178 = vperm.slane %v1176, 0
    %v1179 = vperm.slane %v1176, 1
    %v1182 = vmul.f32 %v1049, %v1178
    %v1183 = vmul.f32 %v1050, %v1179
    %v1184 = vmul.f32 %v1051, %v1178
    %v1185 = vmul.f32 %v1052, %v1179
    %v1186 = vmul.f32 %v1053, %v1178
    %v1187 = vmul.f32 %v1054, %v1179
    %v1188 = vmul.f32 %v1055, %v1178
    %v1189 = vmul.f32 %v1056, %v1179
    %v1190 = vadd.f32 %v1167, %v1182
    %v1191 = vadd.f32 %v1168, %v1183
    %v1192 = vadd.f32 %v1169, %v1184
    %v1193 = vadd.f32 %v1170, %v1185
    %v1194 = vadd.f32 %v1171, %v1186
    %v1195 = vadd.f32 %v1172, %v1187
    %v1196 = vadd.f32 %v1173, %v1188
    %v1197 = vadd.f32 %v1174, %v1189
    %s1198 = scalar_lea.vmem %s6, 2
    %v1199 = vld [vmem:[%s1198] ss:$8 sm:$0x3]
    %v1201 = vperm.slane %v1199, 0
    %v1202 = vperm.slane %v1199, 1
    %v1205 = vmul.f32 %v1145, %v1201
    %v1206 = vmul.f32 %v1157, %v1202
    %v1207 = vmul.f32 %v1146, %v1201
    %v1208 = vmul.f32 %v1158, %v1202
    %v1209 = vmul.f32 %v1147, %v1201
    %v1210 = vmul.f32 %v1159, %v1202
    %v1211 = vmul.f32 %v1148, %v1201
    %v1212 = vmul.f32 %v1160, %v1202
    %v1213 = vadd.f32 %v1190, %v1205
    %v1214 = vadd.f32 %v1191, %v1206
    %v1215 = vadd.f32 %v1192, %v1207
    %v1216 = vadd.f32 %v1193, %v1208
    %v1217 = vadd.f32 %v1194, %v1209
    %v1218 = vadd.f32 %v1195, %v1210
    %v1219 = vadd.f32 %v1196, %v1211
    %v1220 = vadd.f32 %v1197, %v1212
    %1221 = vrot.lane.b32.xlu0 %v1009, 16
    %v1222 = vpop.permute.xlu0 %1221
    %1223 = vrot.lane.b32.xlu0 %v1010, 16
    %v1224 = vpop.permute.xlu0 %1223
    %1225 = vrot.lane.b32.xlu0 %v1011, 16
    %v1226 = vpop.permute.xlu0 %1225
    %1227 = vrot.lane.b32.xlu0 %v1012, 16
    %v1228 = vpop.permute.xlu0 %1227
    %1229 = vrot.lane.b32.xlu0 %v1013, 16
    %v1230 = vpop.permute.xlu0 %1229
    %1231 = vrot.lane.b32.xlu0 %v1014, 16
    %v1232 = vpop.permute.xlu0 %1231
    %1233 = vrot.lane.b32.xlu0 %v1015, 16
    %v1234 = vpop.permute.xlu0 %1233
    %1235 = vrot.lane.b32.xlu0 %v1016, 16
    %v1236 = vpop.permute.xlu0 %1235
    %v1237 = vsel %vm332, %v1222, %v1224
    %v1238 = vsel %vm332, %v1226, %v1228
    %v1239 = vsel %vm332, %v1230, %v1232
    %v1240 = vsel %vm332, %v1234, %v1236
    %v1249 = vsel %vm332, 0.0, %v1222
    %v1250 = vsel %vm332, 0.0, %v1226
    %v1251 = vsel %vm332, 0.0, %v1230
    %v1252 = vsel %vm332, 0.0, %v1234
    %1253 = vrot.lane.b32.xlu0 %v1009, 112
    %v1254 = vpop.permute.xlu0 %1253
    %1255 = vrot.lane.b32.xlu0 %v1010, 112
    %v1256 = vpop.permute.xlu0 %1255
    %1257 = vrot.lane.b32.xlu0 %v1011, 112
    %v1258 = vpop.permute.xlu0 %1257
    %1259 = vrot.lane.b32.xlu0 %v1012, 112
    %v1260 = vpop.permute.xlu0 %1259
    %1261 = vrot.lane.b32.xlu0 %v1013, 112
    %v1262 = vpop.permute.xlu0 %1261
    %1263 = vrot.lane.b32.xlu0 %v1014, 112
    %v1264 = vpop.permute.xlu0 %1263
    %1265 = vrot.lane.b32.xlu0 %v1015, 112
    %v1266 = vpop.permute.xlu0 %1265
    %1267 = vrot.lane.b32.xlu0 %v1016, 112
    %v1268 = vpop.permute.xlu0 %1267
    %v1269 = vsel %vm365, %v1254, %v1256
    %v1270 = vsel %vm365, %v1258, %v1260
    %v1271 = vsel %vm365, %v1262, %v1264
    %v1272 = vsel %vm365, %v1266, %v1268
    %v1281 = vsel %vm365, %v1256, 0.0
    %v1282 = vsel %vm365, %v1260, 0.0
    %v1283 = vsel %vm365, %v1264, 0.0
    %v1284 = vsel %vm365, %v1268, 0.0
    %s1285 = scalar_lea.vmem %s6, 3
    %v1286 = vld [vmem:[%s1285] ss:$8 sm:$0x3]
    %v1288 = vperm.slane %v1286, 0
    %v1289 = vperm.slane %v1286, 1
    %v1292 = vmul.f32 %v1249, %v1288
    %v1293 = vmul.f32 %v1237, %v1289
    %v1294 = vmul.f32 %v1250, %v1288
    %v1295 = vmul.f32 %v1238, %v1289
    %v1296 = vmul.f32 %v1251, %v1288
    %v1297 = vmul.f32 %v1239, %v1289
    %v1298 = vmul.f32 %v1252, %v1288
    %v1299 = vmul.f32 %v1240, %v1289
    %v1300 = vadd.f32 %v1213, %v1292
    %v1301 = vadd.f32 %v1214, %v1293
    %v1302 = vadd.f32 %v1215, %v1294
    %v1303 = vadd.f32 %v1216, %v1295
    %v1304 = vadd.f32 %v1217, %v1296
    %v1305 = vadd.f32 %v1218, %v1297
    %v1306 = vadd.f32 %v1219, %v1298
    %v1307 = vadd.f32 %v1220, %v1299
    %s1308 = scalar_lea.vmem %s6, 4
    %v1309 = vld [vmem:[%s1308] ss:$8 sm:$0x3]
    %v1311 = vperm.slane %v1309, 0
    %v1312 = vperm.slane %v1309, 1
    %v1315 = vmul.f32 %v1009, %v1311
    %v1316 = vmul.f32 %v1010, %v1312
    %v1317 = vmul.f32 %v1011, %v1311
    %v1318 = vmul.f32 %v1012, %v1312
    %v1319 = vmul.f32 %v1013, %v1311
    %v1320 = vmul.f32 %v1014, %v1312
    %v1321 = vmul.f32 %v1015, %v1311
    %v1322 = vmul.f32 %v1016, %v1312
    %v1323 = vadd.f32 %v1300, %v1315
    %v1324 = vadd.f32 %v1301, %v1316
    %v1325 = vadd.f32 %v1302, %v1317
    %v1326 = vadd.f32 %v1303, %v1318
    %v1327 = vadd.f32 %v1304, %v1319
    %v1328 = vadd.f32 %v1305, %v1320
    %v1329 = vadd.f32 %v1306, %v1321
    %v1330 = vadd.f32 %v1307, %v1322
    %s1331 = scalar_lea.vmem %s6, 5
    %v1332 = vld [vmem:[%s1331] ss:$8 sm:$0x3]
    %v1334 = vperm.slane %v1332, 0
    %v1335 = vperm.slane %v1332, 1
    %v1338 = vmul.f32 %v1269, %v1334
    %v1339 = vmul.f32 %v1281, %v1335
    %v1340 = vmul.f32 %v1270, %v1334
    %v1341 = vmul.f32 %v1282, %v1335
    %v1342 = vmul.f32 %v1271, %v1334
    %v1343 = vmul.f32 %v1283, %v1335
    %v1344 = vmul.f32 %v1272, %v1334
    %v1345 = vmul.f32 %v1284, %v1335
    %v1346 = vadd.f32 %v1323, %v1338
    %v1347 = vadd.f32 %v1324, %v1339
    %v1348 = vadd.f32 %v1325, %v1340
    %v1349 = vadd.f32 %v1326, %v1341
    %v1350 = vadd.f32 %v1327, %v1342
    %v1351 = vadd.f32 %v1328, %v1343
    %v1352 = vadd.f32 %v1329, %v1344
    %v1353 = vadd.f32 %v1330, %v1345
    %1362 = vrot.lane.b32.xlu0 %v1081, 16
    %v1363 = vpop.permute.xlu0 %1362
    %1364 = vrot.lane.b32.xlu0 %v1082, 16
    %v1365 = vpop.permute.xlu0 %1364
    %1366 = vrot.lane.b32.xlu0 %v1083, 16
    %v1367 = vpop.permute.xlu0 %1366
    %1368 = vrot.lane.b32.xlu0 %v1084, 16
    %v1369 = vpop.permute.xlu0 %1368
    %1370 = vrot.lane.b32.xlu0 %v1085, 16
    %v1371 = vpop.permute.xlu0 %1370
    %1372 = vrot.lane.b32.xlu0 %v1086, 16
    %v1373 = vpop.permute.xlu0 %1372
    %1374 = vrot.lane.b32.xlu0 %v1087, 16
    %v1375 = vpop.permute.xlu0 %1374
    %1376 = vrot.lane.b32.xlu0 %v1088, 16
    %v1377 = vpop.permute.xlu0 %1376
    %v1378 = vsel %vm332, %v1363, %v1365
    %v1379 = vsel %vm332, %v1367, %v1369
    %v1380 = vsel %vm332, %v1371, %v1373
    %v1381 = vsel %vm332, %v1375, %v1377
    %v1390 = vsel %vm332, 0.0, %v1363
    %v1391 = vsel %vm332, 0.0, %v1367
    %v1392 = vsel %vm332, 0.0, %v1371
    %v1393 = vsel %vm332, 0.0, %v1375
    %1394 = vrot.lane.b32.xlu0 %v1081, 112
    %v1395 = vpop.permute.xlu0 %1394
    %1396 = vrot.lane.b32.xlu0 %v1082, 112
    %v1397 = vpop.permute.xlu0 %1396
    %1398 = vrot.lane.b32.xlu0 %v1083, 112
    %v1399 = vpop.permute.xlu0 %1398
    %1400 = vrot.lane.b32.xlu0 %v1084, 112
    %v1401 = vpop.permute.xlu0 %1400
    %1402 = vrot.lane.b32.xlu0 %v1085, 112
    %v1403 = vpop.permute.xlu0 %1402
    %1404 = vrot.lane.b32.xlu0 %v1086, 112
    %v1405 = vpop.permute.xlu0 %1404
    %1406 = vrot.lane.b32.xlu0 %v1087, 112
    %v1407 = vpop.permute.xlu0 %1406
    %1408 = vrot.lane.b32.xlu0 %v1088, 112
    %v1409 = vpop.permute.xlu0 %1408
    %v1410 = vsel %vm365, %v1395, %v1397
    %v1411 = vsel %vm365, %v1399, %v1401
    %v1412 = vsel %vm365, %v1403, %v1405
    %v1413 = vsel %vm365, %v1407, %v1409
    %v1422 = vsel %vm365, %v1397, 0.0
    %v1423 = vsel %vm365, %v1401, 0.0
    %v1424 = vsel %vm365, %v1405, 0.0
    %v1425 = vsel %vm365, %v1409, 0.0
    %s1426 = scalar_lea.vmem %s6, 6
    %v1427 = vld [vmem:[%s1426] ss:$8 sm:$0x3]
    %v1429 = vperm.slane %v1427, 0
    %v1430 = vperm.slane %v1427, 1
    %v1433 = vmul.f32 %v1390, %v1429
    %v1434 = vmul.f32 %v1378, %v1430
    %v1435 = vmul.f32 %v1391, %v1429
    %v1436 = vmul.f32 %v1379, %v1430
    %v1437 = vmul.f32 %v1392, %v1429
    %v1438 = vmul.f32 %v1380, %v1430
    %v1439 = vmul.f32 %v1393, %v1429
    %v1440 = vmul.f32 %v1381, %v1430
    %v1441 = vadd.f32 %v1346, %v1433
    %v1442 = vadd.f32 %v1347, %v1434
    %v1443 = vadd.f32 %v1348, %v1435
    %v1444 = vadd.f32 %v1349, %v1436
    %v1445 = vadd.f32 %v1350, %v1437
    %v1446 = vadd.f32 %v1351, %v1438
    %v1447 = vadd.f32 %v1352, %v1439
    %v1448 = vadd.f32 %v1353, %v1440
    %s1449 = scalar_lea.vmem %s6, 7
    %v1450 = vld [vmem:[%s1449] ss:$8 sm:$0x3]
    %v1452 = vperm.slane %v1450, 0
    %v1453 = vperm.slane %v1450, 1
    %v1456 = vmul.f32 %v1081, %v1452
    %v1457 = vmul.f32 %v1082, %v1453
    %v1458 = vmul.f32 %v1083, %v1452
    %v1459 = vmul.f32 %v1084, %v1453
    %v1460 = vmul.f32 %v1085, %v1452
    %v1461 = vmul.f32 %v1086, %v1453
    %v1462 = vmul.f32 %v1087, %v1452
    %v1463 = vmul.f32 %v1088, %v1453
    %v1464 = vadd.f32 %v1441, %v1456
    %v1465 = vadd.f32 %v1442, %v1457
    %v1466 = vadd.f32 %v1443, %v1458
    %v1467 = vadd.f32 %v1444, %v1459
    %v1468 = vadd.f32 %v1445, %v1460
    %v1469 = vadd.f32 %v1446, %v1461
    %v1470 = vadd.f32 %v1447, %v1462
    %v1471 = vadd.f32 %v1448, %v1463
    %s1472 = scalar_lea.vmem %s6, 16
    %v1473 = vld [vmem:[%s1472] ss:$8 sm:$0x3]
    %v1475 = vperm.slane %v1473, 0
    %v1476 = vperm.slane %v1473, 1
    %v1479 = vmul.f32 %v1410, %v1475
    %v1480 = vmul.f32 %v1422, %v1476
    %v1481 = vmul.f32 %v1411, %v1475
    %v1482 = vmul.f32 %v1423, %v1476
    %v1483 = vmul.f32 %v1412, %v1475
    %v1484 = vmul.f32 %v1424, %v1476
    %v1485 = vmul.f32 %v1413, %v1475
    %v1486 = vmul.f32 %v1425, %v1476
    %v1487 = vadd.f32 %v1464, %v1479
    %v1488 = vadd.f32 %v1465, %v1480
    %v1489 = vadd.f32 %v1466, %v1481
    %v1490 = vadd.f32 %v1467, %v1482
    %v1491 = vadd.f32 %v1468, %v1483
    %v1492 = vadd.f32 %v1469, %v1484
    %v1493 = vadd.f32 %v1470, %v1485
    %v1494 = vadd.f32 %v1471, %v1486
    %s1495 = scalar_lea.vmem [#allocation10], 2
    %v1496 = vld [vmem:[%s1495] ss:$8 sm:$0x3]
    %v1498 = vperm.slane %v1496, 0
    %v1499 = vperm.slane %v1496, 1
    %v1502 = vadd.f32 %v1487, %v1498
    %v1503 = vadd.f32 %v1488, %v1499
    %v1504 = vadd.f32 %v1489, %v1498
    %v1505 = vadd.f32 %v1490, %v1499
    %v1506 = vadd.f32 %v1491, %v1498
    %v1507 = vadd.f32 %v1492, %v1499
    %v1508 = vadd.f32 %v1493, %v1498
    %v1509 = vadd.f32 %v1494, %v1499
    %v1510 = vpack.c.bf16 %v1504, %v1502
    %v1511 = vpack.c.bf16 %v1505, %v1503
    %v1512 = vpack.c.bf16 %v1508, %v1506
    %v1513 = vpack.c.bf16 %v1509, %v1507
    %v1514 = vld [vmem:[%s10] sm:$0xff]
    %v1515 = vld [vmem:[%s10 + $0x8] sm:$0xff]
    %v1516 = vld [vmem:[%s10 + $0x10] sm:$0xff]
    %v1517 = vld [vmem:[%s10 + $0x18] sm:$0xff]
    %v1518 = vld [vmem:[%s10 + $0x20] sm:$0xff]
    %v1519 = vld [vmem:[%s10 + $0x28] sm:$0xff]
    %v1520 = vld [vmem:[%s10 + $0x30] sm:$0xff]
    %v1521 = vld [vmem:[%s10 + $0x38] sm:$0xff]
    %v1522 = vld [vmem:[%s10 + $0x40] sm:$0xff]
    %v1523 = vld [vmem:[%s10 + $0x48] sm:$0xff]
    %v1524 = vld [vmem:[%s10 + $0x50] sm:$0xff]
    %v1525 = vld [vmem:[%s10 + $0x58] sm:$0xff]
    %v1526 = vld [vmem:[%s10 + $0x60] sm:$0xff]
    %v1527 = vld [vmem:[%s10 + $0x68] sm:$0xff]
    %v1528 = vld [vmem:[%s10 + $0x70] sm:$0xff]
    %v1529 = vld [vmem:[%s10 + $0x78] sm:$0xff]
    %v1530 = vld [vmem:[%s10 + $0x80] sm:$0xff]
    %v1531 = vld [vmem:[%s10 + $0x88] sm:$0xff]
    %v1532 = vld [vmem:[%s10 + $0x90] sm:$0xff]
    %v1533 = vld [vmem:[%s10 + $0x98] sm:$0xff]
    %v1534 = vld [vmem:[%s10 + $0xa0] sm:$0xff]
    %v1535 = vld [vmem:[%s10 + $0xa8] sm:$0xff]
    %v1536 = vld [vmem:[%s10 + $0xb0] sm:$0xff]
    %v1537 = vld [vmem:[%s10 + $0xb8] sm:$0xff]
    %v1538 = vld [vmem:[%s10 + $0xc0] sm:$0xff]
    %v1539 = vld [vmem:[%s10 + $0xc8] sm:$0xff]
    %v1540 = vld [vmem:[%s10 + $0xd0] sm:$0xff]
    %v1541 = vld [vmem:[%s10 + $0xd8] sm:$0xff]
    %v1542 = vld [vmem:[%s10 + $0xe0] sm:$0xff]
    %v1543 = vld [vmem:[%s10 + $0xe8] sm:$0xff]
    %v1544 = vld [vmem:[%s10 + $0xf0] sm:$0xff]
    %v1545 = vld [vmem:[%s10 + $0xf8] sm:$0xff]
    %s1546 = scalar_lea.vmem [#allocation10], 3
    %v1547 = vld [vmem:[%s1546] ss:$8 sm:$0x3]
    %v1549 = vperm.slane %v1547, 0
    %v1550 = vperm.slane %v1547, 1
    %v1585 = vunpack.c.l.b16 %v1514
    %v1586 = vunpack.c.h.b16 %v1514
    %v1587 = vunpack.c.l.b16 %v1515
    %v1588 = vunpack.c.h.b16 %v1515
    %v1589 = vunpack.c.l.b16 %v1516
    %v1590 = vunpack.c.h.b16 %v1516
    %v1591 = vunpack.c.l.b16 %v1517
    %v1592 = vunpack.c.h.b16 %v1517
    %v1593 = vunpack.c.l.b16 %v1518
    %v1594 = vunpack.c.h.b16 %v1518
    %v1595 = vunpack.c.l.b16 %v1519
    %v1596 = vunpack.c.h.b16 %v1519
    %v1597 = vunpack.c.l.b16 %v1520
    %v1598 = vunpack.c.h.b16 %v1520
    %v1599 = vunpack.c.l.b16 %v1521
    %v1600 = vunpack.c.h.b16 %v1521
    %v1601 = vunpack.c.l.b16 %v1522
    %v1602 = vunpack.c.h.b16 %v1522
    %v1603 = vunpack.c.l.b16 %v1523
    %v1604 = vunpack.c.h.b16 %v1523
    %v1605 = vunpack.c.l.b16 %v1524
    %v1606 = vunpack.c.h.b16 %v1524
    %v1607 = vunpack.c.l.b16 %v1525
    %v1608 = vunpack.c.h.b16 %v1525
    %v1609 = vunpack.c.l.b16 %v1526
    %v1610 = vunpack.c.h.b16 %v1526
    %v1611 = vunpack.c.l.b16 %v1527
    %v1612 = vunpack.c.h.b16 %v1527
    %v1613 = vunpack.c.l.b16 %v1528
    %v1614 = vunpack.c.h.b16 %v1528
    %v1615 = vunpack.c.l.b16 %v1529
    %v1616 = vunpack.c.h.b16 %v1529
    %v1617 = vunpack.c.l.b16 %v1530
    %v1618 = vunpack.c.h.b16 %v1530
    %v1619 = vunpack.c.l.b16 %v1531
    %v1620 = vunpack.c.h.b16 %v1531
    %v1621 = vunpack.c.l.b16 %v1532
    %v1622 = vunpack.c.h.b16 %v1532
    %v1623 = vunpack.c.l.b16 %v1533
    %v1624 = vunpack.c.h.b16 %v1533
    %v1625 = vunpack.c.l.b16 %v1534
    %v1626 = vunpack.c.h.b16 %v1534
    %v1627 = vunpack.c.l.b16 %v1535
    %v1628 = vunpack.c.h.b16 %v1535
    %v1629 = vunpack.c.l.b16 %v1536
    %v1630 = vunpack.c.h.b16 %v1536
    %v1631 = vunpack.c.l.b16 %v1537
    %v1632 = vunpack.c.h.b16 %v1537
    %v1633 = vunpack.c.l.b16 %v1538
    %v1634 = vunpack.c.h.b16 %v1538
    %v1635 = vunpack.c.l.b16 %v1539
    %v1636 = vunpack.c.h.b16 %v1539
    %v1637 = vunpack.c.l.b16 %v1540
    %v1638 = vunpack.c.h.b16 %v1540
    %v1639 = vunpack.c.l.b16 %v1541
    %v1640 = vunpack.c.h.b16 %v1541
    %v1641 = vunpack.c.l.b16 %v1542
    %v1642 = vunpack.c.h.b16 %v1542
    %v1643 = vunpack.c.l.b16 %v1543
    %v1644 = vunpack.c.h.b16 %v1543
    %v1645 = vunpack.c.l.b16 %v1544
    %v1646 = vunpack.c.h.b16 %v1544
    %v1647 = vunpack.c.l.b16 %v1545
    %v1648 = vunpack.c.h.b16 %v1545
    %v1649 = vpack.c.b16 %v1587, %v1585
    %v1650 = vpack.c.b16 %v1588, %v1586
    %v1651 = vpack.c.b16 %v1591, %v1589
    %v1652 = vpack.c.b16 %v1592, %v1590
    %v1653 = vpack.c.b16 %v1595, %v1593
    %v1654 = vpack.c.b16 %v1596, %v1594
    %v1655 = vpack.c.b16 %v1599, %v1597
    %v1656 = vpack.c.b16 %v1600, %v1598
    %v1657 = vpack.c.b16 %v1603, %v1601
    %v1658 = vpack.c.b16 %v1604, %v1602
    %v1659 = vpack.c.b16 %v1607, %v1605
    %v1660 = vpack.c.b16 %v1608, %v1606
    %v1661 = vpack.c.b16 %v1611, %v1609
    %v1662 = vpack.c.b16 %v1612, %v1610
    %v1663 = vpack.c.b16 %v1615, %v1613
    %v1664 = vpack.c.b16 %v1616, %v1614
    %v1665 = vpack.c.b16 %v1619, %v1617
    %v1666 = vpack.c.b16 %v1620, %v1618
    %v1667 = vpack.c.b16 %v1623, %v1621
    %v1668 = vpack.c.b16 %v1624, %v1622
    %v1669 = vpack.c.b16 %v1627, %v1625
    %v1670 = vpack.c.b16 %v1628, %v1626
    %v1671 = vpack.c.b16 %v1631, %v1629
    %v1672 = vpack.c.b16 %v1632, %v1630
    %v1673 = vpack.c.b16 %v1635, %v1633
    %v1674 = vpack.c.b16 %v1636, %v1634
    %v1675 = vpack.c.b16 %v1639, %v1637
    %v1676 = vpack.c.b16 %v1640, %v1638
    %v1677 = vpack.c.b16 %v1643, %v1641
    %v1678 = vpack.c.b16 %v1644, %v1642
    %v1679 = vpack.c.b16 %v1647, %v1645
    %v1680 = vpack.c.b16 %v1648, %v1646
    %1713 = vmatpush.bf16.msra.mxu0 %v1663
    %1714 = vmatpush.bf16.msra.mxu0 %v1661
    %1715 = vmatpush.bf16.msra.mxu0 %v1659
    %1716 = vmatpush.bf16.msra.mxu0 %v1657
    %1717 = vmatpush.bf16.msra.mxu0 %v1655
    %1718 = vmatpush.bf16.msra.mxu0 %v1653
    %1719 = vmatpush.bf16.msra.mxu0 %v1651
    %1720 = vmatpush.bf16.msra.mxu0 %v1649
    %1721 = vmatmul.bf16.gmra.mxu0 %v1510
    %v1722 = vpop.f32.mrf.mxu0
    %v1723 = vadd.f32 %v1549, %v1722
    %v1724 = vpop.f32.mrf.mxu0
    %v1725 = vadd.f32 %v1549, %v1724
    %1726 = vmatmul.bf16.gmra.mxu0 %v1512
    %v1727 = vpop.f32.mrf.mxu0
    %v1728 = vadd.f32 %v1549, %v1727
    %v1729 = vpop.f32.mrf.mxu0
    %v1730 = vadd.f32 %v1549, %v1729
    %1731 = vdwg.mxu0
    %1732 = vmatpush.bf16.msra.mxu0 %v1679
    %1733 = vmatpush.bf16.msra.mxu0 %v1677
    %1734 = vmatpush.bf16.msra.mxu0 %v1675
    %1735 = vmatpush.bf16.msra.mxu0 %v1673
    %1736 = vmatpush.bf16.msra.mxu0 %v1671
    %1737 = vmatpush.bf16.msra.mxu0 %v1669
    %1738 = vmatpush.bf16.msra.mxu0 %v1667
    %1739 = vmatpush.bf16.msra.mxu0 %v1665
    %1740 = vmatmul.bf16.gmra.mxu0 %v1511
    %v1741 = vpop.f32.mrf.mxu0
    %v1742 = vadd.f32 %v1723, %v1741
    %v1743 = vpop.f32.mrf.mxu0
    %v1744 = vadd.f32 %v1725, %v1743
    %1745 = vmatmul.bf16.gmra.mxu0 %v1513
    %v1746 = vpop.f32.mrf.mxu0
    %v1747 = vadd.f32 %v1728, %v1746
    %v1748 = vpop.f32.mrf.mxu0
    %v1749 = vadd.f32 %v1730, %v1748
    %1750 = vdwg.mxu0
    %1751 = vmatpush.bf16.msra.mxu0 %v1664
    %1752 = vmatpush.bf16.msra.mxu0 %v1662
    %1753 = vmatpush.bf16.msra.mxu0 %v1660
    %1754 = vmatpush.bf16.msra.mxu0 %v1658
    %1755 = vmatpush.bf16.msra.mxu0 %v1656
    %1756 = vmatpush.bf16.msra.mxu0 %v1654
    %1757 = vmatpush.bf16.msra.mxu0 %v1652
    %1758 = vmatpush.bf16.msra.mxu0 %v1650
    %1759 = vmatmul.bf16.gmra.mxu0 %v1510
    %v1760 = vpop.f32.mrf.mxu0
    %v1761 = vadd.f32 %v1550, %v1760
    %v1762 = vpop.f32.mrf.mxu0
    %v1763 = vadd.f32 %v1550, %v1762
    %1764 = vmatmul.bf16.gmra.mxu0 %v1512
    %v1765 = vpop.f32.mrf.mxu0
    %v1766 = vadd.f32 %v1550, %v1765
    %v1767 = vpop.f32.mrf.mxu0
    %v1768 = vadd.f32 %v1550, %v1767
    %1769 = vdwg.mxu0
    %1770 = vmatpush.bf16.msra.mxu0 %v1680
    %1771 = vmatpush.bf16.msra.mxu0 %v1678
    %1772 = vmatpush.bf16.msra.mxu0 %v1676
    %1773 = vmatpush.bf16.msra.mxu0 %v1674
    %1774 = vmatpush.bf16.msra.mxu0 %v1672
    %1775 = vmatpush.bf16.msra.mxu0 %v1670
    %1776 = vmatpush.bf16.msra.mxu0 %v1668
    %1777 = vmatpush.bf16.msra.mxu0 %v1666
    %1778 = vmatmul.bf16.gmra.mxu0 %v1511
    %v1779 = vpop.f32.mrf.mxu0
    %v1780 = vadd.f32 %v1761, %v1779
    %v1781 = vpop.f32.mrf.mxu0
    %v1782 = vadd.f32 %v1763, %v1781
    %1783 = vmatmul.bf16.gmra.mxu0 %v1513
    %v1784 = vpop.f32.mrf.mxu0
    %v1785 = vadd.f32 %v1766, %v1784
    %v1786 = vpop.f32.mrf.mxu0
    %v1787 = vadd.f32 %v1768, %v1786
    %1788 = vdwg.mxu0
    %v1789 = vld [vmem:[%s3] sm:$0x3]
    %vm1790 = vcmask 261120
    %v1792 = vsel %vm1790, %v1789, 0
    %1794 = vmatpush.msra.mxu0 0.0
    %1795 = vmatpush.msra.mxu0 0.0
    %1796 = vmatpush.msra.mxu0 0.0
    %1797 = vmatpush.msra.mxu0 0.0
    %1798 = vmatpush.msra.mxu0 0.0
    %1799 = vmatpush.msra.mxu0 0.0
    %1800 = vmatpush.msra.mxu0 0.0
    %1801 = vmatpush.msra.mxu0 0.0
    %1802 = vmatpush.msra.mxu0 0.0
    %1803 = vmatpush.msra.mxu0 0.0
    %1804 = vmatpush.msra.mxu0 0.0
    %1805 = vmatpush.msra.mxu0 0.0
    %1806 = vmatpush.msra.mxu0 %v1749
    %1807 = vmatpush.msra.mxu0 %v1747
    %1808 = vmatpush.msra.mxu0 %v1744
    %1809 = vmatpush.msra.mxu0 %v1742
    %1810 = vmatmul.f32.gmra.mxu0 %v1792
    %v1811 = vpop.f32.mrf.mxu0
    %v1812 = vadd.f32 0.0, %v1811
    %1813 = vdwg.mxu0
    %1814 = vmatpush.msra.mxu0 0.0
    %1815 = vmatpush.msra.mxu0 0.0
    %1816 = vmatpush.msra.mxu0 0.0
    %1817 = vmatpush.msra.mxu0 0.0
    %1818 = vmatpush.msra.mxu0 0.0
    %1819 = vmatpush.msra.mxu0 0.0
    %1820 = vmatpush.msra.mxu0 0.0
    %1821 = vmatpush.msra.mxu0 0.0
    %1822 = vmatpush.msra.mxu0 0.0
    %1823 = vmatpush.msra.mxu0 0.0
    %1824 = vmatpush.msra.mxu0 0.0
    %1825 = vmatpush.msra.mxu0 0.0
    %1826 = vmatpush.msra.mxu0 %v1787
    %1827 = vmatpush.msra.mxu0 %v1785
    %1828 = vmatpush.msra.mxu0 %v1782
    %1829 = vmatpush.msra.mxu0 %v1780
    %1830 = vmatmul.f32.gmra.mxu0 %v1792
    %v1831 = vpop.f32.mrf.mxu0
    %v1832 = vadd.f32 0.0, %v1831
    %1833 = vdwg.mxu0
    %v1834 = vld [vmem:[%s14] sm:$0xff]
    %v1835 = vld [vmem:[%s14 + $0x8] sm:$0xff]
    %v1836 = vld [vmem:[%s14 + $0x10] sm:$0xff]
    %v1837 = vld [vmem:[%s14 + $0x18] sm:$0xff]
    %v1838 = vld [vmem:[%s14 + $0x20] sm:$0xff]
    %v1839 = vld [vmem:[%s14 + $0x28] sm:$0xff]
    %v1840 = vld [vmem:[%s14 + $0x30] sm:$0xff]
    %v1841 = vld [vmem:[%s14 + $0x38] sm:$0xff]
    %v1842 = vld [vmem:[%s14 + $0x40] sm:$0xff]
    %v1843 = vld [vmem:[%s14 + $0x48] sm:$0xff]
    %v1844 = vld [vmem:[%s14 + $0x50] sm:$0xff]
    %v1845 = vld [vmem:[%s14 + $0x58] sm:$0xff]
    %v1846 = vld [vmem:[%s14 + $0x60] sm:$0xff]
    %v1847 = vld [vmem:[%s14 + $0x68] sm:$0xff]
    %v1848 = vld [vmem:[%s14 + $0x70] sm:$0xff]
    %v1849 = vld [vmem:[%s14 + $0x78] sm:$0xff]
    %v1850 = vld [vmem:[%s14 + $0x80] sm:$0xff]
    %v1851 = vld [vmem:[%s14 + $0x88] sm:$0xff]
    %v1852 = vld [vmem:[%s14 + $0x90] sm:$0xff]
    %v1853 = vld [vmem:[%s14 + $0x98] sm:$0xff]
    %v1854 = vld [vmem:[%s14 + $0xa0] sm:$0xff]
    %v1855 = vld [vmem:[%s14 + $0xa8] sm:$0xff]
    %v1856 = vld [vmem:[%s14 + $0xb0] sm:$0xff]
    %v1857 = vld [vmem:[%s14 + $0xb8] sm:$0xff]
    %v1858 = vld [vmem:[%s14 + $0xc0] sm:$0xff]
    %v1859 = vld [vmem:[%s14 + $0xc8] sm:$0xff]
    %v1860 = vld [vmem:[%s14 + $0xd0] sm:$0xff]
    %v1861 = vld [vmem:[%s14 + $0xd8] sm:$0xff]
    %v1862 = vld [vmem:[%s14 + $0xe0] sm:$0xff]
    %v1863 = vld [vmem:[%s14 + $0xe8] sm:$0xff]
    %v1864 = vld [vmem:[%s14 + $0xf0] sm:$0xff]
    %v1865 = vld [vmem:[%s14 + $0xf8] sm:$0xff]
    %1866 = vmatpush.msra.mxu0 %v1849
    %1867 = vmatpush.msra.mxu0 %v1848
    %1868 = vmatpush.msra.mxu0 %v1847
    %1869 = vmatpush.msra.mxu0 %v1846
    %1870 = vmatpush.msra.mxu0 %v1845
    %1871 = vmatpush.msra.mxu0 %v1844
    %1872 = vmatpush.msra.mxu0 %v1843
    %1873 = vmatpush.msra.mxu0 %v1842
    %1874 = vmatpush.msra.mxu0 %v1841
    %1875 = vmatpush.msra.mxu0 %v1840
    %1876 = vmatpush.msra.mxu0 %v1839
    %1877 = vmatpush.msra.mxu0 %v1838
    %1878 = vmatpush.msra.mxu0 %v1837
    %1879 = vmatpush.msra.mxu0 %v1836
    %1880 = vmatpush.msra.mxu0 %v1835
    %1881 = vmatpush.msra.mxu0 %v1834
    %1882 = vmatmul.f32.gmra.mxu0 %v1812
    %v1883 = vpop.f32.mrf.mxu0
    %v1884 = vadd.f32 0.0, %v1883
    %1885 = vdwg.mxu0
    %1886 = vmatpush.msra.mxu0 %v1865
    %1887 = vmatpush.msra.mxu0 %v1864
    %1888 = vmatpush.msra.mxu0 %v1863
    %1889 = vmatpush.msra.mxu0 %v1862
    %1890 = vmatpush.msra.mxu0 %v1861
    %1891 = vmatpush.msra.mxu0 %v1860
    %1892 = vmatpush.msra.mxu0 %v1859
    %1893 = vmatpush.msra.mxu0 %v1858
    %1894 = vmatpush.msra.mxu0 %v1857
    %1895 = vmatpush.msra.mxu0 %v1856
    %1896 = vmatpush.msra.mxu0 %v1855
    %1897 = vmatpush.msra.mxu0 %v1854
    %1898 = vmatpush.msra.mxu0 %v1853
    %1899 = vmatpush.msra.mxu0 %v1852
    %1900 = vmatpush.msra.mxu0 %v1851
    %1901 = vmatpush.msra.mxu0 %v1850
    %1902 = vmatmul.f32.gmra.mxu0 %v1832
    %v1903 = vpop.f32.mrf.mxu0
    %v1904 = vadd.f32 %v1884, %v1903
    %1905 = vdwg.mxu0
    %v1906 = vmax.f32 %v1904, 0.0
    %v1907 = vld [vmem:[#allocation12] sm:$0xff]
    %1909 = vst [vmem:[#allocation1] ss:$2 sm:$0xff] %v1907
    %v1910 = vld.sshfl [vmem:[#allocation1] sm:$0xff pattern:$0x75316420]
    %v1911 = vld.sshfl [vmem:[#allocation1 + $0x8] sm:$0xff pattern:$0x75316420]
    %vm1912 = vcmask 31744
    %v1914 = vsel %vm1912, %v1906, 0
    %vm1916 = vcmask 1043456
    %v1917 = vsel %vm1916, %v1910, 0
    %v1919 = vsel %vm1916, %v1911, 0
    %1921 = vmatpush.msra.mxu0 0.0
    %1922 = vmatpush.msra.mxu0 0.0
    %1923 = vmatpush.msra.mxu0 0.0
    %1924 = vmatpush.msra.mxu0 0.0
    %1925 = vmatpush.msra.mxu0 0.0
    %1926 = vmatpush.msra.mxu0 0.0
    %1927 = vmatpush.msra.mxu0 0.0
    %1928 = vmatpush.msra.mxu0 0.0
    %1929 = vmatpush.msra.mxu0 0.0
    %1930 = vmatpush.msra.mxu0 0.0
    %1931 = vmatpush.msra.mxu0 0.0
    %1932 = vmatpush.msra.mxu0 0.0
    %1933 = vmatpush.msra.mxu0 0.0
    %1934 = vmatpush.msra.mxu0 0.0
    %1935 = vmatpush.msra.mxu0 0.0
    %1936 = vmatpush.msra.mxu0 %v1917
    %1937 = vmatmul.f32.gmra.mxu0 %v1914
    %v1938 = vpop.f32.mrf.mxu0
    %v1939 = vadd.f32 0.0, %v1938
    %1940 = vdwg.mxu0
    %1941 = vmatpush.msra.mxu0 0.0
    %1942 = vmatpush.msra.mxu0 0.0
    %1943 = vmatpush.msra.mxu0 0.0
    %1944 = vmatpush.msra.mxu0 0.0
    %1945 = vmatpush.msra.mxu0 0.0
    %1946 = vmatpush.msra.mxu0 0.0
    %1947 = vmatpush.msra.mxu0 0.0
    %1948 = vmatpush.msra.mxu0 0.0
    %1949 = vmatpush.msra.mxu0 0.0
    %1950 = vmatpush.msra.mxu0 0.0
    %1951 = vmatpush.msra.mxu0 0.0
    %1952 = vmatpush.msra.mxu0 0.0
    %1953 = vmatpush.msra.mxu0 0.0
    %1954 = vmatpush.msra.mxu0 0.0
    %1955 = vmatpush.msra.mxu0 0.0
    %1956 = vmatpush.msra.mxu0 %v1919
    %1957 = vmatmul.f32.gmra.mxu0 %v1914
    %v1958 = vpop.f32.mrf.mxu0
    %v1959 = vadd.f32 0.0, %v1958
    %1960 = vdwg.mxu0
    %v1961 = vsub.f32 0.0, %v1939
    %v1962 = vsub.f32 0.0, %v1959
    %v1963 = vmul.f32 %v1961, 1.442695
    %v1964 = vpow.pop %v1963
    %v1965 = vmul.f32 %v1962, 1.442695
    %v1966 = vpow.pop %v1965
    %v1967 = vadd.f32 %v1964, 1.0
    %v1968 = vadd.f32 %v1966, 1.0
    %v1969 = vrcp.pop %v1967
    %v1970 = vmul.f32 %v1967, %v1969
    %v1971 = vsub.f32 1.0, %v1970
    %v1972 = vmul.f32 %v1969, %v1971
    %v1973 = vadd.f32 %v1969, %v1972
    %vm1974 = vweird.f32 %v1967
    %vm1975 = vweird.f32 %v1969
    %vm1976 = vmor %vm1974, %vm1975
    %v1977 = vsel %vm1976, %v1969, %v1973
    %v1978 = vand.u32 2147483647, %v1967
    %vm1979 = vcmp.eq.f32.partialorder %v1978, 8.507059e+37
    %v1980 = vand.u32 %v1967, 2147483648
    %v1981 = vor.u32 1.1754944e-38, %v1980
    %v1982 = vsel %vm1979, %v1981, %v1977
    %v1983 = vmul.f32 1.0, %v1982
    %v1984 = vrcp.pop %v1968
    %v1985 = vmul.f32 %v1968, %v1984
    %v1986 = vsub.f32 1.0, %v1985
    %v1987 = vmul.f32 %v1984, %v1986
    %v1988 = vadd.f32 %v1984, %v1987
    %vm1989 = vweird.f32 %v1968
    %vm1990 = vweird.f32 %v1984
    %vm1991 = vmor %vm1989, %vm1990
    %v1992 = vsel %vm1991, %v1984, %v1988
    %v1993 = vand.u32 2147483647, %v1968
    %vm1994 = vcmp.eq.f32.partialorder %v1993, 8.507059e+37
    %v1995 = vand.u32 %v1968, 2147483648
    %v1996 = vor.u32 1.1754944e-38, %v1995
    %v1997 = vsel %vm1994, %v1996, %v1992
    %v1998 = vmul.f32 1.0, %v1997
    %v1999 = vld [vmem:[#allocation6] sm:$0xff]
    %v2000 = vld [vmem:[#allocation6 + $0x8] sm:$0xff]
    %v2001 = vld [vmem:[#allocation6 + $0x10] sm:$0xff]
    %v2002 = vld [vmem:[#allocation6 + $0x18] sm:$0xff]
    %vm2003 = vcmask 15360
    %v2005 = vsel %vm2003, %v1999, 0
    %v2008 = vsel %vm2003, %v2000, 0
    %v2011 = vsel %vm2003, %v2001, 0
    %v2014 = vsel %vm2003, %v2002, 0
    %vm2016 = vcmask 1041408
    %v2018 = vsel %vm2016, %v1983, 0
    %v2021 = vsel %vm2016, %v1998, 0
    %2023 = vmatpush.msra.mxu0 0.0
    %2024 = vmatpush.msra.mxu0 0.0
    %2025 = vmatpush.msra.mxu0 0.0
    %2026 = vmatpush.msra.mxu0 0.0
    %2027 = vmatpush.msra.mxu0 0.0
    %2028 = vmatpush.msra.mxu0 0.0
    %2029 = vmatpush.msra.mxu0 0.0
    %2030 = vmatpush.msra.mxu0 0.0
    %2031 = vmatpush.msra.mxu0 0.0
    %2032 = vmatpush.msra.mxu0 0.0
    %2033 = vmatpush.msra.mxu0 0.0
    %2034 = vmatpush.msra.mxu0 0.0
    %2035 = vmatpush.msra.mxu0 0.0
    %2036 = vmatpush.msra.mxu0 0.0
    %2037 = vmatpush.msra.mxu0 0.0
    %2038 = vmatpush.msra.mxu0 %v2018
    %2039 = vmatmul.f32.gmra.mxu0 %v2005
    %v2040 = vpop.f32.mrf.mxu0
    %v2041 = vadd.f32 0.0, %v2040
    %2042 = vmatmul.f32.gmra.mxu0 %v2008
    %v2043 = vpop.f32.mrf.mxu0
    %v2044 = vadd.f32 0.0, %v2043
    %2045 = vmatmul.f32.gmra.mxu0 %v2011
    %v2046 = vpop.f32.mrf.mxu0
    %v2047 = vadd.f32 0.0, %v2046
    %2048 = vmatmul.f32.gmra.mxu0 %v2014
    %v2049 = vpop.f32.mrf.mxu0
    %v2050 = vadd.f32 0.0, %v2049
    %2051 = vdwg.mxu0
    %2052 = vmatpush.msra.mxu0 0.0
    %2053 = vmatpush.msra.mxu0 0.0
    %2054 = vmatpush.msra.mxu0 0.0
    %2055 = vmatpush.msra.mxu0 0.0
    %2056 = vmatpush.msra.mxu0 0.0
    %2057 = vmatpush.msra.mxu0 0.0
    %2058 = vmatpush.msra.mxu0 0.0
    %2059 = vmatpush.msra.mxu0 0.0
    %2060 = vmatpush.msra.mxu0 0.0
    %2061 = vmatpush.msra.mxu0 0.0
    %2062 = vmatpush.msra.mxu0 0.0
    %2063 = vmatpush.msra.mxu0 0.0
    %2064 = vmatpush.msra.mxu0 0.0
    %2065 = vmatpush.msra.mxu0 0.0
    %2066 = vmatpush.msra.mxu0 0.0
    %2067 = vmatpush.msra.mxu0 %v2021
    %2068 = vmatmul.f32.gmra.mxu0 %v2005
    %v2069 = vpop.f32.mrf.mxu0
    %v2070 = vadd.f32 0.0, %v2069
    %2071 = vmatmul.f32.gmra.mxu0 %v2008
    %v2072 = vpop.f32.mrf.mxu0
    %v2073 = vadd.f32 0.0, %v2072
    %2074 = vmatmul.f32.gmra.mxu0 %v2011
    %v2075 = vpop.f32.mrf.mxu0
    %v2076 = vadd.f32 0.0, %v2075
    %2077 = vmatmul.f32.gmra.mxu0 %v2014
    %v2078 = vpop.f32.mrf.mxu0
    %v2079 = vadd.f32 0.0, %v2078
    %2080 = vdwg.mxu0
    %v2081 = vmul.f32 %v1742, %v2041
    %v2082 = vmul.f32 %v1780, %v2070
    %v2083 = vmul.f32 %v1744, %v2044
    %v2084 = vmul.f32 %v1782, %v2073
    %v2085 = vmul.f32 %v1747, %v2047
    %v2086 = vmul.f32 %v1785, %v2076
    %v2087 = vmul.f32 %v1749, %v2050
    %v2088 = vmul.f32 %v1787, %v2079
    %v2097 = vrot.slane %v2081, 7
    %v2098 = vrot.slane %v2082, 7
    %v2099 = vrot.slane %v2083, 7
    %v2100 = vsel %vm202, %v2097, %v2099
    %v2101 = vrot.slane %v2084, 7
    %v2102 = vsel %vm202, %v2098, %v2101
    %v2103 = vrot.slane %v2085, 7
    %v2104 = vsel %vm202, %v2099, %v2103
    %v2105 = vrot.slane %v2086, 7
    %v2106 = vsel %vm202, %v2101, %v2105
    %v2107 = vrot.slane %v2087, 7
    %v2108 = vsel %vm202, %v2103, %v2107
    %v2109 = vrot.slane %v2088, 7
    %v2110 = vsel %vm202, %v2105, %v2109
    %v2119 = vsel %vm202, 0.0, %v2097
    %v2120 = vsel %vm202, 0.0, %v2098
    %v2121 = vmul.f32 %v2119, %v230
    %v2122 = vmul.f32 %v2120, %v230
    %v2123 = vmul.f32 %v2100, %v235
    %v2124 = vmul.f32 %v2102, %v235
    %v2125 = vmul.f32 %v2104, %v240
    %v2126 = vmul.f32 %v2106, %v240
    %v2127 = vmul.f32 %v2108, %v245
    %v2128 = vmul.f32 %v2110, %v245
    %v2129 = vrot.slane %v2081, 1
    %v2130 = vrot.slane %v2083, 1
    %v2131 = vsel %vm255, %v2129, %v2130
    %v2132 = vrot.slane %v2082, 1
    %v2133 = vrot.slane %v2084, 1
    %v2134 = vsel %vm255, %v2132, %v2133
    %v2135 = vrot.slane %v2085, 1
    %v2136 = vsel %vm255, %v2130, %v2135
    %v2137 = vrot.slane %v2086, 1
    %v2138 = vsel %vm255, %v2133, %v2137
    %v2139 = vrot.slane %v2087, 1
    %v2140 = vsel %vm255, %v2135, %v2139
    %v2141 = vrot.slane %v2088, 1
    %v2142 = vsel %vm255, %v2137, %v2141
    %v2151 = vsel %vm255, %v2139, 0.0
    %v2152 = vsel %vm255, %v2141, 0.0
    %v2153 = vmul.f32 %v2131, %v283
    %v2154 = vmul.f32 %v2134, %v283
    %v2155 = vmul.f32 %v2136, %v288
    %v2156 = vmul.f32 %v2138, %v288
    %v2157 = vmul.f32 %v2140, %v293
    %v2158 = vmul.f32 %v2142, %v293
    %v2159 = vmul.f32 %v2151, %v298
    %v2160 = vmul.f32 %v2152, %v298
    %2169 = vrot.lane.b32.xlu0 %v2121, 16
    %v2170 = vpop.permute.xlu0 %2169
    %2171 = vrot.lane.b32.xlu0 %v2122, 16
    %v2172 = vpop.permute.xlu0 %2171
    %2173 = vrot.lane.b32.xlu0 %v2123, 16
    %v2174 = vpop.permute.xlu0 %2173
    %2175 = vrot.lane.b32.xlu0 %v2124, 16
    %v2176 = vpop.permute.xlu0 %2175
    %2177 = vrot.lane.b32.xlu0 %v2125, 16
    %v2178 = vpop.permute.xlu0 %2177
    %2179 = vrot.lane.b32.xlu0 %v2126, 16
    %v2180 = vpop.permute.xlu0 %2179
    %2181 = vrot.lane.b32.xlu0 %v2127, 16
    %v2182 = vpop.permute.xlu0 %2181
    %2183 = vrot.lane.b32.xlu0 %v2128, 16
    %v2184 = vpop.permute.xlu0 %2183
    %v2185 = vsel %vm332, %v2170, %v2172
    %v2186 = vsel %vm332, %v2174, %v2176
    %v2187 = vsel %vm332, %v2178, %v2180
    %v2188 = vsel %vm332, %v2182, %v2184
    %v2197 = vsel %vm332, 0.0, %v2170
    %v2198 = vsel %vm332, 0.0, %v2174
    %v2199 = vsel %vm332, 0.0, %v2178
    %v2200 = vsel %vm332, 0.0, %v2182
    %2201 = vrot.lane.b32.xlu0 %v2121, 112
    %v2202 = vpop.permute.xlu0 %2201
    %2203 = vrot.lane.b32.xlu0 %v2122, 112
    %v2204 = vpop.permute.xlu0 %2203
    %2205 = vrot.lane.b32.xlu0 %v2123, 112
    %v2206 = vpop.permute.xlu0 %2205
    %2207 = vrot.lane.b32.xlu0 %v2124, 112
    %v2208 = vpop.permute.xlu0 %2207
    %2209 = vrot.lane.b32.xlu0 %v2125, 112
    %v2210 = vpop.permute.xlu0 %2209
    %2211 = vrot.lane.b32.xlu0 %v2126, 112
    %v2212 = vpop.permute.xlu0 %2211
    %2213 = vrot.lane.b32.xlu0 %v2127, 112
    %v2214 = vpop.permute.xlu0 %2213
    %2215 = vrot.lane.b32.xlu0 %v2128, 112
    %v2216 = vpop.permute.xlu0 %2215
    %v2217 = vsel %vm365, %v2202, %v2204
    %v2218 = vsel %vm365, %v2206, %v2208
    %v2219 = vsel %vm365, %v2210, %v2212
    %v2220 = vsel %vm365, %v2214, %v2216
    %v2229 = vsel %vm365, %v2204, 0.0
    %v2230 = vsel %vm365, %v2208, 0.0
    %v2231 = vsel %vm365, %v2212, 0.0
    %v2232 = vsel %vm365, %v2216, 0.0
    %v2233 = vld [vmem:[#allocation7] ss:$8 sm:$0x3]
    %v2235 = vperm.slane %v2233, 0
    %v2236 = vperm.slane %v2233, 1
    %v2239 = vmul.f32 %v2197, %v2235
    %v2240 = vmul.f32 %v2185, %v2236
    %v2241 = vmul.f32 %v2198, %v2235
    %v2242 = vmul.f32 %v2186, %v2236
    %v2243 = vmul.f32 %v2199, %v2235
    %v2244 = vmul.f32 %v2187, %v2236
    %v2245 = vmul.f32 %v2200, %v2235
    %v2246 = vmul.f32 %v2188, %v2236
    %s2247 = scalar_lea.vmem [#allocation7], 1
    %v2248 = vld [vmem:[%s2247] ss:$8 sm:$0x3]
    %v2250 = vperm.slane %v2248, 0
    %v2251 = vperm.slane %v2248, 1
    %v2254 = vmul.f32 %v2121, %v2250
    %v2255 = vmul.f32 %v2122, %v2251
    %v2256 = vmul.f32 %v2123, %v2250
    %v2257 = vmul.f32 %v2124, %v2251
    %v2258 = vmul.f32 %v2125, %v2250
    %v2259 = vmul.f32 %v2126, %v2251
    %v2260 = vmul.f32 %v2127, %v2250
    %v2261 = vmul.f32 %v2128, %v2251
    %v2262 = vadd.f32 %v2239, %v2254
    %v2263 = vadd.f32 %v2240, %v2255
    %v2264 = vadd.f32 %v2241, %v2256
    %v2265 = vadd.f32 %v2242, %v2257
    %v2266 = vadd.f32 %v2243, %v2258
    %v2267 = vadd.f32 %v2244, %v2259
    %v2268 = vadd.f32 %v2245, %v2260
    %v2269 = vadd.f32 %v2246, %v2261
    %s2270 = scalar_lea.vmem [#allocation7], 2
    %v2271 = vld [vmem:[%s2270] ss:$8 sm:$0x3]
    %v2273 = vperm.slane %v2271, 0
    %v2274 = vperm.slane %v2271, 1
    %v2277 = vmul.f32 %v2217, %v2273
    %v2278 = vmul.f32 %v2229, %v2274
    %v2279 = vmul.f32 %v2218, %v2273
    %v2280 = vmul.f32 %v2230, %v2274
    %v2281 = vmul.f32 %v2219, %v2273
    %v2282 = vmul.f32 %v2231, %v2274
    %v2283 = vmul.f32 %v2220, %v2273
    %v2284 = vmul.f32 %v2232, %v2274
    %v2285 = vadd.f32 %v2262, %v2277
    %v2286 = vadd.f32 %v2263, %v2278
    %v2287 = vadd.f32 %v2264, %v2279
    %v2288 = vadd.f32 %v2265, %v2280
    %v2289 = vadd.f32 %v2266, %v2281
    %v2290 = vadd.f32 %v2267, %v2282
    %v2291 = vadd.f32 %v2268, %v2283
    %v2292 = vadd.f32 %v2269, %v2284
    %2293 = vrot.lane.b32.xlu0 %v2081, 16
    %v2294 = vpop.permute.xlu0 %2293
    %2295 = vrot.lane.b32.xlu0 %v2082, 16
    %v2296 = vpop.permute.xlu0 %2295
    %2297 = vrot.lane.b32.xlu0 %v2083, 16
    %v2298 = vpop.permute.xlu0 %2297
    %2299 = vrot.lane.b32.xlu0 %v2084, 16
    %v2300 = vpop.permute.xlu0 %2299
    %2301 = vrot.lane.b32.xlu0 %v2085, 16
    %v2302 = vpop.permute.xlu0 %2301
    %2303 = vrot.lane.b32.xlu0 %v2086, 16
    %v2304 = vpop.permute.xlu0 %2303
    %2305 = vrot.lane.b32.xlu0 %v2087, 16
    %v2306 = vpop.permute.xlu0 %2305
    %2307 = vrot.lane.b32.xlu0 %v2088, 16
    %v2308 = vpop.permute.xlu0 %2307
    %v2309 = vsel %vm332, %v2294, %v2296
    %v2310 = vsel %vm332, %v2298, %v2300
    %v2311 = vsel %vm332, %v2302, %v2304
    %v2312 = vsel %vm332, %v2306, %v2308
    %v2321 = vsel %vm332, 0.0, %v2294
    %v2322 = vsel %vm332, 0.0, %v2298
    %v2323 = vsel %vm332, 0.0, %v2302
    %v2324 = vsel %vm332, 0.0, %v2306
    %2325 = vrot.lane.b32.xlu0 %v2081, 112
    %v2326 = vpop.permute.xlu0 %2325
    %2327 = vrot.lane.b32.xlu0 %v2082, 112
    %v2328 = vpop.permute.xlu0 %2327
    %2329 = vrot.lane.b32.xlu0 %v2083, 112
    %v2330 = vpop.permute.xlu0 %2329
    %2331 = vrot.lane.b32.xlu0 %v2084, 112
    %v2332 = vpop.permute.xlu0 %2331
    %2333 = vrot.lane.b32.xlu0 %v2085, 112
    %v2334 = vpop.permute.xlu0 %2333
    %2335 = vrot.lane.b32.xlu0 %v2086, 112
    %v2336 = vpop.permute.xlu0 %2335
    %2337 = vrot.lane.b32.xlu0 %v2087, 112
    %v2338 = vpop.permute.xlu0 %2337
    %2339 = vrot.lane.b32.xlu0 %v2088, 112
    %v2340 = vpop.permute.xlu0 %2339
    %v2341 = vsel %vm365, %v2326, %v2328
    %v2342 = vsel %vm365, %v2330, %v2332
    %v2343 = vsel %vm365, %v2334, %v2336
    %v2344 = vsel %vm365, %v2338, %v2340
    %v2353 = vsel %vm365, %v2328, 0.0
    %v2354 = vsel %vm365, %v2332, 0.0
    %v2355 = vsel %vm365, %v2336, 0.0
    %v2356 = vsel %vm365, %v2340, 0.0
    %s2357 = scalar_lea.vmem [#allocation7], 3
    %v2358 = vld [vmem:[%s2357] ss:$8 sm:$0x3]
    %v2360 = vperm.slane %v2358, 0
    %v2361 = vperm.slane %v2358, 1
    %v2364 = vmul.f32 %v2321, %v2360
    %v2365 = vmul.f32 %v2309, %v2361
    %v2366 = vmul.f32 %v2322, %v2360
    %v2367 = vmul.f32 %v2310, %v2361
    %v2368 = vmul.f32 %v2323, %v2360
    %v2369 = vmul.f32 %v2311, %v2361
    %v2370 = vmul.f32 %v2324, %v2360
    %v2371 = vmul.f32 %v2312, %v2361
    %v2372 = vadd.f32 %v2285, %v2364
    %v2373 = vadd.f32 %v2286, %v2365
    %v2374 = vadd.f32 %v2287, %v2366
    %v2375 = vadd.f32 %v2288, %v2367
    %v2376 = vadd.f32 %v2289, %v2368
    %v2377 = vadd.f32 %v2290, %v2369
    %v2378 = vadd.f32 %v2291, %v2370
    %v2379 = vadd.f32 %v2292, %v2371
    %s2380 = scalar_lea.vmem [#allocation7], 4
    %v2381 = vld [vmem:[%s2380] ss:$8 sm:$0x3]
    %v2383 = vperm.slane %v2381, 0
    %v2384 = vperm.slane %v2381, 1
    %v2387 = vmul.f32 %v2081, %v2383
    %v2388 = vmul.f32 %v2082, %v2384
    %v2389 = vmul.f32 %v2083, %v2383
    %v2390 = vmul.f32 %v2084, %v2384
    %v2391 = vmul.f32 %v2085, %v2383
    %v2392 = vmul.f32 %v2086, %v2384
    %v2393 = vmul.f32 %v2087, %v2383
    %v2394 = vmul.f32 %v2088, %v2384
    %v2395 = vadd.f32 %v2372, %v2387
    %v2396 = vadd.f32 %v2373, %v2388
    %v2397 = vadd.f32 %v2374, %v2389
    %v2398 = vadd.f32 %v2375, %v2390
    %v2399 = vadd.f32 %v2376, %v2391
    %v2400 = vadd.f32 %v2377, %v2392
    %v2401 = vadd.f32 %v2378, %v2393
    %v2402 = vadd.f32 %v2379, %v2394
    %s2403 = scalar_lea.vmem [#allocation7], 5
    %v2404 = vld [vmem:[%s2403] ss:$8 sm:$0x3]
    %v2406 = vperm.slane %v2404, 0
    %v2407 = vperm.slane %v2404, 1
    %v2410 = vmul.f32 %v2341, %v2406
    %v2411 = vmul.f32 %v2353, %v2407
    %v2412 = vmul.f32 %v2342, %v2406
    %v2413 = vmul.f32 %v2354, %v2407
    %v2414 = vmul.f32 %v2343, %v2406
    %v2415 = vmul.f32 %v2355, %v2407
    %v2416 = vmul.f32 %v2344, %v2406
    %v2417 = vmul.f32 %v2356, %v2407
    %v2418 = vadd.f32 %v2395, %v2410
    %v2419 = vadd.f32 %v2396, %v2411
    %v2420 = vadd.f32 %v2397, %v2412
    %v2421 = vadd.f32 %v2398, %v2413
    %v2422 = vadd.f32 %v2399, %v2414
    %v2423 = vadd.f32 %v2400, %v2415
    %v2424 = vadd.f32 %v2401, %v2416
    %v2425 = vadd.f32 %v2402, %v2417
    %2434 = vrot.lane.b32.xlu0 %v2153, 16
    %v2435 = vpop.permute.xlu0 %2434
    %2436 = vrot.lane.b32.xlu0 %v2154, 16
    %v2437 = vpop.permute.xlu0 %2436
    %2438 = vrot.lane.b32.xlu0 %v2155, 16
    %v2439 = vpop.permute.xlu0 %2438
    %2440 = vrot.lane.b32.xlu0 %v2156, 16
    %v2441 = vpop.permute.xlu0 %2440
    %2442 = vrot.lane.b32.xlu0 %v2157, 16
    %v2443 = vpop.permute.xlu0 %2442
    %2444 = vrot.lane.b32.xlu0 %v2158, 16
    %v2445 = vpop.permute.xlu0 %2444
    %2446 = vrot.lane.b32.xlu0 %v2159, 16
    %v2447 = vpop.permute.xlu0 %2446
    %2448 = vrot.lane.b32.xlu0 %v2160, 16
    %v2449 = vpop.permute.xlu0 %2448
    %v2450 = vsel %vm332, %v2435, %v2437
    %v2451 = vsel %vm332, %v2439, %v2441
    %v2452 = vsel %vm332, %v2443, %v2445
    %v2453 = vsel %vm332, %v2447, %v2449
    %v2462 = vsel %vm332, 0.0, %v2435
    %v2463 = vsel %vm332, 0.0, %v2439
    %v2464 = vsel %vm332, 0.0, %v2443
    %v2465 = vsel %vm332, 0.0, %v2447
    %2466 = vrot.lane.b32.xlu0 %v2153, 112
    %v2467 = vpop.permute.xlu0 %2466
    %2468 = vrot.lane.b32.xlu0 %v2154, 112
    %v2469 = vpop.permute.xlu0 %2468
    %2470 = vrot.lane.b32.xlu0 %v2155, 112
    %v2471 = vpop.permute.xlu0 %2470
    %2472 = vrot.lane.b32.xlu0 %v2156, 112
    %v2473 = vpop.permute.xlu0 %2472
    %2474 = vrot.lane.b32.xlu0 %v2157, 112
    %v2475 = vpop.permute.xlu0 %2474
    %2476 = vrot.lane.b32.xlu0 %v2158, 112
    %v2477 = vpop.permute.xlu0 %2476
    %2478 = vrot.lane.b32.xlu0 %v2159, 112
    %v2479 = vpop.permute.xlu0 %2478
    %2480 = vrot.lane.b32.xlu0 %v2160, 112
    %v2481 = vpop.permute.xlu0 %2480
    %v2482 = vsel %vm365, %v2467, %v2469
    %v2483 = vsel %vm365, %v2471, %v2473
    %v2484 = vsel %vm365, %v2475, %v2477
    %v2485 = vsel %vm365, %v2479, %v2481
    %v2494 = vsel %vm365, %v2469, 0.0
    %v2495 = vsel %vm365, %v2473, 0.0
    %v2496 = vsel %vm365, %v2477, 0.0
    %v2497 = vsel %vm365, %v2481, 0.0
    %s2498 = scalar_lea.vmem [#allocation7], 6
    %v2499 = vld [vmem:[%s2498] ss:$8 sm:$0x3]
    %v2501 = vperm.slane %v2499, 0
    %v2502 = vperm.slane %v2499, 1
    %v2505 = vmul.f32 %v2462, %v2501
    %v2506 = vmul.f32 %v2450, %v2502
    %v2507 = vmul.f32 %v2463, %v2501
    %v2508 = vmul.f32 %v2451, %v2502
    %v2509 = vmul.f32 %v2464, %v2501
    %v2510 = vmul.f32 %v2452, %v2502
    %v2511 = vmul.f32 %v2465, %v2501
    %v2512 = vmul.f32 %v2453, %v2502
    %v2513 = vadd.f32 %v2418, %v2505
    %v2514 = vadd.f32 %v2419, %v2506
    %v2515 = vadd.f32 %v2420, %v2507
    %v2516 = vadd.f32 %v2421, %v2508
    %v2517 = vadd.f32 %v2422, %v2509
    %v2518 = vadd.f32 %v2423, %v2510
    %v2519 = vadd.f32 %v2424, %v2511
    %v2520 = vadd.f32 %v2425, %v2512
    %s2521 = scalar_lea.vmem [#allocation7], 7
    %v2522 = vld [vmem:[%s2521] ss:$8 sm:$0x3]
    %v2524 = vperm.slane %v2522, 0
    %v2525 = vperm.slane %v2522, 1
    %v2528 = vmul.f32 %v2153, %v2524
    %v2529 = vmul.f32 %v2154, %v2525
    %v2530 = vmul.f32 %v2155, %v2524
    %v2531 = vmul.f32 %v2156, %v2525
    %v2532 = vmul.f32 %v2157, %v2524
    %v2533 = vmul.f32 %v2158, %v2525
    %v2534 = vmul.f32 %v2159, %v2524
    %v2535 = vmul.f32 %v2160, %v2525
    %v2536 = vadd.f32 %v2513, %v2528
    %v2537 = vadd.f32 %v2514, %v2529
    %v2538 = vadd.f32 %v2515, %v2530
    %v2539 = vadd.f32 %v2516, %v2531
    %v2540 = vadd.f32 %v2517, %v2532
    %v2541 = vadd.f32 %v2518, %v2533
    %v2542 = vadd.f32 %v2519, %v2534
    %v2543 = vadd.f32 %v2520, %v2535
    %s2544 = scalar_lea.vmem [#allocation7], 16
    %v2545 = vld [vmem:[%s2544] ss:$8 sm:$0x3]
    %v2547 = vperm.slane %v2545, 0
    %v2548 = vperm.slane %v2545, 1
    %v2551 = vmul.f32 %v2482, %v2547
    %v2552 = vmul.f32 %v2494, %v2548
    %v2553 = vmul.f32 %v2483, %v2547
    %v2554 = vmul.f32 %v2495, %v2548
    %v2555 = vmul.f32 %v2484, %v2547
    %v2556 = vmul.f32 %v2496, %v2548
    %v2557 = vmul.f32 %v2485, %v2547
    %v2558 = vmul.f32 %v2497, %v2548
    %v2559 = vadd.f32 %v2536, %v2551
    %v2560 = vadd.f32 %v2537, %v2552
    %v2561 = vadd.f32 %v2538, %v2553
    %v2562 = vadd.f32 %v2539, %v2554
    %v2563 = vadd.f32 %v2540, %v2555
    %v2564 = vadd.f32 %v2541, %v2556
    %v2565 = vadd.f32 %v2542, %v2557
    %v2566 = vadd.f32 %v2543, %v2558
    %s2567 = scalar_lea.vmem [#allocation10], 4
    %v2568 = vld [vmem:[%s2567] ss:$8 sm:$0x3]
    %v2570 = vperm.slane %v2568, 0
    %v2571 = vperm.slane %v2568, 1
    %v2574 = vadd.f32 %v2559, %v2570
    %v2575 = vadd.f32 %v2560, %v2571
    %v2576 = vadd.f32 %v2561, %v2570
    %v2577 = vadd.f32 %v2562, %v2571
    %v2578 = vadd.f32 %v2563, %v2570
    %v2579 = vadd.f32 %v2564, %v2571
    %v2580 = vadd.f32 %v2565, %v2570
    %v2581 = vadd.f32 %v2566, %v2571
    %v2582 = vpack.c.bf16 %v2576, %v2574
    %v2583 = vpack.c.bf16 %v2577, %v2575
    %v2584 = vpack.c.bf16 %v2580, %v2578
    %v2585 = vpack.c.bf16 %v2581, %v2579
    %v2586 = vld [vmem:[%s11] sm:$0xff]
    %v2587 = vld [vmem:[%s11 + $0x8] sm:$0xff]
    %v2588 = vld [vmem:[%s11 + $0x10] sm:$0xff]
    %v2589 = vld [vmem:[%s11 + $0x18] sm:$0xff]
    %v2590 = vld [vmem:[%s11 + $0x20] sm:$0xff]
    %v2591 = vld [vmem:[%s11 + $0x28] sm:$0xff]
    %v2592 = vld [vmem:[%s11 + $0x30] sm:$0xff]
    %v2593 = vld [vmem:[%s11 + $0x38] sm:$0xff]
    %v2594 = vld [vmem:[%s11 + $0x40] sm:$0xff]
    %v2595 = vld [vmem:[%s11 + $0x48] sm:$0xff]
    %v2596 = vld [vmem:[%s11 + $0x50] sm:$0xff]
    %v2597 = vld [vmem:[%s11 + $0x58] sm:$0xff]
    %v2598 = vld [vmem:[%s11 + $0x60] sm:$0xff]
    %v2599 = vld [vmem:[%s11 + $0x68] sm:$0xff]
    %v2600 = vld [vmem:[%s11 + $0x70] sm:$0xff]
    %v2601 = vld [vmem:[%s11 + $0x78] sm:$0xff]
    %v2602 = vld [vmem:[%s11 + $0x80] sm:$0xff]
    %v2603 = vld [vmem:[%s11 + $0x88] sm:$0xff]
    %v2604 = vld [vmem:[%s11 + $0x90] sm:$0xff]
    %v2605 = vld [vmem:[%s11 + $0x98] sm:$0xff]
    %v2606 = vld [vmem:[%s11 + $0xa0] sm:$0xff]
    %v2607 = vld [vmem:[%s11 + $0xa8] sm:$0xff]
    %v2608 = vld [vmem:[%s11 + $0xb0] sm:$0xff]
    %v2609 = vld [vmem:[%s11 + $0xb8] sm:$0xff]
    %v2610 = vld [vmem:[%s11 + $0xc0] sm:$0xff]
    %v2611 = vld [vmem:[%s11 + $0xc8] sm:$0xff]
    %v2612 = vld [vmem:[%s11 + $0xd0] sm:$0xff]
    %v2613 = vld [vmem:[%s11 + $0xd8] sm:$0xff]
    %v2614 = vld [vmem:[%s11 + $0xe0] sm:$0xff]
    %v2615 = vld [vmem:[%s11 + $0xe8] sm:$0xff]
    %v2616 = vld [vmem:[%s11 + $0xf0] sm:$0xff]
    %v2617 = vld [vmem:[%s11 + $0xf8] sm:$0xff]
    %v2618 = vld [vmem:[#allocation9] ss:$8 sm:$0x3]
    %v2620 = vperm.slane %v2618, 0
    %v2621 = vperm.slane %v2618, 1
    %v2624 = vmul.f32 %v345, %v2620
    %v2625 = vmul.f32 %v333, %v2621
    %v2626 = vmul.f32 %v346, %v2620
    %v2627 = vmul.f32 %v334, %v2621
    %v2628 = vmul.f32 %v347, %v2620
    %v2629 = vmul.f32 %v335, %v2621
    %v2630 = vmul.f32 %v348, %v2620
    %v2631 = vmul.f32 %v336, %v2621
    %s2632 = scalar_lea.vmem [#allocation9], 1
    %v2633 = vld [vmem:[%s2632] ss:$8 sm:$0x3]
    %v2635 = vperm.slane %v2633, 0
    %v2636 = vperm.slane %v2633, 1
    %v2639 = vmul.f32 %v247, %v2635
    %v2640 = vmul.f32 %v248, %v2636
    %v2641 = vmul.f32 %v249, %v2635
    %v2642 = vmul.f32 %v250, %v2636
    %v2643 = vmul.f32 %v251, %v2635
    %v2644 = vmul.f32 %v252, %v2636
    %v2645 = vmul.f32 %v253, %v2635
    %v2646 = vmul.f32 %v254, %v2636
    %v2647 = vadd.f32 %v2624, %v2639
    %v2648 = vadd.f32 %v2625, %v2640
    %v2649 = vadd.f32 %v2626, %v2641
    %v2650 = vadd.f32 %v2627, %v2642
    %v2651 = vadd.f32 %v2628, %v2643
    %v2652 = vadd.f32 %v2629, %v2644
    %v2653 = vadd.f32 %v2630, %v2645
    %v2654 = vadd.f32 %v2631, %v2646
    %s2655 = scalar_lea.vmem [#allocation9], 2
    %v2656 = vld [vmem:[%s2655] ss:$8 sm:$0x3]
    %v2658 = vperm.slane %v2656, 0
    %v2659 = vperm.slane %v2656, 1
    %v2662 = vmul.f32 %v366, %v2658
    %v2663 = vmul.f32 %v378, %v2659
    %v2664 = vmul.f32 %v367, %v2658
    %v2665 = vmul.f32 %v379, %v2659
    %v2666 = vmul.f32 %v368, %v2658
    %v2667 = vmul.f32 %v380, %v2659
    %v2668 = vmul.f32 %v369, %v2658
    %v2669 = vmul.f32 %v381, %v2659
    %v2670 = vadd.f32 %v2647, %v2662
    %v2671 = vadd.f32 %v2648, %v2663
    %v2672 = vadd.f32 %v2649, %v2664
    %v2673 = vadd.f32 %v2650, %v2665
    %v2674 = vadd.f32 %v2651, %v2666
    %v2675 = vadd.f32 %v2652, %v2667
    %v2676 = vadd.f32 %v2653, %v2668
    %v2677 = vadd.f32 %v2654, %v2669
    %s2678 = scalar_lea.vmem [#allocation9], 3
    %v2679 = vld [vmem:[%s2678] ss:$8 sm:$0x3]
    %v2681 = vperm.slane %v2679, 0
    %v2682 = vperm.slane %v2679, 1
    %v2685 = vmul.f32 %v470, %v2681
    %v2686 = vmul.f32 %v458, %v2682
    %v2687 = vmul.f32 %v471, %v2681
    %v2688 = vmul.f32 %v459, %v2682
    %v2689 = vmul.f32 %v472, %v2681
    %v2690 = vmul.f32 %v460, %v2682
    %v2691 = vmul.f32 %v473, %v2681
    %v2692 = vmul.f32 %v461, %v2682
    %v2693 = vadd.f32 %v2670, %v2685
    %v2694 = vadd.f32 %v2671, %v2686
    %v2695 = vadd.f32 %v2672, %v2687
    %v2696 = vadd.f32 %v2673, %v2688
    %v2697 = vadd.f32 %v2674, %v2689
    %v2698 = vadd.f32 %v2675, %v2690
    %v2699 = vadd.f32 %v2676, %v2691
    %v2700 = vadd.f32 %v2677, %v2692
    %s2701 = scalar_lea.vmem [#allocation9], 4
    %v2702 = vld [vmem:[%s2701] ss:$8 sm:$0x3]
    %v2704 = vperm.slane %v2702, 0
    %v2705 = vperm.slane %v2702, 1
    %v2708 = vmul.f32 %v178, %v2704
    %v2709 = vmul.f32 %v179, %v2705
    %v2710 = vmul.f32 %v180, %v2704
    %v2711 = vmul.f32 %v181, %v2705
    %v2712 = vmul.f32 %v182, %v2704
    %v2713 = vmul.f32 %v183, %v2705
    %v2714 = vmul.f32 %v184, %v2704
    %v2715 = vmul.f32 %v185, %v2705
    %v2716 = vadd.f32 %v2693, %v2708
    %v2717 = vadd.f32 %v2694, %v2709
    %v2718 = vadd.f32 %v2695, %v2710
    %v2719 = vadd.f32 %v2696, %v2711
    %v2720 = vadd.f32 %v2697, %v2712
    %v2721 = vadd.f32 %v2698, %v2713
    %v2722 = vadd.f32 %v2699, %v2714
    %v2723 = vadd.f32 %v2700, %v2715
    %s2724 = scalar_lea.vmem [#allocation9], 5
    %v2725 = vld [vmem:[%s2724] ss:$8 sm:$0x3]
    %v2727 = vperm.slane %v2725, 0
    %v2728 = vperm.slane %v2725, 1
    %v2731 = vmul.f32 %v490, %v2727
    %v2732 = vmul.f32 %v502, %v2728
    %v2733 = vmul.f32 %v491, %v2727
    %v2734 = vmul.f32 %v503, %v2728
    %v2735 = vmul.f32 %v492, %v2727
    %v2736 = vmul.f32 %v504, %v2728
    %v2737 = vmul.f32 %v493, %v2727
    %v2738 = vmul.f32 %v505, %v2728
    %v2739 = vadd.f32 %v2716, %v2731
    %v2740 = vadd.f32 %v2717, %v2732
    %v2741 = vadd.f32 %v2718, %v2733
    %v2742 = vadd.f32 %v2719, %v2734
    %v2743 = vadd.f32 %v2720, %v2735
    %v2744 = vadd.f32 %v2721, %v2736
    %v2745 = vadd.f32 %v2722, %v2737
    %v2746 = vadd.f32 %v2723, %v2738
    %s2747 = scalar_lea.vmem [#allocation9], 6
    %v2748 = vld [vmem:[%s2747] ss:$8 sm:$0x3]
    %v2750 = vperm.slane %v2748, 0
    %v2751 = vperm.slane %v2748, 1
    %v2754 = vmul.f32 %v611, %v2750
    %v2755 = vmul.f32 %v599, %v2751
    %v2756 = vmul.f32 %v612, %v2750
    %v2757 = vmul.f32 %v600, %v2751
    %v2758 = vmul.f32 %v613, %v2750
    %v2759 = vmul.f32 %v601, %v2751
    %v2760 = vmul.f32 %v614, %v2750
    %v2761 = vmul.f32 %v602, %v2751
    %v2762 = vadd.f32 %v2739, %v2754
    %v2763 = vadd.f32 %v2740, %v2755
    %v2764 = vadd.f32 %v2741, %v2756
    %v2765 = vadd.f32 %v2742, %v2757
    %v2766 = vadd.f32 %v2743, %v2758
    %v2767 = vadd.f32 %v2744, %v2759
    %v2768 = vadd.f32 %v2745, %v2760
    %v2769 = vadd.f32 %v2746, %v2761
    %s2770 = scalar_lea.vmem [#allocation9], 7
    %v2771 = vld [vmem:[%s2770] ss:$8 sm:$0x3]
    %v2773 = vperm.slane %v2771, 0
    %v2774 = vperm.slane %v2771, 1
    %v2777 = vmul.f32 %v300, %v2773
    %v2778 = vmul.f32 %v301, %v2774
    %v2779 = vmul.f32 %v302, %v2773
    %v2780 = vmul.f32 %v303, %v2774
    %v2781 = vmul.f32 %v304, %v2773
    %v2782 = vmul.f32 %v305, %v2774
    %v2783 = vmul.f32 %v306, %v2773
    %v2784 = vmul.f32 %v307, %v2774
    %v2785 = vadd.f32 %v2762, %v2777
    %v2786 = vadd.f32 %v2763, %v2778
    %v2787 = vadd.f32 %v2764, %v2779
    %v2788 = vadd.f32 %v2765, %v2780
    %v2789 = vadd.f32 %v2766, %v2781
    %v2790 = vadd.f32 %v2767, %v2782
    %v2791 = vadd.f32 %v2768, %v2783
    %v2792 = vadd.f32 %v2769, %v2784
    %s2793 = scalar_lea.vmem [#allocation9], 16
    %v2794 = vld [vmem:[%s2793] ss:$8 sm:$0x3]
    %v2796 = vperm.slane %v2794, 0
    %v2797 = vperm.slane %v2794, 1
    %v2800 = vmul.f32 %v631, %v2796
    %v2801 = vmul.f32 %v643, %v2797
    %v2802 = vmul.f32 %v632, %v2796
    %v2803 = vmul.f32 %v644, %v2797
    %v2804 = vmul.f32 %v633, %v2796
    %v2805 = vmul.f32 %v645, %v2797
    %v2806 = vmul.f32 %v634, %v2796
    %v2807 = vmul.f32 %v646, %v2797
    %v2808 = vadd.f32 %v2785, %v2800
    %v2809 = vadd.f32 %v2786, %v2801
    %v2810 = vadd.f32 %v2787, %v2802
    %v2811 = vadd.f32 %v2788, %v2803
    %v2812 = vadd.f32 %v2789, %v2804
    %v2813 = vadd.f32 %v2790, %v2805
    %v2814 = vadd.f32 %v2791, %v2806
    %v2815 = vadd.f32 %v2792, %v2807
    %s2816 = scalar_lea.vmem [#allocation10], 5
    %v2817 = vld [vmem:[%s2816] ss:$8 sm:$0x3]
    %v2819 = vperm.slane %v2817, 0
    %v2820 = vperm.slane %v2817, 1
    %v2823 = vadd.f32 %v2808, %v2819
    %v2824 = vadd.f32 %v2809, %v2820
    %v2825 = vadd.f32 %v2810, %v2819
    %v2826 = vadd.f32 %v2811, %v2820
    %v2827 = vadd.f32 %v2812, %v2819
    %v2828 = vadd.f32 %v2813, %v2820
    %v2829 = vadd.f32 %v2814, %v2819
    %v2830 = vadd.f32 %v2815, %v2820
    %v2831 = vpack.c.bf16 %v2825, %v2823
    %v2832 = vpack.c.bf16 %v2826, %v2824
    %v2833 = vpack.c.bf16 %v2829, %v2827
    %v2834 = vpack.c.bf16 %v2830, %v2828
    %v2835 = vld [vmem:[%s12] sm:$0xff]
    %v2836 = vld [vmem:[%s12 + $0x8] sm:$0xff]
    %v2837 = vld [vmem:[%s12 + $0x10] sm:$0xff]
    %v2838 = vld [vmem:[%s12 + $0x18] sm:$0xff]
    %v2839 = vld [vmem:[%s12 + $0x20] sm:$0xff]
    %v2840 = vld [vmem:[%s12 + $0x28] sm:$0xff]
    %v2841 = vld [vmem:[%s12 + $0x30] sm:$0xff]
    %v2842 = vld [vmem:[%s12 + $0x38] sm:$0xff]
    %v2843 = vld [vmem:[%s12 + $0x40] sm:$0xff]
    %v2844 = vld [vmem:[%s12 + $0x48] sm:$0xff]
    %v2845 = vld [vmem:[%s12 + $0x50] sm:$0xff]
    %v2846 = vld [vmem:[%s12 + $0x58] sm:$0xff]
    %v2847 = vld [vmem:[%s12 + $0x60] sm:$0xff]
    %v2848 = vld [vmem:[%s12 + $0x68] sm:$0xff]
    %v2849 = vld [vmem:[%s12 + $0x70] sm:$0xff]
    %v2850 = vld [vmem:[%s12 + $0x78] sm:$0xff]
    %v2851 = vld [vmem:[%s12 + $0x80] sm:$0xff]
    %v2852 = vld [vmem:[%s12 + $0x88] sm:$0xff]
    %v2853 = vld [vmem:[%s12 + $0x90] sm:$0xff]
    %v2854 = vld [vmem:[%s12 + $0x98] sm:$0xff]
    %v2855 = vld [vmem:[%s12 + $0xa0] sm:$0xff]
    %v2856 = vld [vmem:[%s12 + $0xa8] sm:$0xff]
    %v2857 = vld [vmem:[%s12 + $0xb0] sm:$0xff]
    %v2858 = vld [vmem:[%s12 + $0xb8] sm:$0xff]
    %v2859 = vld [vmem:[%s12 + $0xc0] sm:$0xff]
    %v2860 = vld [vmem:[%s12 + $0xc8] sm:$0xff]
    %v2861 = vld [vmem:[%s12 + $0xd0] sm:$0xff]
    %v2862 = vld [vmem:[%s12 + $0xd8] sm:$0xff]
    %v2863 = vld [vmem:[%s12 + $0xe0] sm:$0xff]
    %v2864 = vld [vmem:[%s12 + $0xe8] sm:$0xff]
    %v2865 = vld [vmem:[%s12 + $0xf0] sm:$0xff]
    %v2866 = vld [vmem:[%s12 + $0xf8] sm:$0xff]
    %v2899 = vunpack.c.l.b16 %v2835
    %v2900 = vunpack.c.h.b16 %v2835
    %v2901 = vunpack.c.l.b16 %v2836
    %v2902 = vunpack.c.h.b16 %v2836
    %v2903 = vunpack.c.l.b16 %v2837
    %v2904 = vunpack.c.h.b16 %v2837
    %v2905 = vunpack.c.l.b16 %v2838
    %v2906 = vunpack.c.h.b16 %v2838
    %v2907 = vunpack.c.l.b16 %v2839
    %v2908 = vunpack.c.h.b16 %v2839
    %v2909 = vunpack.c.l.b16 %v2840
    %v2910 = vunpack.c.h.b16 %v2840
    %v2911 = vunpack.c.l.b16 %v2841
    %v2912 = vunpack.c.h.b16 %v2841
    %v2913 = vunpack.c.l.b16 %v2842
    %v2914 = vunpack.c.h.b16 %v2842
    %v2915 = vunpack.c.l.b16 %v2843
    %v2916 = vunpack.c.h.b16 %v2843
    %v2917 = vunpack.c.l.b16 %v2844
    %v2918 = vunpack.c.h.b16 %v2844
    %v2919 = vunpack.c.l.b16 %v2845
    %v2920 = vunpack.c.h.b16 %v2845
    %v2921 = vunpack.c.l.b16 %v2846
    %v2922 = vunpack.c.h.b16 %v2846
    %v2923 = vunpack.c.l.b16 %v2847
    %v2924 = vunpack.c.h.b16 %v2847
    %v2925 = vunpack.c.l.b16 %v2848
    %v2926 = vunpack.c.h.b16 %v2848
    %v2927 = vunpack.c.l.b16 %v2849
    %v2928 = vunpack.c.h.b16 %v2849
    %v2929 = vunpack.c.l.b16 %v2850
    %v2930 = vunpack.c.h.b16 %v2850
    %v2931 = vunpack.c.l.b16 %v2851
    %v2932 = vunpack.c.h.b16 %v2851
    %v2933 = vunpack.c.l.b16 %v2852
    %v2934 = vunpack.c.h.b16 %v2852
    %v2935 = vunpack.c.l.b16 %v2853
    %v2936 = vunpack.c.h.b16 %v2853
    %v2937 = vunpack.c.l.b16 %v2854
    %v2938 = vunpack.c.h.b16 %v2854
    %v2939 = vunpack.c.l.b16 %v2855
    %v2940 = vunpack.c.h.b16 %v2855
    %v2941 = vunpack.c.l.b16 %v2856
    %v2942 = vunpack.c.h.b16 %v2856
    %v2943 = vunpack.c.l.b16 %v2857
    %v2944 = vunpack.c.h.b16 %v2857
    %v2945 = vunpack.c.l.b16 %v2858
    %v2946 = vunpack.c.h.b16 %v2858
    %v2947 = vunpack.c.l.b16 %v2859
    %v2948 = vunpack.c.h.b16 %v2859
    %v2949 = vunpack.c.l.b16 %v2860
    %v2950 = vunpack.c.h.b16 %v2860
    %v2951 = vunpack.c.l.b16 %v2861
    %v2952 = vunpack.c.h.b16 %v2861
    %v2953 = vunpack.c.l.b16 %v2862
    %v2954 = vunpack.c.h.b16 %v2862
    %v2955 = vunpack.c.l.b16 %v2863
    %v2956 = vunpack.c.h.b16 %v2863
    %v2957 = vunpack.c.l.b16 %v2864
    %v2958 = vunpack.c.h.b16 %v2864
    %v2959 = vunpack.c.l.b16 %v2865
    %v2960 = vunpack.c.h.b16 %v2865
    %v2961 = vunpack.c.l.b16 %v2866
    %v2962 = vunpack.c.h.b16 %v2866
    %v2963 = vpack.c.b16 %v2901, %v2899
    %v2964 = vpack.c.b16 %v2902, %v2900
    %v2965 = vpack.c.b16 %v2905, %v2903
    %v2966 = vpack.c.b16 %v2906, %v2904
    %v2967 = vpack.c.b16 %v2909, %v2907
    %v2968 = vpack.c.b16 %v2910, %v2908
    %v2969 = vpack.c.b16 %v2913, %v2911
    %v2970 = vpack.c.b16 %v2914, %v2912
    %v2971 = vpack.c.b16 %v2917, %v2915
    %v2972 = vpack.c.b16 %v2918, %v2916
    %v2973 = vpack.c.b16 %v2921, %v2919
    %v2974 = vpack.c.b16 %v2922, %v2920
    %v2975 = vpack.c.b16 %v2925, %v2923
    %v2976 = vpack.c.b16 %v2926, %v2924
    %v2977 = vpack.c.b16 %v2929, %v2927
    %v2978 = vpack.c.b16 %v2930, %v2928
    %v2979 = vpack.c.b16 %v2933, %v2931
    %v2980 = vpack.c.b16 %v2934, %v2932
    %v2981 = vpack.c.b16 %v2937, %v2935
    %v2982 = vpack.c.b16 %v2938, %v2936
    %v2983 = vpack.c.b16 %v2941, %v2939
    %v2984 = vpack.c.b16 %v2942, %v2940
    %v2985 = vpack.c.b16 %v2945, %v2943
    %v2986 = vpack.c.b16 %v2946, %v2944
    %v2987 = vpack.c.b16 %v2949, %v2947
    %v2988 = vpack.c.b16 %v2950, %v2948
    %v2989 = vpack.c.b16 %v2953, %v2951
    %v2990 = vpack.c.b16 %v2954, %v2952
    %v2991 = vpack.c.b16 %v2957, %v2955
    %v2992 = vpack.c.b16 %v2958, %v2956
    %v2993 = vpack.c.b16 %v2961, %v2959
    %v2994 = vpack.c.b16 %v2962, %v2960
    %3027 = vmatpush.bf16.msra.mxu0 %v2977
    %3028 = vmatpush.bf16.msra.mxu0 %v2975
    %3029 = vmatpush.bf16.msra.mxu0 %v2973
    %3030 = vmatpush.bf16.msra.mxu0 %v2971
    %3031 = vmatpush.bf16.msra.mxu0 %v2969
    %3032 = vmatpush.bf16.msra.mxu0 %v2967
    %3033 = vmatpush.bf16.msra.mxu0 %v2965
    %3034 = vmatpush.bf16.msra.mxu0 %v2963
    %3035 = vmatmul.bf16.gmra.mxu0 %v2831
    %v3036 = vpop.f32.mrf.mxu0
    %v3037 = vadd.f32 0.0, %v3036
    %v3038 = vpop.f32.mrf.mxu0
    %v3039 = vadd.f32 0.0, %v3038
    %3040 = vmatmul.bf16.gmra.mxu0 %v2833
    %v3041 = vpop.f32.mrf.mxu0
    %v3042 = vadd.f32 0.0, %v3041
    %v3043 = vpop.f32.mrf.mxu0
    %v3044 = vadd.f32 0.0, %v3043
    %3045 = vdwg.mxu0
    %3046 = vmatpush.bf16.msra.mxu0 %v2993
    %3047 = vmatpush.bf16.msra.mxu0 %v2991
    %3048 = vmatpush.bf16.msra.mxu0 %v2989
    %3049 = vmatpush.bf16.msra.mxu0 %v2987
    %3050 = vmatpush.bf16.msra.mxu0 %v2985
    %3051 = vmatpush.bf16.msra.mxu0 %v2983
    %3052 = vmatpush.bf16.msra.mxu0 %v2981
    %3053 = vmatpush.bf16.msra.mxu0 %v2979
    %3054 = vmatmul.bf16.gmra.mxu0 %v2832
    %v3055 = vpop.f32.mrf.mxu0
    %v3056 = vadd.f32 %v3037, %v3055
    %v3057 = vpop.f32.mrf.mxu0
    %v3058 = vadd.f32 %v3039, %v3057
    %3059 = vmatmul.bf16.gmra.mxu0 %v2834
    %v3060 = vpop.f32.mrf.mxu0
    %v3061 = vadd.f32 %v3042, %v3060
    %v3062 = vpop.f32.mrf.mxu0
    %v3063 = vadd.f32 %v3044, %v3062
    %3064 = vdwg.mxu0
    %3065 = vmatpush.bf16.msra.mxu0 %v2978
    %3066 = vmatpush.bf16.msra.mxu0 %v2976
    %3067 = vmatpush.bf16.msra.mxu0 %v2974
    %3068 = vmatpush.bf16.msra.mxu0 %v2972
    %3069 = vmatpush.bf16.msra.mxu0 %v2970
    %3070 = vmatpush.bf16.msra.mxu0 %v2968
    %3071 = vmatpush.bf16.msra.mxu0 %v2966
    %3072 = vmatpush.bf16.msra.mxu0 %v2964
    %3073 = vmatmul.bf16.gmra.mxu0 %v2831
    %v3074 = vpop.f32.mrf.mxu0
    %v3075 = vadd.f32 0.0, %v3074
    %v3076 = vpop.f32.mrf.mxu0
    %v3077 = vadd.f32 0.0, %v3076
    %3078 = vmatmul.bf16.gmra.mxu0 %v2833
    %v3079 = vpop.f32.mrf.mxu0
    %v3080 = vadd.f32 0.0, %v3079
    %v3081 = vpop.f32.mrf.mxu0
    %v3082 = vadd.f32 0.0, %v3081
    %3083 = vdwg.mxu0
    %3084 = vmatpush.bf16.msra.mxu0 %v2994
    %3085 = vmatpush.bf16.msra.mxu0 %v2992
    %3086 = vmatpush.bf16.msra.mxu0 %v2990
    %3087 = vmatpush.bf16.msra.mxu0 %v2988
    %3088 = vmatpush.bf16.msra.mxu0 %v2986
    %3089 = vmatpush.bf16.msra.mxu0 %v2984
    %3090 = vmatpush.bf16.msra.mxu0 %v2982
    %3091 = vmatpush.bf16.msra.mxu0 %v2980
    %3092 = vmatmul.bf16.gmra.mxu0 %v2832
    %v3093 = vpop.f32.mrf.mxu0
    %v3094 = vadd.f32 %v3075, %v3093
    %v3095 = vpop.f32.mrf.mxu0
    %v3096 = vadd.f32 %v3077, %v3095
    %3097 = vmatmul.bf16.gmra.mxu0 %v2834
    %v3098 = vpop.f32.mrf.mxu0
    %v3099 = vadd.f32 %v3080, %v3098
    %v3100 = vpop.f32.mrf.mxu0
    %v3101 = vadd.f32 %v3082, %v3100
    %3102 = vdwg.mxu0
    %v3135 = vunpack.c.l.b16 %v2586
    %v3136 = vunpack.c.h.b16 %v2586
    %v3137 = vunpack.c.l.b16 %v2587
    %v3138 = vunpack.c.h.b16 %v2587
    %v3139 = vunpack.c.l.b16 %v2588
    %v3140 = vunpack.c.h.b16 %v2588
    %v3141 = vunpack.c.l.b16 %v2589
    %v3142 = vunpack.c.h.b16 %v2589
    %v3143 = vunpack.c.l.b16 %v2590
    %v3144 = vunpack.c.h.b16 %v2590
    %v3145 = vunpack.c.l.b16 %v2591
    %v3146 = vunpack.c.h.b16 %v2591
    %v3147 = vunpack.c.l.b16 %v2592
    %v3148 = vunpack.c.h.b16 %v2592
    %v3149 = vunpack.c.l.b16 %v2593
    %v3150 = vunpack.c.h.b16 %v2593
    %v3151 = vunpack.c.l.b16 %v2594
    %v3152 = vunpack.c.h.b16 %v2594
    %v3153 = vunpack.c.l.b16 %v2595
    %v3154 = vunpack.c.h.b16 %v2595
    %v3155 = vunpack.c.l.b16 %v2596
    %v3156 = vunpack.c.h.b16 %v2596
    %v3157 = vunpack.c.l.b16 %v2597
    %v3158 = vunpack.c.h.b16 %v2597
    %v3159 = vunpack.c.l.b16 %v2598
    %v3160 = vunpack.c.h.b16 %v2598
    %v3161 = vunpack.c.l.b16 %v2599
    %v3162 = vunpack.c.h.b16 %v2599
    %v3163 = vunpack.c.l.b16 %v2600
    %v3164 = vunpack.c.h.b16 %v2600
    %v3165 = vunpack.c.l.b16 %v2601
    %v3166 = vunpack.c.h.b16 %v2601
    %v3167 = vunpack.c.l.b16 %v2602
    %v3168 = vunpack.c.h.b16 %v2602
    %v3169 = vunpack.c.l.b16 %v2603
    %v3170 = vunpack.c.h.b16 %v2603
    %v3171 = vunpack.c.l.b16 %v2604
    %v3172 = vunpack.c.h.b16 %v2604
    %v3173 = vunpack.c.l.b16 %v2605
    %v3174 = vunpack.c.h.b16 %v2605
    %v3175 = vunpack.c.l.b16 %v2606
    %v3176 = vunpack.c.h.b16 %v2606
    %v3177 = vunpack.c.l.b16 %v2607
    %v3178 = vunpack.c.h.b16 %v2607
    %v3179 = vunpack.c.l.b16 %v2608
    %v3180 = vunpack.c.h.b16 %v2608
    %v3181 = vunpack.c.l.b16 %v2609
    %v3182 = vunpack.c.h.b16 %v2609
    %v3183 = vunpack.c.l.b16 %v2610
    %v3184 = vunpack.c.h.b16 %v2610
    %v3185 = vunpack.c.l.b16 %v2611
    %v3186 = vunpack.c.h.b16 %v2611
    %v3187 = vunpack.c.l.b16 %v2612
    %v3188 = vunpack.c.h.b16 %v2612
    %v3189 = vunpack.c.l.b16 %v2613
    %v3190 = vunpack.c.h.b16 %v2613
    %v3191 = vunpack.c.l.b16 %v2614
    %v3192 = vunpack.c.h.b16 %v2614
    %v3193 = vunpack.c.l.b16 %v2615
    %v3194 = vunpack.c.h.b16 %v2615
    %v3195 = vunpack.c.l.b16 %v2616
    %v3196 = vunpack.c.h.b16 %v2616
    %v3197 = vunpack.c.l.b16 %v2617
    %v3198 = vunpack.c.h.b16 %v2617
    %v3199 = vpack.c.b16 %v3137, %v3135
    %v3200 = vpack.c.b16 %v3138, %v3136
    %v3201 = vpack.c.b16 %v3141, %v3139
    %v3202 = vpack.c.b16 %v3142, %v3140
    %v3203 = vpack.c.b16 %v3145, %v3143
    %v3204 = vpack.c.b16 %v3146, %v3144
    %v3205 = vpack.c.b16 %v3149, %v3147
    %v3206 = vpack.c.b16 %v3150, %v3148
    %v3207 = vpack.c.b16 %v3153, %v3151
    %v3208 = vpack.c.b16 %v3154, %v3152
    %v3209 = vpack.c.b16 %v3157, %v3155
    %v3210 = vpack.c.b16 %v3158, %v3156
    %v3211 = vpack.c.b16 %v3161, %v3159
    %v3212 = vpack.c.b16 %v3162, %v3160
    %v3213 = vpack.c.b16 %v3165, %v3163
    %v3214 = vpack.c.b16 %v3166, %v3164
    %v3215 = vpack.c.b16 %v3169, %v3167
    %v3216 = vpack.c.b16 %v3170, %v3168
    %v3217 = vpack.c.b16 %v3173, %v3171
    %v3218 = vpack.c.b16 %v3174, %v3172
    %v3219 = vpack.c.b16 %v3177, %v3175
    %v3220 = vpack.c.b16 %v3178, %v3176
    %v3221 = vpack.c.b16 %v3181, %v3179
    %v3222 = vpack.c.b16 %v3182, %v3180
    %v3223 = vpack.c.b16 %v3185, %v3183
    %v3224 = vpack.c.b16 %v3186, %v3184
    %v3225 = vpack.c.b16 %v3189, %v3187
    %v3226 = vpack.c.b16 %v3190, %v3188
    %v3227 = vpack.c.b16 %v3193, %v3191
    %v3228 = vpack.c.b16 %v3194, %v3192
    %v3229 = vpack.c.b16 %v3197, %v3195
    %v3230 = vpack.c.b16 %v3198, %v3196
    %3263 = vmatpush.bf16.msra.mxu0 %v3213
    %3264 = vmatpush.bf16.msra.mxu0 %v3211
    %3265 = vmatpush.bf16.msra.mxu0 %v3209
    %3266 = vmatpush.bf16.msra.mxu0 %v3207
    %3267 = vmatpush.bf16.msra.mxu0 %v3205
    %3268 = vmatpush.bf16.msra.mxu0 %v3203
    %3269 = vmatpush.bf16.msra.mxu0 %v3201
    %3270 = vmatpush.bf16.msra.mxu0 %v3199
    %3271 = vmatmul.bf16.gmra.mxu0 %v2582
    %v3272 = vpop.f32.mrf.mxu0
    %v3273 = vadd.f32 %v3056, %v3272
    %v3274 = vpop.f32.mrf.mxu0
    %v3275 = vadd.f32 %v3058, %v3274
    %3276 = vmatmul.bf16.gmra.mxu0 %v2584
    %v3277 = vpop.f32.mrf.mxu0
    %v3278 = vadd.f32 %v3061, %v3277
    %v3279 = vpop.f32.mrf.mxu0
    %v3280 = vadd.f32 %v3063, %v3279
    %3281 = vdwg.mxu0
    %3282 = vmatpush.bf16.msra.mxu0 %v3229
    %3283 = vmatpush.bf16.msra.mxu0 %v3227
    %3284 = vmatpush.bf16.msra.mxu0 %v3225
    %3285 = vmatpush.bf16.msra.mxu0 %v3223
    %3286 = vmatpush.bf16.msra.mxu0 %v3221
    %3287 = vmatpush.bf16.msra.mxu0 %v3219
    %3288 = vmatpush.bf16.msra.mxu0 %v3217
    %3289 = vmatpush.bf16.msra.mxu0 %v3215
    %3290 = vmatmul.bf16.gmra.mxu0 %v2583
    %v3291 = vpop.f32.mrf.mxu0
    %v3292 = vadd.f32 %v3273, %v3291
    %v3293 = vpop.f32.mrf.mxu0
    %v3294 = vadd.f32 %v3275, %v3293
    %3295 = vmatmul.bf16.gmra.mxu0 %v2585
    %v3296 = vpop.f32.mrf.mxu0
    %v3297 = vadd.f32 %v3278, %v3296
    %v3298 = vpop.f32.mrf.mxu0
    %v3299 = vadd.f32 %v3280, %v3298
    %3300 = vdwg.mxu0
    %3301 = vmatpush.bf16.msra.mxu0 %v3214
    %3302 = vmatpush.bf16.msra.mxu0 %v3212
    %3303 = vmatpush.bf16.msra.mxu0 %v3210
    %3304 = vmatpush.bf16.msra.mxu0 %v3208
    %3305 = vmatpush.bf16.msra.mxu0 %v3206
    %3306 = vmatpush.bf16.msra.mxu0 %v3204
    %3307 = vmatpush.bf16.msra.mxu0 %v3202
    %3308 = vmatpush.bf16.msra.mxu0 %v3200
    %3309 = vmatmul.bf16.gmra.mxu0 %v2582
    %v3310 = vpop.f32.mrf.mxu0
    %v3311 = vadd.f32 %v3094, %v3310
    %v3312 = vpop.f32.mrf.mxu0
    %v3313 = vadd.f32 %v3096, %v3312
    %3314 = vmatmul.bf16.gmra.mxu0 %v2584
    %v3315 = vpop.f32.mrf.mxu0
    %v3316 = vadd.f32 %v3099, %v3315
    %v3317 = vpop.f32.mrf.mxu0
    %v3318 = vadd.f32 %v3101, %v3317
    %3319 = vdwg.mxu0
    %3320 = vmatpush.bf16.msra.mxu0 %v3230
    %3321 = vmatpush.bf16.msra.mxu0 %v3228
    %3322 = vmatpush.bf16.msra.mxu0 %v3226
    %3323 = vmatpush.bf16.msra.mxu0 %v3224
    %3324 = vmatpush.bf16.msra.mxu0 %v3222
    %3325 = vmatpush.bf16.msra.mxu0 %v3220
    %3326 = vmatpush.bf16.msra.mxu0 %v3218
    %3327 = vmatpush.bf16.msra.mxu0 %v3216
    %3328 = vmatmul.bf16.gmra.mxu0 %v2583
    %v3329 = vpop.f32.mrf.mxu0
    %v3330 = vadd.f32 %v3311, %v3329
    %v3331 = vpop.f32.mrf.mxu0
    %v3332 = vadd.f32 %v3313, %v3331
    %3333 = vmatmul.bf16.gmra.mxu0 %v2585
    %v3334 = vpop.f32.mrf.mxu0
    %v3335 = vadd.f32 %v3316, %v3334
    %v3336 = vpop.f32.mrf.mxu0
    %v3337 = vadd.f32 %v3318, %v3336
    %3338 = vdwg.mxu0
    %s3339 = scalar_lea.vmem [#allocation10], 6
    %v3340 = vld [vmem:[%s3339] ss:$8 sm:$0x3]
    %v3342 = vperm.slane %v3340, 0
    %v3343 = vperm.slane %v3340, 1
    %v3346 = vadd.f32 %v3292, %v3342
    %v3347 = vadd.f32 %v3330, %v3343
    %v3348 = vadd.f32 %v3294, %v3342
    %v3349 = vadd.f32 %v3332, %v3343
    %v3350 = vadd.f32 %v3297, %v3342
    %v3351 = vadd.f32 %v3335, %v3343
    %v3352 = vadd.f32 %v3299, %v3342
    %v3353 = vadd.f32 %v3337, %v3343
    %3354 = vmatpush.msra.mxu0 0.0
    %3355 = vmatpush.msra.mxu0 0.0
    %3356 = vmatpush.msra.mxu0 0.0
    %3357 = vmatpush.msra.mxu0 0.0
    %3358 = vmatpush.msra.mxu0 0.0
    %3359 = vmatpush.msra.mxu0 0.0
    %3360 = vmatpush.msra.mxu0 0.0
    %3361 = vmatpush.msra.mxu0 0.0
    %3362 = vmatpush.msra.mxu0 0.0
    %3363 = vmatpush.msra.mxu0 0.0
    %3364 = vmatpush.msra.mxu0 0.0
    %3365 = vmatpush.msra.mxu0 0.0
    %3366 = vmatpush.msra.mxu0 %v3352
    %3367 = vmatpush.msra.mxu0 %v3350
    %3368 = vmatpush.msra.mxu0 %v3348
    %3369 = vmatpush.msra.mxu0 %v3346
    %3370 = vmatmul.f32.gmra.mxu0 %v1792
    %v3371 = vpop.f32.mrf.mxu0
    %v3372 = vadd.f32 0.0, %v3371
    %3373 = vdwg.mxu0
    %3374 = vmatpush.msra.mxu0 0.0
    %3375 = vmatpush.msra.mxu0 0.0
    %3376 = vmatpush.msra.mxu0 0.0
    %3377 = vmatpush.msra.mxu0 0.0
    %3378 = vmatpush.msra.mxu0 0.0
    %3379 = vmatpush.msra.mxu0 0.0
    %3380 = vmatpush.msra.mxu0 0.0
    %3381 = vmatpush.msra.mxu0 0.0
    %3382 = vmatpush.msra.mxu0 0.0
    %3383 = vmatpush.msra.mxu0 0.0
    %3384 = vmatpush.msra.mxu0 0.0
    %3385 = vmatpush.msra.mxu0 0.0
    %3386 = vmatpush.msra.mxu0 %v3353
    %3387 = vmatpush.msra.mxu0 %v3351
    %3388 = vmatpush.msra.mxu0 %v3349
    %3389 = vmatpush.msra.mxu0 %v3347
    %3390 = vmatmul.f32.gmra.mxu0 %v1792
    %v3391 = vpop.f32.mrf.mxu0
    %v3392 = vadd.f32 0.0, %v3391
    %3393 = vdwg.mxu0
    %v3394 = vld [vmem:[%s16] sm:$0xff]
    %v3395 = vld [vmem:[%s16 + $0x8] sm:$0xff]
    %v3396 = vld [vmem:[%s16 + $0x10] sm:$0xff]
    %v3397 = vld [vmem:[%s16 + $0x18] sm:$0xff]
    %v3398 = vld [vmem:[%s16 + $0x20] sm:$0xff]
    %v3399 = vld [vmem:[%s16 + $0x28] sm:$0xff]
    %v3400 = vld [vmem:[%s16 + $0x30] sm:$0xff]
    %v3401 = vld [vmem:[%s16 + $0x38] sm:$0xff]
    %v3402 = vld [vmem:[%s16 + $0x40] sm:$0xff]
    %v3403 = vld [vmem:[%s16 + $0x48] sm:$0xff]
    %v3404 = vld [vmem:[%s16 + $0x50] sm:$0xff]
    %v3405 = vld [vmem:[%s16 + $0x58] sm:$0xff]
    %v3406 = vld [vmem:[%s16 + $0x60] sm:$0xff]
    %v3407 = vld [vmem:[%s16 + $0x68] sm:$0xff]
    %v3408 = vld [vmem:[%s16 + $0x70] sm:$0xff]
    %v3409 = vld [vmem:[%s16 + $0x78] sm:$0xff]
    %v3410 = vld [vmem:[%s16 + $0x80] sm:$0xff]
    %v3411 = vld [vmem:[%s16 + $0x88] sm:$0xff]
    %v3412 = vld [vmem:[%s16 + $0x90] sm:$0xff]
    %v3413 = vld [vmem:[%s16 + $0x98] sm:$0xff]
    %v3414 = vld [vmem:[%s16 + $0xa0] sm:$0xff]
    %v3415 = vld [vmem:[%s16 + $0xa8] sm:$0xff]
    %v3416 = vld [vmem:[%s16 + $0xb0] sm:$0xff]
    %v3417 = vld [vmem:[%s16 + $0xb8] sm:$0xff]
    %v3418 = vld [vmem:[%s16 + $0xc0] sm:$0xff]
    %v3419 = vld [vmem:[%s16 + $0xc8] sm:$0xff]
    %v3420 = vld [vmem:[%s16 + $0xd0] sm:$0xff]
    %v3421 = vld [vmem:[%s16 + $0xd8] sm:$0xff]
    %v3422 = vld [vmem:[%s16 + $0xe0] sm:$0xff]
    %v3423 = vld [vmem:[%s16 + $0xe8] sm:$0xff]
    %v3424 = vld [vmem:[%s16 + $0xf0] sm:$0xff]
    %v3425 = vld [vmem:[%s16 + $0xf8] sm:$0xff]
    %3426 = vmatpush.msra.mxu0 %v3409
    %3427 = vmatpush.msra.mxu0 %v3408
    %3428 = vmatpush.msra.mxu0 %v3407
    %3429 = vmatpush.msra.mxu0 %v3406
    %3430 = vmatpush.msra.mxu0 %v3405
    %3431 = vmatpush.msra.mxu0 %v3404
    %3432 = vmatpush.msra.mxu0 %v3403
    %3433 = vmatpush.msra.mxu0 %v3402
    %3434 = vmatpush.msra.mxu0 %v3401
    %3435 = vmatpush.msra.mxu0 %v3400
    %3436 = vmatpush.msra.mxu0 %v3399
    %3437 = vmatpush.msra.mxu0 %v3398
    %3438 = vmatpush.msra.mxu0 %v3397
    %3439 = vmatpush.msra.mxu0 %v3396
    %3440 = vmatpush.msra.mxu0 %v3395
    %3441 = vmatpush.msra.mxu0 %v3394
    %3442 = vmatmul.f32.gmra.mxu0 %v3372
    %v3443 = vpop.f32.mrf.mxu0
    %v3444 = vadd.f32 0.0, %v3443
    %3445 = vdwg.mxu0
    %3446 = vmatpush.msra.mxu0 %v3425
    %3447 = vmatpush.msra.mxu0 %v3424
    %3448 = vmatpush.msra.mxu0 %v3423
    %3449 = vmatpush.msra.mxu0 %v3422
    %3450 = vmatpush.msra.mxu0 %v3421
    %3451 = vmatpush.msra.mxu0 %v3420
    %3452 = vmatpush.msra.mxu0 %v3419
    %3453 = vmatpush.msra.mxu0 %v3418
    %3454 = vmatpush.msra.mxu0 %v3417
    %3455 = vmatpush.msra.mxu0 %v3416
    %3456 = vmatpush.msra.mxu0 %v3415
    %3457 = vmatpush.msra.mxu0 %v3414
    %3458 = vmatpush.msra.mxu0 %v3413
    %3459 = vmatpush.msra.mxu0 %v3412
    %3460 = vmatpush.msra.mxu0 %v3411
    %3461 = vmatpush.msra.mxu0 %v3410
    %3462 = vmatmul.f32.gmra.mxu0 %v3392
    %v3463 = vpop.f32.mrf.mxu0
    %v3464 = vadd.f32 %v3444, %v3463
    %3465 = vdwg.mxu0
    %v3466 = vmax.f32 %v3464, 0.0
    %v3467 = vld [vmem:[#allocation13] sm:$0xff]
    %3469 = vst [vmem:[#allocation1] ss:$2 sm:$0xff] %v3467
    %v3470 = vld.sshfl [vmem:[#allocation1] sm:$0xff pattern:$0x75316420]
    %v3471 = vld.sshfl [vmem:[#allocation1 + $0x8] sm:$0xff pattern:$0x75316420]
    %v3473 = vsel %vm1912, %v3466, 0
    %v3475 = vsel %vm1916, %v3470, 0
    %v3477 = vsel %vm1916, %v3471, 0
    %3479 = vmatpush.msra.mxu0 0.0
    %3480 = vmatpush.msra.mxu0 0.0
    %3481 = vmatpush.msra.mxu0 0.0
    %3482 = vmatpush.msra.mxu0 0.0
    %3483 = vmatpush.msra.mxu0 0.0
    %3484 = vmatpush.msra.mxu0 0.0
    %3485 = vmatpush.msra.mxu0 0.0
    %3486 = vmatpush.msra.mxu0 0.0
    %3487 = vmatpush.msra.mxu0 0.0
    %3488 = vmatpush.msra.mxu0 0.0
    %3489 = vmatpush.msra.mxu0 0.0
    %3490 = vmatpush.msra.mxu0 0.0
    %3491 = vmatpush.msra.mxu0 0.0
    %3492 = vmatpush.msra.mxu0 0.0
    %3493 = vmatpush.msra.mxu0 0.0
    %3494 = vmatpush.msra.mxu0 %v3475
    %3495 = vmatmul.f32.gmra.mxu0 %v3473
    %v3496 = vpop.f32.mrf.mxu0
    %v3497 = vadd.f32 0.0, %v3496
    %3498 = vdwg.mxu0
    %3499 = vmatpush.msra.mxu0 0.0
    %3500 = vmatpush.msra.mxu0 0.0
    %3501 = vmatpush.msra.mxu0 0.0
    %3502 = vmatpush.msra.mxu0 0.0
    %3503 = vmatpush.msra.mxu0 0.0
    %3504 = vmatpush.msra.mxu0 0.0
    %3505 = vmatpush.msra.mxu0 0.0
    %3506 = vmatpush.msra.mxu0 0.0
    %3507 = vmatpush.msra.mxu0 0.0
    %3508 = vmatpush.msra.mxu0 0.0
    %3509 = vmatpush.msra.mxu0 0.0
    %3510 = vmatpush.msra.mxu0 0.0
    %3511 = vmatpush.msra.mxu0 0.0
    %3512 = vmatpush.msra.mxu0 0.0
    %3513 = vmatpush.msra.mxu0 0.0
    %3514 = vmatpush.msra.mxu0 %v3477
    %3515 = vmatmul.f32.gmra.mxu0 %v3473
    %v3516 = vpop.f32.mrf.mxu0
    %v3517 = vadd.f32 0.0, %v3516
    %3518 = vdwg.mxu0
    %v3519 = vsub.f32 0.0, %v3497
    %v3520 = vsub.f32 0.0, %v3517
    %v3521 = vmul.f32 %v3519, 1.442695
    %v3522 = vpow.pop %v3521
    %v3523 = vmul.f32 %v3520, 1.442695
    %v3524 = vpow.pop %v3523
    %v3525 = vadd.f32 %v3522, 1.0
    %v3526 = vadd.f32 %v3524, 1.0
    %v3527 = vrcp.pop %v3525
    %v3528 = vmul.f32 %v3525, %v3527
    %v3529 = vsub.f32 1.0, %v3528
    %v3530 = vmul.f32 %v3527, %v3529
    %v3531 = vadd.f32 %v3527, %v3530
    %vm3532 = vweird.f32 %v3525
    %vm3533 = vweird.f32 %v3527
    %vm3534 = vmor %vm3532, %vm3533
    %v3535 = vsel %vm3534, %v3527, %v3531
    %v3536 = vand.u32 2147483647, %v3525
    %vm3537 = vcmp.eq.f32.partialorder %v3536, 8.507059e+37
    %v3538 = vand.u32 %v3525, 2147483648
    %v3539 = vor.u32 1.1754944e-38, %v3538
    %v3540 = vsel %vm3537, %v3539, %v3535
    %v3541 = vmul.f32 1.0, %v3540
    %v3542 = vrcp.pop %v3526
    %v3543 = vmul.f32 %v3526, %v3542
    %v3544 = vsub.f32 1.0, %v3543
    %v3545 = vmul.f32 %v3542, %v3544
    %v3546 = vadd.f32 %v3542, %v3545
    %vm3547 = vweird.f32 %v3526
    %vm3548 = vweird.f32 %v3542
    %vm3549 = vmor %vm3547, %vm3548
    %v3550 = vsel %vm3549, %v3542, %v3546
    %v3551 = vand.u32 2147483647, %v3526
    %vm3552 = vcmp.eq.f32.partialorder %v3551, 8.507059e+37
    %v3553 = vand.u32 %v3526, 2147483648
    %v3554 = vor.u32 1.1754944e-38, %v3553
    %v3555 = vsel %vm3552, %v3554, %v3550
    %v3556 = vmul.f32 1.0, %v3555
    %v3558 = vsel %vm2016, %v3541, 0
    %v3561 = vsel %vm2016, %v3556, 0
    %3563 = vmatpush.msra.mxu0 0.0
    %3564 = vmatpush.msra.mxu0 0.0
    %3565 = vmatpush.msra.mxu0 0.0
    %3566 = vmatpush.msra.mxu0 0.0
    %3567 = vmatpush.msra.mxu0 0.0
    %3568 = vmatpush.msra.mxu0 0.0
    %3569 = vmatpush.msra.mxu0 0.0
    %3570 = vmatpush.msra.mxu0 0.0
    %3571 = vmatpush.msra.mxu0 0.0
    %3572 = vmatpush.msra.mxu0 0.0
    %3573 = vmatpush.msra.mxu0 0.0
    %3574 = vmatpush.msra.mxu0 0.0
    %3575 = vmatpush.msra.mxu0 0.0
    %3576 = vmatpush.msra.mxu0 0.0
    %3577 = vmatpush.msra.mxu0 0.0
    %3578 = vmatpush.msra.mxu0 %v3558
    %3579 = vmatmul.f32.gmra.mxu0 %v2005
    %v3580 = vpop.f32.mrf.mxu0
    %v3581 = vadd.f32 0.0, %v3580
    %3582 = vmatmul.f32.gmra.mxu0 %v2008
    %v3583 = vpop.f32.mrf.mxu0
    %v3584 = vadd.f32 0.0, %v3583
    %3585 = vmatmul.f32.gmra.mxu0 %v2011
    %v3586 = vpop.f32.mrf.mxu0
    %v3587 = vadd.f32 0.0, %v3586
    %3588 = vmatmul.f32.gmra.mxu0 %v2014
    %v3589 = vpop.f32.mrf.mxu0
    %v3590 = vadd.f32 0.0, %v3589
    %3591 = vdwg.mxu0
    %3592 = vmatpush.msra.mxu0 0.0
    %3593 = vmatpush.msra.mxu0 0.0
    %3594 = vmatpush.msra.mxu0 0.0
    %3595 = vmatpush.msra.mxu0 0.0
    %3596 = vmatpush.msra.mxu0 0.0
    %3597 = vmatpush.msra.mxu0 0.0
    %3598 = vmatpush.msra.mxu0 0.0
    %3599 = vmatpush.msra.mxu0 0.0
    %3600 = vmatpush.msra.mxu0 0.0
    %3601 = vmatpush.msra.mxu0 0.0
    %3602 = vmatpush.msra.mxu0 0.0
    %3603 = vmatpush.msra.mxu0 0.0
    %3604 = vmatpush.msra.mxu0 0.0
    %3605 = vmatpush.msra.mxu0 0.0
    %3606 = vmatpush.msra.mxu0 0.0
    %3607 = vmatpush.msra.mxu0 %v3561
    %3608 = vmatmul.f32.gmra.mxu0 %v2005
    %v3609 = vpop.f32.mrf.mxu0
    %v3610 = vadd.f32 0.0, %v3609
    %3611 = vmatmul.f32.gmra.mxu0 %v2008
    %v3612 = vpop.f32.mrf.mxu0
    %v3613 = vadd.f32 0.0, %v3612
    %3614 = vmatmul.f32.gmra.mxu0 %v2011
    %v3615 = vpop.f32.mrf.mxu0
    %v3616 = vadd.f32 0.0, %v3615
    %3617 = vmatmul.f32.gmra.mxu0 %v2014
    %v3618 = vpop.f32.mrf.mxu0
    %v3619 = vadd.f32 0.0, %v3618
    %3620 = vdwg.mxu0
    %v3621 = vmul.f32 %v3346, %v3581
    %v3622 = vmul.f32 %v3347, %v3610
    %v3623 = vmul.f32 %v3348, %v3584
    %v3624 = vmul.f32 %v3349, %v3613
    %v3625 = vmul.f32 %v3350, %v3587
    %v3626 = vmul.f32 %v3351, %v3616
    %v3627 = vmul.f32 %v3352, %v3590
    %v3628 = vmul.f32 %v3353, %v3619
    %v3629 = vadd.f32 %v3621, %v2081
    %v3630 = vadd.f32 %v3622, %v2082
    %v3631 = vadd.f32 %v3623, %v2083
    %v3632 = vadd.f32 %v3624, %v2084
    %v3633 = vadd.f32 %v3625, %v2085
    %v3634 = vadd.f32 %v3626, %v2086
    %v3635 = vadd.f32 %v3627, %v2087
    %v3636 = vadd.f32 %v3628, %v2088
    %3637 = vst [vmem:[%s18] sm:$0xff] %v3629
    %3638 = vst [vmem:[%s18 + $0x8] sm:$0xff] %v3630
    %3639 = vst [vmem:[%s18 + $0x10] sm:$0xff] %v3631
    %3640 = vst [vmem:[%s18 + $0x18] sm:$0xff] %v3632
    %3641 = vst [vmem:[%s18 + $0x20] sm:$0xff] %v3633
    %3642 = vst [vmem:[%s18 + $0x28] sm:$0xff] %v3634
    %3643 = vst [vmem:[%s18 + $0x30] sm:$0xff] %v3635
    %3644 = vst [vmem:[%s18 + $0x38] sm:$0xff] %v3636
    // Predicated region
    $region106: #{cab_dsc_forward.1} parent=1 // pred_check
      _
    $region107: #{cab_dsc_forward.1} parent=1 // pred_check_branch
      %3646 = sbr.rel (0) target = $region109
    $region108: #{cab_dsc_forward.1} parent=1 // pred_region
      _
    $region109: #{cab_dsc_forward.1} parent=1 // pred_fallthru
      _
    // Predicated region
    $region110: #{cab_dsc_forward.1} parent=1 // pred_check
      _
    $region111: #{cab_dsc_forward.1} parent=1 // pred_check_branch
      %3648 = sbr.rel (0) target = $region113
    $region112: #{cab_dsc_forward.1} parent=1 // pred_region
      _
    $region113: #{cab_dsc_forward.1} parent=1 // pred_fallthru
      _
    %3649 = vsyncpa [#allocation3], 1
    %3650 = vsyncpa [#allocation5], 1
    %3651 = vsyncpa [#allocation8], 1
    %3652 = vsyncpa [#allocation11], 1
    %3653 = vsyncpa [#allocation14], 1

</llo_original>
